<compile_context>
chip_gen: v5e
topology: v5e:2x2
jax: 0.10.0
libtpu: 0.0.40
codegen_flags: <defaults>
</compile_context>

<pallas_src>
import functools

import jax
import jax.numpy as jnp
from jax.experimental import pallas as pl
from jax.experimental.pallas import tpu as pltpu

KH, KW = 5, 3          # conv kernel
PH, PW = 5, 3          # max-pool kernel (stride == kernel, floor mode)
EPS = 1e-5             # BatchNorm eps (torch default)
NEG_SLOPE = 0.01       # LeakyReLU default
DROP_P = 0.5           # Dropout p
LANES = 128            # TPU lane width

# pltpu.CompilerParams was named TPUCompilerParams in older jax releases.
_CompilerParams = getattr(pltpu, "CompilerParams", None) or getattr(
    pltpu, "TPUCompilerParams")


def _conv_acc(x_ref, w_ref, *, H, W, Wp, Cp):
    """Conv as KH*KW per-tap matmuls accumulated in f32.

    x_ref block: (1, Hp*Wp + KW-1, Cin)  flattened zero-padded image (bf16)
    w_ref block: (KH*KW, Cin, Cp)        per-tap weights, channel-padded (bf16)
    returns    : (H*Wp, Cp) f32 — row h*Wp + w holds the conv output for output
                 pixel (h, w); columns w in [W, Wp) are junk and never read.
    """
    rows = H * Wp
    acc = jnp.zeros((rows, Cp), jnp.float32)
    for kh in range(KH):
        for kw in range(KW):
            t = kh * KW + kw
            start = kh * Wp + kw
            lhs = x_ref[0, start:start + rows, :]          # (rows, Cin), static slice
            acc = acc + jnp.dot(lhs, w_ref[t],
                                preferred_element_type=jnp.float32)
    return acc


def _stats_kernel(x_ref, w_ref, sum_ref, sq_ref, *, H, W, Wp, Cp):
    """Pass 1: accumulate per-channel sum / sum-of-squares of the conv output."""
    @pl.when(pl.program_id(0) == 0)
    def _init():
        sum_ref[...] = jnp.zeros_like(sum_ref)
        sq_ref[...] = jnp.zeros_like(sq_ref)

    acc = _conv_acc(x_ref, w_ref, H=H, W=W, Wp=Wp, Cp=Cp)   # (H*Wp, Cp)
    s1 = jnp.zeros((W, Cp), jnp.float32)
    s2 = jnp.zeros((W, Cp), jnp.float32)
    for h in range(H):                                      # only the W valid cols
        blk = acc[h * Wp:h * Wp + W, :]
        s1 = s1 + blk
        s2 = s2 + blk * blk
    sum_ref[...] += jnp.sum(s1, axis=0, keepdims=True)
    sq_ref[...] += jnp.sum(s2, axis=0, keepdims=True)


def _apply_kernel(x_ref, w_ref, scale_ref, shift_ref, mask_ref, out_ref,
                  *, H, W, Wp, Ho, Wo, Cp):
    """Pass 2: conv + folded BN + LeakyReLU + (5,3) max-pool + dropout, one store."""
    acc = _conv_acc(x_ref, w_ref, H=H, W=W, Wp=Wp, Cp=Cp)   # (H*Wp, Cp) f32
    y = acc * scale_ref[...] + shift_ref[...]               # BN folded to scale/shift
    y = jnp.where(y >= 0, y, NEG_SLOPE * y)                 # LeakyReLU

    pooled_rows = []
    for i in range(Ho):
        band = None                                         # max over PH image rows
        for ph in range(PH):
            start = (i * PH + ph) * Wp
            blk = y[start:start + W, :]                     # (W, Cp)
            band = blk if band is None else jnp.maximum(band, blk)
        for j in range(Wo):
            win = band[j * PW:(j + 1) * PW, :]              # (PW, Cp)
            pooled_rows.append(jnp.max(win, axis=0, keepdims=True))
    pooled = jnp.concatenate(pooled_rows, axis=0)           # (Ho*Wo, Cp)

    # dropout fused into the single lane-dense store
    out_ref[0] = pooled * mask_ref[0]


def first_conv_layer(x_nchw, conv_w, conv_b, bn_gamma, bn_beta, drop_seed=0):
    N, Cin, H, W = x_nchw.shape
    Cout = conv_w.shape[0]
    Ho, Wo = H // PH, W // PW
    Hp, Wp = H + KH - 1, W + KW - 1
    Cp = ((Cout + LANES - 1) // LANES) * LANES
    R = Hp * Wp + (KW - 1)        # flattened padded rows (+ slack for last tap)

    # --- layout glue (no im2col inflation): NCHW -> padded NHWC -> flattened ---
    x = jnp.transpose(x_nchw, (0, 2, 3, 1)).astype(jnp.float32)
    xp = jnp.pad(x, ((0, 0), (KH // 2, KH // 2), (KW // 2, KW // 2), (0, 0)))
    x2 = xp.reshape(N, Hp * Wp, Cin)
    x2 = jnp.pad(x2, ((0, 0), (0, R - Hp * Wp), (0, 0))).astype(jnp.bfloat16)

    # (Cout, Cin, KH, KW) -> (KH*KW, Cin, Cp), output channels padded to 128 lanes
    w_t = jnp.transpose(conv_w, (2, 3, 1, 0)).reshape(KH * KW, Cin, Cout)
    w_t = jnp.pad(w_t, ((0, 0), (0, 0), (0, Cp - Cout))).astype(jnp.bfloat16)
    # conv bias is exactly absorbed by the training-mode BN mean subtraction
    # (and is zero-initialized in the module), so it is intentionally unused.
    _ = conv_b

    common = dict(H=H, W=W, Wp=Wp, Cp=Cp)

    # ---- pass 1: per-channel sum / sumsq of the conv output over the batch ----
    ssum, ssq = pl.pallas_call(
        functools.partial(_stats_kernel, **common),
        grid=(N,),
        in_specs=[
            pl.BlockSpec((1, R, Cin), lambda n: (n, 0, 0)),
            pl.BlockSpec((KH * KW, Cin, Cp), lambda n: (0, 0, 0)),
        ],
        out_specs=[
            pl.BlockSpec((1, Cp), lambda n: (0, 0)),
            pl.BlockSpec((1, Cp), lambda n: (0, 0)),
        ],
        out_shape=[
            jax.ShapeDtypeStruct((1, Cp), jnp.float32),
            jax.ShapeDtypeStruct((1, Cp), jnp.float32),
        ],
        compiler_params=_CompilerParams(dimension_semantics=("arbitrary",)),
    )(x2, w_t)

    # ---- fold BatchNorm (training-mode batch stats, biased var) into scale/shift ----
    cnt = float(N * H * W)
    mean = ssum / cnt
    var = jnp.maximum(ssq / cnt - mean * mean, 0.0)
    gamma = jnp.pad(bn_gamma.astype(jnp.float32), (0, Cp - Cout)).reshape(1, Cp)
    beta = jnp.pad(bn_beta.astype(jnp.float32), (0, Cp - Cout)).reshape(1, Cp)
    scale = gamma * jax.lax.rsqrt(var + EPS)
    shift = beta - mean * scale

    # ---- dropout multiplier (training mode), precomputed and fused in-kernel ----
    # TODO(synk): mask is deterministic per seed but the bit-stream differs from
    # torch's RNG (exact torch dropout mask is not reproducible).
    keep = jax.random.uniform(jax.random.PRNGKey(drop_seed),
                              (N, Ho * Wo, Cp)) >= DROP_P
    dmask = keep.astype(jnp.float32) * (1.0 / (1.0 - DROP_P))

    # ---- pass 2: conv + BN + LeakyReLU + pool + dropout, one store per image ----
    out = pl.pallas_call(
        functools.partial(_apply_kernel, Ho=Ho, Wo=Wo, **common),
        grid=(N,),
        in_specs=[
            pl.BlockSpec((1, R, Cin), lambda n: (n, 0, 0)),
            pl.BlockSpec((KH * KW, Cin, Cp), lambda n: (0, 0, 0)),
            pl.BlockSpec((1, Cp), lambda n: (0, 0)),
            pl.BlockSpec((1, Cp), lambda n: (0, 0)),
            pl.BlockSpec((1, Ho * Wo, Cp), lambda n: (n, 0, 0)),
        ],
        out_specs=pl.BlockSpec((1, Ho * Wo, Cp), lambda n: (n, 0, 0)),
        out_shape=jax.ShapeDtypeStruct((N, Ho * Wo, Cp), jnp.float32),
        compiler_params=_CompilerParams(dimension_semantics=("parallel",)),
    )(x2, w_t, scale, shift, dmask)

    # back to PyTorch NCHW output layout, dropping the channel padding
    out = out.reshape(N, Ho, Wo, Cp)[:, :, :, :Cout]
    return jnp.transpose(out, (0, 3, 1, 2))


if __name__ == "__main__":
    key = jax.random.PRNGKey(0)
    k_x, k_w = jax.random.split(key)

    N, Cin, H, W = 2, 4, 16, 16
    Cout = 50  # filters=50 as in the module default

    x = jax.random.normal(k_x, (N, Cin, H, W), dtype=jnp.float32)

    # deterministic parameter init mirroring the module's __init__:
    # xavier_uniform_(conv weight, gain=1), conv bias = 0, BN gamma = 1, beta = 0
    fan_in = Cin * KH * KW
    fan_out = Cout * KH * KW
    bound = (6.0 / (fan_in + fan_out)) ** 0.5
    conv_w = jax.random.uniform(k_w, (Cout, Cin, KH, KW), dtype=jnp.float32,
                                minval=-bound, maxval=bound)
    conv_b = jnp.zeros((Cout,), dtype=jnp.float32)
    bn_gamma = jnp.ones((Cout,), dtype=jnp.float32)
    bn_beta = jnp.zeros((Cout,), dtype=jnp.float32)

    out = first_conv_layer(x, conv_w, conv_b, bn_gamma, bn_beta, drop_seed=0)
    jax.block_until_ready(out)
    assert out.shape == (N, Cout, H // PH, W // PW), out.shape
    assert out.dtype == jnp.float32
    print("KERNEL_OK")
</pallas_src>

<mosaic_0001>
module attributes {stable_mosaic.version = 11 : i64} {
  func.func @_stats_kernel(%arg0: i32, %arg1: memref<1x362x4xbf16, #tpu.memory_space<vmem>>, %arg2: memref<15x4x128xbf16, #tpu.memory_space<vmem>>, %arg3: memref<1x128xf32, #tpu.memory_space<vmem>>, %arg4: memref<1x128xf32, #tpu.memory_space<vmem>>) attributes {dimension_semantics = [#tpu.dimension_semantics<arbitrary>], iteration_bounds = array<i64: 2>, scalar_prefetch = 0 : i64, scratch_operands = 0 : i64, tpu.core_type = #tpu.core_type<tc>, window_params = [{transform_indices = @transform_0, window_bounds = array<i64: 1, 362, 4>}, {pipeline_mode = #tpu.pipeline_mode<synchronous>, transform_indices = @transform_1, window_bounds = array<i64: 15, 4, 128>}, {pipeline_mode = #tpu.pipeline_mode<synchronous>, transform_indices = @transform_2, window_bounds = array<i64: 1, 128>}, {pipeline_mode = #tpu.pipeline_mode<synchronous>, transform_indices = @transform_3, window_bounds = array<i64: 1, 128>}]} {
    %c0_i32 = arith.constant 0 : i32
    %0 = arith.cmpi eq, %arg0, %c0_i32 : i32
    %1 = arith.extui %0 : i1 to i32
    %c0_i32_0 = arith.constant 0 : i32
    %2 = arith.cmpi ne, %1, %c0_i32_0 : i32
    scf.if %2 {
      %cst_91 = arith.constant 0.000000e+00 : f32
      %170 = vector.broadcast %cst_91 : f32 to vector<1x128xf32>
      %c0_92 = arith.constant 0 : index
      %c0_93 = arith.constant 0 : index
      %171 = vector.load %arg3[%c0_92, %c0_93] : memref<1x128xf32, #tpu.memory_space<vmem>>, vector<1x128xf32>
      tpu.vector_store %arg3[%c0_92, %c0_93], %170 {strides = array<i32>} : memref<1x128xf32, #tpu.memory_space<vmem>>, vector<1x128xf32>,
      %cst_94 = arith.constant 0.000000e+00 : f32
      %172 = vector.broadcast %cst_94 : f32 to vector<1x128xf32>
      %c0_95 = arith.constant 0 : index
      %c0_96 = arith.constant 0 : index
      %173 = vector.load %arg4[%c0_95, %c0_96] : memref<1x128xf32, #tpu.memory_space<vmem>>, vector<1x128xf32>
      tpu.vector_store %arg4[%c0_95, %c0_96], %172 {strides = array<i32>} : memref<1x128xf32, #tpu.memory_space<vmem>>, vector<1x128xf32>,
    } else {
    }
    %cst = arith.constant 0.000000e+00 : f32
    %3 = vector.broadcast %cst : f32 to vector<288x128xf32>
    %c0 = arith.constant 0 : index
    %c0_1 = arith.constant 0 : index
    %c0_2 = arith.constant 0 : index
    %4 = vector.load %arg1[%c0, %c0_1, %c0_2] : memref<1x362x4xbf16, #tpu.memory_space<vmem>>, vector<1x288x4xbf16>
    %5 = vector.shape_cast %4 : vector<1x288x4xbf16> to vector<288x4xbf16>
    %c0_3 = arith.constant 0 : index
    %c0_4 = arith.constant 0 : index
    %c0_5 = arith.constant 0 : index
    %6 = vector.load %arg2[%c0_3, %c0_4, %c0_5] : memref<15x4x128xbf16, #tpu.memory_space<vmem>>, vector<1x4x128xbf16>
    %7 = vector.shape_cast %6 : vector<1x4x128xbf16> to vector<4x128xbf16>
    %cst_6 = arith.constant dense<0.000000e+00> : vector<288x128xf32>
    %8 = tpu.matmul %5, %7, %cst_6 {dimension_numbers = #tpu.dot_dimension_numbers<[1], [0], [0], [1], [0, 0, 1, 1], [], []>} : vector<288x4xbf16>, vector<4x128xbf16>, vector<288x128xf32> -> vector<288x128xf32>
    %9 = arith.addf %3, %8 : vector<288x128xf32>
    %c0_7 = arith.constant 0 : index
    %c1 = arith.constant 1 : index
    %c0_8 = arith.constant 0 : index
    %10 = vector.load %arg1[%c0_7, %c1, %c0_8] : memref<1x362x4xbf16, #tpu.memory_space<vmem>>, vector<1x288x4xbf16>
    %11 = vector.shape_cast %10 : vector<1x288x4xbf16> to vector<288x4xbf16>
    %c1_9 = arith.constant 1 : index
    %c0_10 = arith.constant 0 : index
    %c0_11 = arith.constant 0 : index
    %12 = vector.load %arg2[%c1_9, %c0_10, %c0_11] : memref<15x4x128xbf16, #tpu.memory_space<vmem>>, vector<1x4x128xbf16>
    %13 = vector.shape_cast %12 : vector<1x4x128xbf16> to vector<4x128xbf16>
    %cst_12 = arith.constant dense<0.000000e+00> : vector<288x128xf32>
    %14 = tpu.matmul %11, %13, %cst_12 {dimension_numbers = #tpu.dot_dimension_numbers<[1], [0], [0], [1], [0, 0, 1, 1], [], []>} : vector<288x4xbf16>, vector<4x128xbf16>, vector<288x128xf32> -> vector<288x128xf32>
    %15 = arith.addf %9, %14 : vector<288x128xf32>
    %c0_13 = arith.constant 0 : index
    %c2 = arith.constant 2 : index
    %c0_14 = arith.constant 0 : index
    %16 = vector.load %arg1[%c0_13, %c2, %c0_14] : memref<1x362x4xbf16, #tpu.memory_space<vmem>>, vector<1x288x4xbf16>
    %17 = vector.shape_cast %16 : vector<1x288x4xbf16> to vector<288x4xbf16>
    %c2_15 = arith.constant 2 : index
    %c0_16 = arith.constant 0 : index
    %c0_17 = arith.constant 0 : index
    %18 = vector.load %arg2[%c2_15, %c0_16, %c0_17] : memref<15x4x128xbf16, #tpu.memory_space<vmem>>, vector<1x4x128xbf16>
    %19 = vector.shape_cast %18 : vector<1x4x128xbf16> to vector<4x128xbf16>
    %cst_18 = arith.constant dense<0.000000e+00> : vector<288x128xf32>
    %20 = tpu.matmul %17, %19, %cst_18 {dimension_numbers = #tpu.dot_dimension_numbers<[1], [0], [0], [1], [0, 0, 1, 1], [], []>} : vector<288x4xbf16>, vector<4x128xbf16>, vector<288x128xf32> -> vector<288x128xf32>
    %21 = arith.addf %15, %20 : vector<288x128xf32>
    %c0_19 = arith.constant 0 : index
    %c18 = arith.constant 18 : index
    %c0_20 = arith.constant 0 : index
    %22 = vector.load %arg1[%c0_19, %c18, %c0_20] : memref<1x362x4xbf16, #tpu.memory_space<vmem>>, vector<1x288x4xbf16>
    %23 = vector.shape_cast %22 : vector<1x288x4xbf16> to vector<288x4xbf16>
    %c3 = arith.constant 3 : index
    %c0_21 = arith.constant 0 : index
    %c0_22 = arith.constant 0 : index
    %24 = vector.load %arg2[%c3, %c0_21, %c0_22] : memref<15x4x128xbf16, #tpu.memory_space<vmem>>, vector<1x4x128xbf16>
    %25 = vector.shape_cast %24 : vector<1x4x128xbf16> to vector<4x128xbf16>
    %cst_23 = arith.constant dense<0.000000e+00> : vector<288x128xf32>
    %26 = tpu.matmul %23, %25, %cst_23 {dimension_numbers = #tpu.dot_dimension_numbers<[1], [0], [0], [1], [0, 0, 1, 1], [], []>} : vector<288x4xbf16>, vector<4x128xbf16>, vector<288x128xf32> -> vector<288x128xf32>
    %27 = arith.addf %21, %26 : vector<288x128xf32>
    %c0_24 = arith.constant 0 : index
    %c19 = arith.constant 19 : index
    %c0_25 = arith.constant 0 : index
    %28 = vector.load %arg1[%c0_24, %c19, %c0_25] : memref<1x362x4xbf16, #tpu.memory_space<vmem>>, vector<1x288x4xbf16>
    %29 = vector.shape_cast %28 : vector<1x288x4xbf16> to vector<288x4xbf16>
    %c4 = arith.constant 4 : index
    %c0_26 = arith.constant 0 : index
    %c0_27 = arith.constant 0 : index
    %30 = vector.load %arg2[%c4, %c0_26, %c0_27] : memref<15x4x128xbf16, #tpu.memory_space<vmem>>, vector<1x4x128xbf16>
    %31 = vector.shape_cast %30 : vector<1x4x128xbf16> to vector<4x128xbf16>
    %cst_28 = arith.constant dense<0.000000e+00> : vector<288x128xf32>
    %32 = tpu.matmul %29, %31, %cst_28 {dimension_numbers = #tpu.dot_dimension_numbers<[1], [0], [0], [1], [0, 0, 1, 1], [], []>} : vector<288x4xbf16>, vector<4x128xbf16>, vector<288x128xf32> -> vector<288x128xf32>
    %33 = arith.addf %27, %32 : vector<288x128xf32>
    %c0_29 = arith.constant 0 : index
    %c20 = arith.constant 20 : index
    %c0_30 = arith.constant 0 : index
    %34 = vector.load %arg1[%c0_29, %c20, %c0_30] : memref<1x362x4xbf16, #tpu.memory_space<vmem>>, vector<1x288x4xbf16>
    %35 = vector.shape_cast %34 : vector<1x288x4xbf16> to vector<288x4xbf16>
    %c5 = arith.constant 5 : index
    %c0_31 = arith.constant 0 : index
    %c0_32 = arith.constant 0 : index
    %36 = vector.load %arg2[%c5, %c0_31, %c0_32] : memref<15x4x128xbf16, #tpu.memory_space<vmem>>, vector<1x4x128xbf16>
    %37 = vector.shape_cast %36 : vector<1x4x128xbf16> to vector<4x128xbf16>
    %cst_33 = arith.constant dense<0.000000e+00> : vector<288x128xf32>
    %38 = tpu.matmul %35, %37, %cst_33 {dimension_numbers = #tpu.dot_dimension_numbers<[1], [0], [0], [1], [0, 0, 1, 1], [], []>} : vector<288x4xbf16>, vector<4x128xbf16>, vector<288x128xf32> -> vector<288x128xf32>
    %39 = arith.addf %33, %38 : vector<288x128xf32>
    %c0_34 = arith.constant 0 : index
    %c36 = arith.constant 36 : index
    %c0_35 = arith.constant 0 : index
    %40 = vector.load %arg1[%c0_34, %c36, %c0_35] : memref<1x362x4xbf16, #tpu.memory_space<vmem>>, vector<1x288x4xbf16>
    %41 = vector.shape_cast %40 : vector<1x288x4xbf16> to vector<288x4xbf16>
    %c6 = arith.constant 6 : index
    %c0_36 = arith.constant 0 : index
    %c0_37 = arith.constant 0 : index
    %42 = vector.load %arg2[%c6, %c0_36, %c0_37] : memref<15x4x128xbf16, #tpu.memory_space<vmem>>, vector<1x4x128xbf16>
    %43 = vector.shape_cast %42 : vector<1x4x128xbf16> to vector<4x128xbf16>
    %cst_38 = arith.constant dense<0.000000e+00> : vector<288x128xf32>
    %44 = tpu.matmul %41, %43, %cst_38 {dimension_numbers = #tpu.dot_dimension_numbers<[1], [0], [0], [1], [0, 0, 1, 1], [], []>} : vector<288x4xbf16>, vector<4x128xbf16>, vector<288x128xf32> -> vector<288x128xf32>
    %45 = arith.addf %39, %44 : vector<288x128xf32>
    %c0_39 = arith.constant 0 : index
    %c37 = arith.constant 37 : index
    %c0_40 = arith.constant 0 : index
    %46 = vector.load %arg1[%c0_39, %c37, %c0_40] : memref<1x362x4xbf16, #tpu.memory_space<vmem>>, vector<1x288x4xbf16>
    %47 = vector.shape_cast %46 : vector<1x288x4xbf16> to vector<288x4xbf16>
    %c7 = arith.constant 7 : index
    %c0_41 = arith.constant 0 : index
    %c0_42 = arith.constant 0 : index
    %48 = vector.load %arg2[%c7, %c0_41, %c0_42] : memref<15x4x128xbf16, #tpu.memory_space<vmem>>, vector<1x4x128xbf16>
    %49 = vector.shape_cast %48 : vector<1x4x128xbf16> to vector<4x128xbf16>
    %cst_43 = arith.constant dense<0.000000e+00> : vector<288x128xf32>
    %50 = tpu.matmul %47, %49, %cst_43 {dimension_numbers = #tpu.dot_dimension_numbers<[1], [0], [0], [1], [0, 0, 1, 1], [], []>} : vector<288x4xbf16>, vector<4x128xbf16>, vector<288x128xf32> -> vector<288x128xf32>
    %51 = arith.addf %45, %50 : vector<288x128xf32>
    %c0_44 = arith.constant 0 : index
    %c38 = arith.constant 38 : index
    %c0_45 = arith.constant 0 : index
    %52 = vector.load %arg1[%c0_44, %c38, %c0_45] : memref<1x362x4xbf16, #tpu.memory_space<vmem>>, vector<1x288x4xbf16>
    %53 = vector.shape_cast %52 : vector<1x288x4xbf16> to vector<288x4xbf16>
    %c8 = arith.constant 8 : index
    %c0_46 = arith.constant 0 : index
    %c0_47 = arith.constant 0 : index
    %54 = vector.load %arg2[%c8, %c0_46, %c0_47] : memref<15x4x128xbf16, #tpu.memory_space<vmem>>, vector<1x4x128xbf16>
    %55 = vector.shape_cast %54 : vector<1x4x128xbf16> to vector<4x128xbf16>
    %cst_48 = arith.constant dense<0.000000e+00> : vector<288x128xf32>
    %56 = tpu.matmul %53, %55, %cst_48 {dimension_numbers = #tpu.dot_dimension_numbers<[1], [0], [0], [1], [0, 0, 1, 1], [], []>} : vector<288x4xbf16>, vector<4x128xbf16>, vector<288x128xf32> -> vector<288x128xf32>
    %57 = arith.addf %51, %56 : vector<288x128xf32>
    %c0_49 = arith.constant 0 : index
    %c54 = arith.constant 54 : index
    %c0_50 = arith.constant 0 : index
    %58 = vector.load %arg1[%c0_49, %c54, %c0_50] : memref<1x362x4xbf16, #tpu.memory_space<vmem>>, vector<1x288x4xbf16>
    %59 = vector.shape_cast %58 : vector<1x288x4xbf16> to vector<288x4xbf16>
    %c9 = arith.constant 9 : index
    %c0_51 = arith.constant 0 : index
    %c0_52 = arith.constant 0 : index
    %60 = vector.load %arg2[%c9, %c0_51, %c0_52] : memref<15x4x128xbf16, #tpu.memory_space<vmem>>, vector<1x4x128xbf16>
    %61 = vector.shape_cast %60 : vector<1x4x128xbf16> to vector<4x128xbf16>
    %cst_53 = arith.constant dense<0.000000e+00> : vector<288x128xf32>
    %62 = tpu.matmul %59, %61, %cst_53 {dimension_numbers = #tpu.dot_dimension_numbers<[1], [0], [0], [1], [0, 0, 1, 1], [], []>} : vector<288x4xbf16>, vector<4x128xbf16>, vector<288x128xf32> -> vector<288x128xf32>
    %63 = arith.addf %57, %62 : vector<288x128xf32>
    %c0_54 = arith.constant 0 : index
    %c55 = arith.constant 55 : index
    %c0_55 = arith.constant 0 : index
    %64 = vector.load %arg1[%c0_54, %c55, %c0_55] : memref<1x362x4xbf16, #tpu.memory_space<vmem>>, vector<1x288x4xbf16>
    %65 = vector.shape_cast %64 : vector<1x288x4xbf16> to vector<288x4xbf16>
    %c10 = arith.constant 10 : index
    %c0_56 = arith.constant 0 : index
    %c0_57 = arith.constant 0 : index
    %66 = vector.load %arg2[%c10, %c0_56, %c0_57] : memref<15x4x128xbf16, #tpu.memory_space<vmem>>, vector<1x4x128xbf16>
    %67 = vector.shape_cast %66 : vector<1x4x128xbf16> to vector<4x128xbf16>
    %cst_58 = arith.constant dense<0.000000e+00> : vector<288x128xf32>
    %68 = tpu.matmul %65, %67, %cst_58 {dimension_numbers = #tpu.dot_dimension_numbers<[1], [0], [0], [1], [0, 0, 1, 1], [], []>} : vector<288x4xbf16>, vector<4x128xbf16>, vector<288x128xf32> -> vector<288x128xf32>
    %69 = arith.addf %63, %68 : vector<288x128xf32>
    %c0_59 = arith.constant 0 : index
    %c56 = arith.constant 56 : index
    %c0_60 = arith.constant 0 : index
    %70 = vector.load %arg1[%c0_59, %c56, %c0_60] : memref<1x362x4xbf16, #tpu.memory_space<vmem>>, vector<1x288x4xbf16>
    %71 = vector.shape_cast %70 : vector<1x288x4xbf16> to vector<288x4xbf16>
    %c11 = arith.constant 11 : index
    %c0_61 = arith.constant 0 : index
    %c0_62 = arith.constant 0 : index
    %72 = vector.load %arg2[%c11, %c0_61, %c0_62] : memref<15x4x128xbf16, #tpu.memory_space<vmem>>, vector<1x4x128xbf16>
    %73 = vector.shape_cast %72 : vector<1x4x128xbf16> to vector<4x128xbf16>
    %cst_63 = arith.constant dense<0.000000e+00> : vector<288x128xf32>
    %74 = tpu.matmul %71, %73, %cst_63 {dimension_numbers = #tpu.dot_dimension_numbers<[1], [0], [0], [1], [0, 0, 1, 1], [], []>} : vector<288x4xbf16>, vector<4x128xbf16>, vector<288x128xf32> -> vector<288x128xf32>
    %75 = arith.addf %69, %74 : vector<288x128xf32>
    %c0_64 = arith.constant 0 : index
    %c72 = arith.constant 72 : index
    %c0_65 = arith.constant 0 : index
    %76 = vector.load %arg1[%c0_64, %c72, %c0_65] : memref<1x362x4xbf16, #tpu.memory_space<vmem>>, vector<1x288x4xbf16>
    %77 = vector.shape_cast %76 : vector<1x288x4xbf16> to vector<288x4xbf16>
    %c12 = arith.constant 12 : index
    %c0_66 = arith.constant 0 : index
    %c0_67 = arith.constant 0 : index
    %78 = vector.load %arg2[%c12, %c0_66, %c0_67] : memref<15x4x128xbf16, #tpu.memory_space<vmem>>, vector<1x4x128xbf16>
    %79 = vector.shape_cast %78 : vector<1x4x128xbf16> to vector<4x128xbf16>
    %cst_68 = arith.constant dense<0.000000e+00> : vector<288x128xf32>
    %80 = tpu.matmul %77, %79, %cst_68 {dimension_numbers = #tpu.dot_dimension_numbers<[1], [0], [0], [1], [0, 0, 1, 1], [], []>} : vector<288x4xbf16>, vector<4x128xbf16>, vector<288x128xf32> -> vector<288x128xf32>
    %81 = arith.addf %75, %80 : vector<288x128xf32>
    %c0_69 = arith.constant 0 : index
    %c73 = arith.constant 73 : index
    %c0_70 = arith.constant 0 : index
    %82 = vector.load %arg1[%c0_69, %c73, %c0_70] : memref<1x362x4xbf16, #tpu.memory_space<vmem>>, vector<1x288x4xbf16>
    %83 = vector.shape_cast %82 : vector<1x288x4xbf16> to vector<288x4xbf16>
    %c13 = arith.constant 13 : index
    %c0_71 = arith.constant 0 : index
    %c0_72 = arith.constant 0 : index
    %84 = vector.load %arg2[%c13, %c0_71, %c0_72] : memref<15x4x128xbf16, #tpu.memory_space<vmem>>, vector<1x4x128xbf16>
    %85 = vector.shape_cast %84 : vector<1x4x128xbf16> to vector<4x128xbf16>
    %cst_73 = arith.constant dense<0.000000e+00> : vector<288x128xf32>
    %86 = tpu.matmul %83, %85, %cst_73 {dimension_numbers = #tpu.dot_dimension_numbers<[1], [0], [0], [1], [0, 0, 1, 1], [], []>} : vector<288x4xbf16>, vector<4x128xbf16>, vector<288x128xf32> -> vector<288x128xf32>
    %87 = arith.addf %81, %86 : vector<288x128xf32>
    %c0_74 = arith.constant 0 : index
    %c74 = arith.constant 74 : index
    %c0_75 = arith.constant 0 : index
    %88 = vector.load %arg1[%c0_74, %c74, %c0_75] : memref<1x362x4xbf16, #tpu.memory_space<vmem>>, vector<1x288x4xbf16>
    %89 = vector.shape_cast %88 : vector<1x288x4xbf16> to vector<288x4xbf16>
    %c14 = arith.constant 14 : index
    %c0_76 = arith.constant 0 : index
    %c0_77 = arith.constant 0 : index
    %90 = vector.load %arg2[%c14, %c0_76, %c0_77] : memref<15x4x128xbf16, #tpu.memory_space<vmem>>, vector<1x4x128xbf16>
    %91 = vector.shape_cast %90 : vector<1x4x128xbf16> to vector<4x128xbf16>
    %cst_78 = arith.constant dense<0.000000e+00> : vector<288x128xf32>
    %92 = tpu.matmul %89, %91, %cst_78 {dimension_numbers = #tpu.dot_dimension_numbers<[1], [0], [0], [1], [0, 0, 1, 1], [], []>} : vector<288x4xbf16>, vector<4x128xbf16>, vector<288x128xf32> -> vector<288x128xf32>
    %93 = arith.addf %87, %92 : vector<288x128xf32>
    %cst_79 = arith.constant 0.000000e+00 : f32
    %94 = vector.broadcast %cst_79 : f32 to vector<16x128xf32>
    %cst_80 = arith.constant 0.000000e+00 : f32
    %95 = vector.broadcast %cst_80 : f32 to vector<16x128xf32>
    %96 = vector.extract_strided_slice %93 {offsets = [0, 0], sizes = [16, 128], strides = [1, 1]} : vector<288x128xf32> to vector<16x128xf32>
    %97 = arith.addf %94, %96 : vector<16x128xf32>
    %98 = arith.mulf %96, %96 : vector<16x128xf32>
    %99 = arith.addf %95, %98 : vector<16x128xf32>
    %100 = vector.extract_strided_slice %93 {offsets = [18, 0], sizes = [16, 128], strides = [1, 1]} : vector<288x128xf32> to vector<16x128xf32>
    %101 = arith.addf %97, %100 : vector<16x128xf32>
    %102 = arith.mulf %100, %100 : vector<16x128xf32>
    %103 = arith.addf %99, %102 : vector<16x128xf32>
    %104 = vector.extract_strided_slice %93 {offsets = [36, 0], sizes = [16, 128], strides = [1, 1]} : vector<288x128xf32> to vector<16x128xf32>
    %105 = arith.addf %101, %104 : vector<16x128xf32>
    %106 = arith.mulf %104, %104 : vector<16x128xf32>
    %107 = arith.addf %103, %106 : vector<16x128xf32>
    %108 = vector.extract_strided_slice %93 {offsets = [54, 0], sizes = [16, 128], strides = [1, 1]} : vector<288x128xf32> to vector<16x128xf32>
    %109 = arith.addf %105, %108 : vector<16x128xf32>
    %110 = arith.mulf %108, %108 : vector<16x128xf32>
    %111 = arith.addf %107, %110 : vector<16x128xf32>
    %112 = vector.extract_strided_slice %93 {offsets = [72, 0], sizes = [16, 128], strides = [1, 1]} : vector<288x128xf32> to vector<16x128xf32>
    %113 = arith.addf %109, %112 : vector<16x128xf32>
    %114 = arith.mulf %112, %112 : vector<16x128xf32>
    %115 = arith.addf %111, %114 : vector<16x128xf32>
    %116 = vector.extract_strided_slice %93 {offsets = [90, 0], sizes = [16, 128], strides = [1, 1]} : vector<288x128xf32> to vector<16x128xf32>
    %117 = arith.addf %113, %116 : vector<16x128xf32>
    %118 = arith.mulf %116, %116 : vector<16x128xf32>
    %119 = arith.addf %115, %118 : vector<16x128xf32>
    %120 = vector.extract_strided_slice %93 {offsets = [108, 0], sizes = [16, 128], strides = [1, 1]} : vector<288x128xf32> to vector<16x128xf32>
    %121 = arith.addf %117, %120 : vector<16x128xf32>
    %122 = arith.mulf %120, %120 : vector<16x128xf32>
    %123 = arith.addf %119, %122 : vector<16x128xf32>
    %124 = vector.extract_strided_slice %93 {offsets = [126, 0], sizes = [16, 128], strides = [1, 1]} : vector<288x128xf32> to vector<16x128xf32>
    %125 = arith.addf %121, %124 : vector<16x128xf32>
    %126 = arith.mulf %124, %124 : vector<16x128xf32>
    %127 = arith.addf %123, %126 : vector<16x128xf32>
    %128 = vector.extract_strided_slice %93 {offsets = [144, 0], sizes = [16, 128], strides = [1, 1]} : vector<288x128xf32> to vector<16x128xf32>
    %129 = arith.addf %125, %128 : vector<16x128xf32>
    %130 = arith.mulf %128, %128 : vector<16x128xf32>
    %131 = arith.addf %127, %130 : vector<16x128xf32>
    %132 = vector.extract_strided_slice %93 {offsets = [162, 0], sizes = [16, 128], strides = [1, 1]} : vector<288x128xf32> to vector<16x128xf32>
    %133 = arith.addf %129, %132 : vector<16x128xf32>
    %134 = arith.mulf %132, %132 : vector<16x128xf32>
    %135 = arith.addf %131, %134 : vector<16x128xf32>
    %136 = vector.extract_strided_slice %93 {offsets = [180, 0], sizes = [16, 128], strides = [1, 1]} : vector<288x128xf32> to vector<16x128xf32>
    %137 = arith.addf %133, %136 : vector<16x128xf32>
    %138 = arith.mulf %136, %136 : vector<16x128xf32>
    %139 = arith.addf %135, %138 : vector<16x128xf32>
    %140 = vector.extract_strided_slice %93 {offsets = [198, 0], sizes = [16, 128], strides = [1, 1]} : vector<288x128xf32> to vector<16x128xf32>
    %141 = arith.addf %137, %140 : vector<16x128xf32>
    %142 = arith.mulf %140, %140 : vector<16x128xf32>
    %143 = arith.addf %139, %142 : vector<16x128xf32>
    %144 = vector.extract_strided_slice %93 {offsets = [216, 0], sizes = [16, 128], strides = [1, 1]} : vector<288x128xf32> to vector<16x128xf32>
    %145 = arith.addf %141, %144 : vector<16x128xf32>
    %146 = arith.mulf %144, %144 : vector<16x128xf32>
    %147 = arith.addf %143, %146 : vector<16x128xf32>
    %148 = vector.extract_strided_slice %93 {offsets = [234, 0], sizes = [16, 128], strides = [1, 1]} : vector<288x128xf32> to vector<16x128xf32>
    %149 = arith.addf %145, %148 : vector<16x128xf32>
    %150 = arith.mulf %148, %148 : vector<16x128xf32>
    %151 = arith.addf %147, %150 : vector<16x128xf32>
    %152 = vector.extract_strided_slice %93 {offsets = [252, 0], sizes = [16, 128], strides = [1, 1]} : vector<288x128xf32> to vector<16x128xf32>
    %153 = arith.addf %149, %152 : vector<16x128xf32>
    %154 = arith.mulf %152, %152 : vector<16x128xf32>
    %155 = arith.addf %151, %154 : vector<16x128xf32>
    %156 = vector.extract_strided_slice %93 {offsets = [270, 0], sizes = [16, 128], strides = [1, 1]} : vector<288x128xf32> to vector<16x128xf32>
    %157 = arith.addf %153, %156 : vector<16x128xf32>
    %158 = arith.mulf %156, %156 : vector<16x128xf32>
    %159 = arith.addf %155, %158 : vector<16x128xf32>
    %c0_81 = arith.constant 0 : index
    %c0_82 = arith.constant 0 : index
    %160 = vector.load %arg3[%c0_81, %c0_82] : memref<1x128xf32, #tpu.memory_space<vmem>>, vector<1x128xf32>
    %cst_83 = arith.constant dense<0.000000e+00> : vector<128xf32>
    %161 = vector.multi_reduction <add>, %157, %cst_83 [0] : vector<16x128xf32> to vector<128xf32>
    %162 = vector.shape_cast %161 : vector<128xf32> to vector<1x128xf32>
    %163 = arith.addf %160, %162 : vector<1x128xf32>
    %c0_84 = arith.constant 0 : index
    %c0_85 = arith.constant 0 : index
    %164 = vector.load %arg3[%c0_84, %c0_85] : memref<1x128xf32, #tpu.memory_space<vmem>>, vector<1x128xf32>
    tpu.vector_store %arg3[%c0_84, %c0_85], %163 {strides = array<i32>} : memref<1x128xf32, #tpu.memory_space<vmem>>, vector<1x128xf32>,
    %c0_86 = arith.constant 0 : index
    %c0_87 = arith.constant 0 : index
    %165 = vector.load %arg4[%c0_86, %c0_87] : memref<1x128xf32, #tpu.memory_space<vmem>>, vector<1x128xf32>
    %cst_88 = arith.constant dense<0.000000e+00> : vector<128xf32>
    %166 = vector.multi_reduction <add>, %159, %cst_88 [0] : vector<16x128xf32> to vector<128xf32>
    %167 = vector.shape_cast %166 : vector<128xf32> to vector<1x128xf32>
    %168 = arith.addf %165, %167 : vector<1x128xf32>
    %c0_89 = arith.constant 0 : index
    %c0_90 = arith.constant 0 : index
    %169 = vector.load %arg4[%c0_89, %c0_90] : memref<1x128xf32, #tpu.memory_space<vmem>>, vector<1x128xf32>
    tpu.vector_store %arg4[%c0_89, %c0_90], %168 {strides = array<i32>} : memref<1x128xf32, #tpu.memory_space<vmem>>, vector<1x128xf32>,
    return
  }
  func.func @transform_0(%arg0: i32) -> (i32, i32, i32) {
    %c0_i32 = arith.constant 0 : i32
    %c0_i32_0 = arith.constant 0 : i32
    %c0_i32_1 = arith.constant 0 : i32
    return %arg0, %c0_i32, %c0_i32_0 : i32, i32, i32
  }
  func.func @transform_1(%arg0: i32) -> (i32, i32, i32) {
    %c0_i32 = arith.constant 0 : i32
    %c0_i32_0 = arith.constant 0 : i32
    %c0_i32_1 = arith.constant 0 : i32
    %c0_i32_2 = arith.constant 0 : i32
    return %c0_i32, %c0_i32_0, %c0_i32_1 : i32, i32, i32
  }
  func.func @transform_2(%arg0: i32) -> (i32, i32) {
    %c0_i32 = arith.constant 0 : i32
    %c0_i32_0 = arith.constant 0 : i32
    %c0_i32_1 = arith.constant 0 : i32
    return %c0_i32, %c0_i32_0 : i32, i32
  }
  func.func @transform_3(%arg0: i32) -> (i32, i32) {
    %c0_i32 = arith.constant 0 : i32
    %c0_i32_0 = arith.constant 0 : i32
    %c0_i32_1 = arith.constant 0 : i32
    return %c0_i32, %c0_i32_0 : i32, i32
  }
}

</mosaic_0001>

<llo_original>
// kernel: tpu_custom_call.1
$region0: #{tpu_custom_call.1}
  #allocation0 [shape = 'u32[]', space=smem, size = 0x4, offset = 0x4, fixed_abs, tag = 'smem constant byte address 0x4 - core index']
  #allocation1 [shape = 'u32[72,128]{1,0:T(1,128)}', space=vmem, size = 0x9000, scoped, tag = 'internal scratch']
  %s0 = inlined_call_operand.vmem [shape: bf16[2,362,4], index: 0, kind: input, shape index: {}]
  %s1 = inlined_call_operand.vmem [shape: bf16[15,4,128], index: 1, kind: input, shape index: {}]
  %s2 = inlined_call_operand.hbm [shape: f32[1,128], index: 2, kind: output, shape index: {0}]
  %s3 = inlined_call_operand.hbm [shape: f32[1,128], index: 3, kind: output, shape index: {1}]
  %4 = xla_tuple %s2, %s3
  %s5 = sld [smem:[#allocation0]]
  $region53: #{tpu_custom_call.1} parent=0
    _
  %s7 = ssub.s32 1, %s5
  %s8 = scalar_select 0, %s7, %s5
  $region1: #{tpu_custom_call.1} parent=0
    #allocation2 [shape = 'u8[512]{0}', space=vmem, size = 0x400, scoped, tag = 'output window, operand 0, single buffered']
    #allocation3 [shape = 's32[2]{0}', space=sflag, size = 0x8, scoped, tag = 'scoped memory for tpu_custom_call.1']
    #allocation4 [shape = 'u8[512]{0}', space=vmem, size = 0x400, scoped, tag = 'output window, operand 1, single buffered']
    #allocation5 [shape = 's32[1]{0}', space=sflag, size = 0x4, scoped, tag = 'scoped memory for tpu_custom_call.1']
    %9 = vsyncpa [#allocation3], 0
    %10 = vsyncpa [#allocation5], 0
    loop: start=0, step=1, limit=4
    $region2: #{tpu_custom_call.1} parent=1 // loop_pre_header
      _
    $region3: #{tpu_custom_call.1} parent=1 // loop_header
      %s12 = sphi 0, %s16
      %p13 = scmp.ge.s32.totalorder %s12, 4
      %s22 = sphi 0, %s24
      %s25 = sphi 0, %s22
      %s26 = sphi 0, %s25
      %s42 = sphi 0, %s26
      %s46 = sphi 0, %s46
      %s48 = sphi 0, %s46
      %s49 = sphi 0, %s48
      %s63 = sphi 0, %s49
      %s67 = sphi 0, %s67
      %s69 = sphi 0, %s67
      %s70 = sphi 0, %s69
      %s84 = sphi 0, %s70
      %s88 = sphi 0, %s88
      %s90 = sphi 0, %s88
      %s91 = sphi 0, %s90
      %s105 = sphi 0, %s91
    $region4: #{tpu_custom_call.1} parent=1 // loop_header_branch
      %15 = sbr.rel (%p13) target = $region8
    $region5: #{tpu_custom_call.1} parent=1 // loop_body
      %s17 = ssub.s32 %s12, 1
      %s18 = ssub.s32 %s12, 2
      %s19 = sadd.s32 %s12, 1
      %s20 = ssub.s32 %s12, %s19
      %p21 = scmp.eq.s32.totalorder %s20, 0
      %s23 = sadd.s32 %s22, 1
      %s24 = scalar_select %p21, %s22, %s23
      %p27 = pneg %p21
      %p28 = scmp.eq.s32.totalorder %s12, 1
      %p29 = por %p27, %p28
      %p30 = scmp.ne.s32.totalorder %s22, %s25
      %p31 = scmp.eq.s32.totalorder %s12, 0
      %p32 = por %p30, %p31
      %p33 = scmp.ne.s32.totalorder %s22, %s25
      %p34 = scmp.eq.s32.totalorder %s17, 1
      %p35 = por %p33, %p34
      %p36 = scmp.ne.s32.totalorder %s25, %s26
      %p37 = scmp.eq.s32.totalorder %s17, 0
      %p38 = por %p36, %p37
      %p39 = scmp.ne.s32.totalorder %s25, %s26
      %p40 = scmp.eq.s32.totalorder %s18, 1
      %p41 = por %p39, %p40
      %p43 = scmp.ne.s32.totalorder %s26, %s42
      %p44 = scmp.eq.s32.totalorder %s18, 0
      %p45 = por %p43, %p44
      %s47 = sadd.s32 %s46, 1
      %p50 = scmp.eq.s32.totalorder %s12, 1
      %p51 = scmp.ne.s32.totalorder %s46, %s48
      %p52 = scmp.eq.s32.totalorder %s12, 0
      %p53 = por %p51, %p52
      %p54 = scmp.ne.s32.totalorder %s46, %s48
      %p55 = scmp.eq.s32.totalorder %s17, 1
      %p56 = por %p54, %p55
      %p57 = scmp.ne.s32.totalorder %s48, %s49
      %p58 = scmp.eq.s32.totalorder %s17, 0
      %p59 = por %p57, %p58
      %p60 = scmp.ne.s32.totalorder %s48, %s49
      %p61 = scmp.eq.s32.totalorder %s18, 1
      %p62 = por %p60, %p61
      %p64 = scmp.ne.s32.totalorder %s49, %s63
      %p65 = scmp.eq.s32.totalorder %s18, 0
      %p66 = por %p64, %p65
      %s68 = sadd.s32 %s67, 1
      %p71 = scmp.eq.s32.totalorder %s12, 1
      %p72 = scmp.ne.s32.totalorder %s67, %s69
      %p73 = scmp.eq.s32.totalorder %s12, 0
      %p74 = por %p72, %p73
      %p75 = scmp.ne.s32.totalorder %s67, %s69
      %p76 = scmp.eq.s32.totalorder %s17, 1
      %p77 = por %p75, %p76
      %p78 = scmp.ne.s32.totalorder %s69, %s70
      %p79 = scmp.eq.s32.totalorder %s17, 0
      %p80 = por %p78, %p79
      %p81 = scmp.ne.s32.totalorder %s69, %s70
      %p82 = scmp.eq.s32.totalorder %s18, 1
      %p83 = por %p81, %p82
      %p85 = scmp.ne.s32.totalorder %s70, %s84
      %p86 = scmp.eq.s32.totalorder %s18, 0
      %p87 = por %p85, %p86
      %s89 = sadd.s32 %s88, 1
      %p92 = scmp.eq.s32.totalorder %s12, 1
      %p93 = scmp.ne.s32.totalorder %s88, %s90
      %p94 = scmp.eq.s32.totalorder %s12, 0
      %p95 = por %p93, %p94
      %p96 = scmp.ne.s32.totalorder %s88, %s90
      %p97 = scmp.eq.s32.totalorder %s17, 1
      %p98 = por %p96, %p97
      %p99 = scmp.ne.s32.totalorder %s90, %s91
      %p100 = scmp.eq.s32.totalorder %s17, 0
      %p101 = por %p99, %p100
      %p102 = scmp.ne.s32.totalorder %s90, %s91
      %p103 = scmp.eq.s32.totalorder %s18, 1
      %p104 = por %p102, %p103
      %p106 = scmp.ne.s32.totalorder %s91, %s105
      %p107 = scmp.eq.s32.totalorder %s18, 0
      %p108 = por %p106, %p107
      %p109 = scmp.le.s32.totalorder 1, %s12
      %p110 = scmp.lt.s32.totalorder %s12, 3
      %p111 = pnand %p109, %p110
      %p112 = pneg %p111
      // Predicated region
      $region9: #{tpu_custom_call.1} parent=5 // pred_check
        _
      $region10: #{tpu_custom_call.1} parent=5 // pred_check_branch
        %114 = sbr.rel (%p111) target = $region12
      $region11: #{tpu_custom_call.1} parent=5 // pred_region
        %s115 = ssub.s32 %s12, 1
        // Predicated region
        $region13: #{tpu_custom_call.1} parent=11 // pred_check
          %p116 = pneg %p59
        $region14: #{tpu_custom_call.1} parent=11 // pred_check_branch
          %118 = sbr.rel (%p116) target = $region16
        $region15: #{tpu_custom_call.1} parent=11 // pred_region
          _
        $region16: #{tpu_custom_call.1} parent=11 // pred_fallthru
          _
      $region12: #{tpu_custom_call.1} parent=5 // pred_fallthru
        _
      %p119 = scmp.lt.s32.totalorder %s12, 2
      // Predicated region
      $region17: #{tpu_custom_call.1} parent=5 // pred_check
        %p120 = pneg %p119
      $region18: #{tpu_custom_call.1} parent=5 // pred_check_branch
        %122 = sbr.rel (%p120) target = $region20
      $region19: #{tpu_custom_call.1} parent=5 // pred_region
        // Predicated region
        $region21: #{tpu_custom_call.1} parent=19 // pred_check
          %p123 = pneg %p32
        $region22: #{tpu_custom_call.1} parent=19 // pred_check_branch
          %125 = sbr.rel (%p123) target = $region24
        $region23: #{tpu_custom_call.1} parent=19 // pred_region
          %p126 = scmp.lt.s32.totalorder %s12, 1
          %s127 = scalar_select %p126, %s12, 1
          %s128 = smul.addr %s127, 46
          %s129 = smul.addr %s128, 4
          %s130 = scalar_lea.vmem %s0, %s129
        $region24: #{tpu_custom_call.1} parent=19 // pred_fallthru
          _
      $region20: #{tpu_custom_call.1} parent=5 // pred_fallthru
        _
      %p131 = scmp.le.s32.totalorder 1, %s12
      %p132 = scmp.lt.s32.totalorder %s12, 3
      %p133 = pnand %p131, %p132
      %p134 = pneg %p133
      // Predicated region
      $region25: #{tpu_custom_call.1} parent=5 // pred_check
        _
      $region26: #{tpu_custom_call.1} parent=5 // pred_check_branch
        %136 = sbr.rel (%p133) target = $region28
      $region27: #{tpu_custom_call.1} parent=5 // pred_region
        %s137 = ssub.s32 %s12, 1
        %p138 = scmp.lt.s32.totalorder %s17, 1
        %s139 = scalar_select %p138, %s17, 1
        %s140 = smul.addr %s139, 46
        %s141 = smul.addr %s140, 4
        %s142 = scalar_lea.vmem %s0, %s141
        %p143 = pneg %p38
        %p144 = pneg %p35
        %p145 = pneg %p59
        %p146 = pneg %p56
        %p147 = pneg %p80
        %p148 = pneg %p77
        %p149 = pneg %p101
        %p150 = pneg %p98
        %p151 = scmp.lt.s32.totalorder %s17, 1
        %s152 = scalar_select %p151, %s17, 1
        %s153 = smul.addr %s152, 46
        %s154 = smul.addr %s153, 4
        %s155 = scalar_lea.vmem %s0, %s154
        %p157 = scmp.eq.s32.totalorder %s17, 0
        // Predicated region
        $region29: #{tpu_custom_call.1} parent=27 // pred_check
          %p158 = pneg %p157
        $region30: #{tpu_custom_call.1} parent=27 // pred_check_branch
          %160 = sbr.rel (%p158) target = $region32
        $region31: #{tpu_custom_call.1} parent=27 // pred_region
          %161 = vst [vmem:[#allocation2] sm:$0x1] 0.0
          %162 = vst [vmem:[#allocation4] sm:$0x1] 0.0
        $region32: #{tpu_custom_call.1} parent=27 // pred_fallthru
          _
        %v163 = vld [vmem:[%s155] sm:$0xf]
        %v164 = vld [vmem:[%s155 + $0x4] sm:$0xf]
        %v165 = vld [vmem:[%s155 + $0x8] sm:$0xf]
        %v166 = vld [vmem:[%s155 + $0xc] sm:$0xf]
        %v167 = vld [vmem:[%s155 + $0x10] sm:$0xf]
        %v168 = vld [vmem:[%s155 + $0x14] sm:$0xf]
        %v169 = vld [vmem:[%s155 + $0x18] sm:$0xf]
        %v170 = vld [vmem:[%s155 + $0x1c] sm:$0xf]
        %v171 = vld [vmem:[%s155 + $0x20] sm:$0xf]
        %v172 = vld [vmem:[%s155 + $0x24] sm:$0xf]
        %v173 = vld [vmem:[%s155 + $0x28] sm:$0xf]
        %v174 = vld [vmem:[%s155 + $0x2c] sm:$0xf]
        %v175 = vld [vmem:[%s155 + $0x30] sm:$0xf]
        %v176 = vld [vmem:[%s155 + $0x34] sm:$0xf]
        %v177 = vld [vmem:[%s155 + $0x38] sm:$0xf]
        %v178 = vld [vmem:[%s155 + $0x3c] sm:$0xf]
        %v179 = vld [vmem:[%s155 + $0x40] sm:$0xf]
        %v180 = vld [vmem:[%s155 + $0x44] sm:$0xf]
        %v181 = vld [vmem:[%s155 + $0x48] sm:$0xf]
        %v182 = vld [vmem:[%s155 + $0x4c] sm:$0xf]
        %v183 = vld [vmem:[%s155 + $0x50] sm:$0xf]
        %v184 = vld [vmem:[%s155 + $0x54] sm:$0xf]
        %v185 = vld [vmem:[%s155 + $0x58] sm:$0xf]
        %v186 = vld [vmem:[%s155 + $0x5c] sm:$0xf]
        %v187 = vld [vmem:[%s155 + $0x60] sm:$0xf]
        %v188 = vld [vmem:[%s155 + $0x64] sm:$0xf]
        %v189 = vld [vmem:[%s155 + $0x68] sm:$0xf]
        %v190 = vld [vmem:[%s155 + $0x6c] sm:$0xf]
        %v191 = vld [vmem:[%s155 + $0x70] sm:$0xf]
        %v192 = vld [vmem:[%s155 + $0x74] sm:$0xf]
        %v193 = vld [vmem:[%s155 + $0x78] sm:$0xf]
        %v194 = vld [vmem:[%s155 + $0x7c] sm:$0xf]
        %v195 = vld [vmem:[%s155 + $0x80] sm:$0xf]
        %v196 = vld [vmem:[%s155 + $0x84] sm:$0xf]
        %v197 = vld [vmem:[%s155 + $0x88] sm:$0xf]
        %v198 = vld [vmem:[%s155 + $0x8c] sm:$0xf]
        %v199 = vld [vmem:[%s1] sm:$0x3]
        %v200 = vld [vmem:[%s155 + $0x90] sm:$0x1]
        %s201 = scalar_lea.vmem %s1, 2
        %v202 = vld [vmem:[%s201] sm:$0x3]
        %v240 = vunpack.c.l.b16 %v163
        %v241 = vunpack.c.l.b16 %v164
        %v242 = vunpack.c.l.b16 %v165
        %v243 = vunpack.c.l.b16 %v166
        %v244 = vunpack.c.l.b16 %v167
        %v245 = vunpack.c.l.b16 %v168
        %v246 = vunpack.c.l.b16 %v169
        %v247 = vunpack.c.l.b16 %v170
        %v248 = vunpack.c.l.b16 %v171
        %v249 = vunpack.c.l.b16 %v172
        %v250 = vunpack.c.l.b16 %v173
        %v251 = vunpack.c.l.b16 %v174
        %v252 = vunpack.c.l.b16 %v175
        %v253 = vunpack.c.l.b16 %v176
        %v254 = vunpack.c.l.b16 %v177
        %v255 = vunpack.c.l.b16 %v178
        %v256 = vunpack.c.l.b16 %v179
        %v257 = vunpack.c.l.b16 %v180
        %v258 = vunpack.c.l.b16 %v181
        %v259 = vunpack.c.l.b16 %v182
        %v260 = vunpack.c.l.b16 %v183
        %v261 = vunpack.c.l.b16 %v184
        %v262 = vunpack.c.l.b16 %v185
        %v263 = vunpack.c.l.b16 %v186
        %v264 = vunpack.c.l.b16 %v187
        %v265 = vunpack.c.l.b16 %v188
        %v266 = vunpack.c.l.b16 %v189
        %v267 = vunpack.c.l.b16 %v190
        %v268 = vunpack.c.l.b16 %v191
        %v269 = vunpack.c.l.b16 %v192
        %v270 = vunpack.c.l.b16 %v193
        %v271 = vunpack.c.l.b16 %v194
        %v272 = vunpack.c.l.b16 %v195
        %v273 = vunpack.c.l.b16 %v196
        %v274 = vunpack.c.l.b16 %v197
        %v275 = vunpack.c.l.b16 %v198
        %v276 = vunpack.c.l.b16 %v200
        %v277 = vpack.c.b16 %v241, %v240
        %v278 = vpack.c.b16 %v243, %v242
        %v279 = vpack.c.b16 %v245, %v244
        %v280 = vpack.c.b16 %v247, %v246
        %v281 = vpack.c.b16 %v249, %v248
        %v282 = vpack.c.b16 %v251, %v250
        %v283 = vpack.c.b16 %v253, %v252
        %v284 = vpack.c.b16 %v255, %v254
        %v285 = vpack.c.b16 %v257, %v256
        %v286 = vpack.c.b16 %v259, %v258
        %v287 = vpack.c.b16 %v261, %v260
        %v288 = vpack.c.b16 %v263, %v262
        %v289 = vpack.c.b16 %v265, %v264
        %v290 = vpack.c.b16 %v267, %v266
        %v291 = vpack.c.b16 %v269, %v268
        %v292 = vpack.c.b16 %v271, %v270
        %v293 = vpack.c.b16 %v273, %v272
        %v294 = vpack.c.b16 %v275, %v274
        %v295 = vpack.c.b16 %v276, %v276
        %vm296 = vsmask.f32 7424
        %v298 = vshrl.u32 %v277, 16
        %v300 = vshll.u32 %v277, 16
        %v302 = vrot.slane %v300, 1
        %v303 = vor.u32 %v298, %v302
        %v305 = vshll.u32 %v278, 16
        %v307 = vrot.slane %v305, 1
        %v308 = vsel %vm296, %v303, %v307
        %v309 = vshrl.u32 %v278, 16
        %v311 = vor.u32 %v309, %v307
        %v313 = vshll.u32 %v279, 16
        %v315 = vrot.slane %v313, 1
        %v316 = vsel %vm296, %v311, %v315
        %v317 = vshrl.u32 %v279, 16
        %v319 = vor.u32 %v317, %v315
        %v321 = vshll.u32 %v280, 16
        %v323 = vrot.slane %v321, 1
        %v324 = vsel %vm296, %v319, %v323
        %v325 = vshrl.u32 %v280, 16
        %v327 = vor.u32 %v325, %v323
        %v329 = vshll.u32 %v281, 16
        %v331 = vrot.slane %v329, 1
        %v332 = vsel %vm296, %v327, %v331
        %v333 = vshrl.u32 %v281, 16
        %v335 = vor.u32 %v333, %v331
        %v337 = vshll.u32 %v282, 16
        %v339 = vrot.slane %v337, 1
        %v340 = vsel %vm296, %v335, %v339
        %v341 = vshrl.u32 %v282, 16
        %v343 = vor.u32 %v341, %v339
        %v345 = vshll.u32 %v283, 16
        %v347 = vrot.slane %v345, 1
        %v348 = vsel %vm296, %v343, %v347
        %v349 = vshrl.u32 %v283, 16
        %v351 = vor.u32 %v349, %v347
        %v353 = vshll.u32 %v284, 16
        %v355 = vrot.slane %v353, 1
        %v356 = vsel %vm296, %v351, %v355
        %v357 = vshrl.u32 %v284, 16
        %v359 = vor.u32 %v357, %v355
        %v361 = vshll.u32 %v285, 16
        %v363 = vrot.slane %v361, 1
        %v364 = vsel %vm296, %v359, %v363
        %v365 = vshrl.u32 %v285, 16
        %v367 = vor.u32 %v365, %v363
        %v369 = vshll.u32 %v286, 16
        %v371 = vrot.slane %v369, 1
        %v372 = vsel %vm296, %v367, %v371
        %v373 = vshrl.u32 %v286, 16
        %v375 = vor.u32 %v373, %v371
        %v377 = vshll.u32 %v287, 16
        %v379 = vrot.slane %v377, 1
        %v380 = vsel %vm296, %v375, %v379
        %v381 = vshrl.u32 %v287, 16
        %v383 = vor.u32 %v381, %v379
        %v385 = vshll.u32 %v288, 16
        %v387 = vrot.slane %v385, 1
        %v388 = vsel %vm296, %v383, %v387
        %v389 = vshrl.u32 %v288, 16
        %v391 = vor.u32 %v389, %v387
        %v393 = vshll.u32 %v289, 16
        %v395 = vrot.slane %v393, 1
        %v396 = vsel %vm296, %v391, %v395
        %v397 = vshrl.u32 %v289, 16
        %v399 = vor.u32 %v397, %v395
        %v401 = vshll.u32 %v290, 16
        %v403 = vrot.slane %v401, 1
        %v404 = vsel %vm296, %v399, %v403
        %v405 = vshrl.u32 %v290, 16
        %v407 = vor.u32 %v405, %v403
        %v409 = vshll.u32 %v291, 16
        %v411 = vrot.slane %v409, 1
        %v412 = vsel %vm296, %v407, %v411
        %v413 = vshrl.u32 %v291, 16
        %v415 = vor.u32 %v413, %v411
        %v417 = vshll.u32 %v292, 16
        %v419 = vrot.slane %v417, 1
        %v420 = vsel %vm296, %v415, %v419
        %v421 = vshrl.u32 %v292, 16
        %v423 = vor.u32 %v421, %v419
        %v425 = vshll.u32 %v293, 16
        %v427 = vrot.slane %v425, 1
        %v428 = vsel %vm296, %v423, %v427
        %v429 = vshrl.u32 %v293, 16
        %v431 = vor.u32 %v429, %v427
        %v433 = vshll.u32 %v294, 16
        %v435 = vrot.slane %v433, 1
        %v436 = vsel %vm296, %v431, %v435
        %v437 = vshrl.u32 %v294, 16
        %v439 = vor.u32 %v437, %v435
        %v441 = vshll.u32 %v295, 16
        %v443 = vrot.slane %v441, 1
        %v444 = vsel %vm296, %v439, %v443
        %vm445 = vcmask 31744
        %v447 = vsel %vm445, %v308, 0
        %v450 = vsel %vm445, %v316, 0
        %v453 = vsel %vm445, %v324, 0
        %v456 = vsel %vm445, %v332, 0
        %v459 = vsel %vm445, %v340, 0
        %v462 = vsel %vm445, %v348, 0
        %v465 = vsel %vm445, %v356, 0
        %v468 = vsel %vm445, %v364, 0
        %v471 = vsel %vm445, %v372, 0
        %v474 = vsel %vm445, %v380, 0
        %v477 = vsel %vm445, %v388, 0
        %v480 = vsel %vm445, %v396, 0
        %v483 = vsel %vm445, %v404, 0
        %v486 = vsel %vm445, %v412, 0
        %v489 = vsel %vm445, %v420, 0
        %v492 = vsel %vm445, %v428, 0
        %v495 = vsel %vm445, %v436, 0
        %v498 = vsel %vm445, %v444, 0
        %vm500 = vcmask 1041408
        %v502 = vsel %vm500, %v202, 0
        %504 = vmatpush.bf16.msra.mxu0 0
        %505 = vmatpush.bf16.msra.mxu0 0
        %506 = vmatpush.bf16.msra.mxu0 0
        %507 = vmatpush.bf16.msra.mxu0 0
        %508 = vmatpush.bf16.msra.mxu0 0
        %509 = vmatpush.bf16.msra.mxu0 0
        %510 = vmatpush.bf16.msra.mxu0 0
        %511 = vmatpush.bf16.msra.mxu0 %v502
        %512 = vmatmul.bf16.gmra.mxu0 %v447
        %v513 = vpop.f32.mrf.mxu0
        %v514 = vadd.f32 0.0, %v513
        %v515 = vpop.f32.mrf.mxu0
        %v516 = vadd.f32 0.0, %v515
        %517 = vmatmul.bf16.gmra.mxu0 %v450
        %v518 = vpop.f32.mrf.mxu0
        %v519 = vadd.f32 0.0, %v518
        %v520 = vpop.f32.mrf.mxu0
        %v521 = vadd.f32 0.0, %v520
        %522 = vmatmul.bf16.gmra.mxu0 %v453
        %v523 = vpop.f32.mrf.mxu0
        %v524 = vadd.f32 0.0, %v523
        %v525 = vpop.f32.mrf.mxu0
        %v526 = vadd.f32 0.0, %v525
        %527 = vmatmul.bf16.gmra.mxu0 %v456
        %v528 = vpop.f32.mrf.mxu0
        %v529 = vadd.f32 0.0, %v528
        %v530 = vpop.f32.mrf.mxu0
        %v531 = vadd.f32 0.0, %v530
        %532 = vmatmul.bf16.gmra.mxu0 %v459
        %v533 = vpop.f32.mrf.mxu0
        %v534 = vadd.f32 0.0, %v533
        %v535 = vpop.f32.mrf.mxu0
        %v536 = vadd.f32 0.0, %v535
        %537 = vmatmul.bf16.gmra.mxu0 %v462
        %v538 = vpop.f32.mrf.mxu0
        %v539 = vadd.f32 0.0, %v538
        %v540 = vpop.f32.mrf.mxu0
        %v541 = vadd.f32 0.0, %v540
        %542 = vmatmul.bf16.gmra.mxu0 %v465
        %v543 = vpop.f32.mrf.mxu0
        %v544 = vadd.f32 0.0, %v543
        %v545 = vpop.f32.mrf.mxu0
        %v546 = vadd.f32 0.0, %v545
        %547 = vmatmul.bf16.gmra.mxu0 %v468
        %v548 = vpop.f32.mrf.mxu0
        %v549 = vadd.f32 0.0, %v548
        %v550 = vpop.f32.mrf.mxu0
        %v551 = vadd.f32 0.0, %v550
        %552 = vmatmul.bf16.gmra.mxu0 %v471
        %v553 = vpop.f32.mrf.mxu0
        %v554 = vadd.f32 0.0, %v553
        %v555 = vpop.f32.mrf.mxu0
        %v556 = vadd.f32 0.0, %v555
        %557 = vmatmul.bf16.gmra.mxu0 %v474
        %v558 = vpop.f32.mrf.mxu0
        %v559 = vadd.f32 0.0, %v558
        %v560 = vpop.f32.mrf.mxu0
        %v561 = vadd.f32 0.0, %v560
        %562 = vmatmul.bf16.gmra.mxu0 %v477
        %v563 = vpop.f32.mrf.mxu0
        %v564 = vadd.f32 0.0, %v563
        %v565 = vpop.f32.mrf.mxu0
        %v566 = vadd.f32 0.0, %v565
        %567 = vmatmul.bf16.gmra.mxu0 %v480
        %v568 = vpop.f32.mrf.mxu0
        %v569 = vadd.f32 0.0, %v568
        %v570 = vpop.f32.mrf.mxu0
        %v571 = vadd.f32 0.0, %v570
        %572 = vmatmul.bf16.gmra.mxu0 %v483
        %v573 = vpop.f32.mrf.mxu0
        %v574 = vadd.f32 0.0, %v573
        %v575 = vpop.f32.mrf.mxu0
        %v576 = vadd.f32 0.0, %v575
        %577 = vmatmul.bf16.gmra.mxu0 %v486
        %v578 = vpop.f32.mrf.mxu0
        %v579 = vadd.f32 0.0, %v578
        %v580 = vpop.f32.mrf.mxu0
        %v581 = vadd.f32 0.0, %v580
        %582 = vmatmul.bf16.gmra.mxu0 %v489
        %v583 = vpop.f32.mrf.mxu0
        %v584 = vadd.f32 0.0, %v583
        %v585 = vpop.f32.mrf.mxu0
        %v586 = vadd.f32 0.0, %v585
        %587 = vmatmul.bf16.gmra.mxu0 %v492
        %v588 = vpop.f32.mrf.mxu0
        %v589 = vadd.f32 0.0, %v588
        %v590 = vpop.f32.mrf.mxu0
        %v591 = vadd.f32 0.0, %v590
        %592 = vmatmul.bf16.gmra.mxu0 %v495
        %v593 = vpop.f32.mrf.mxu0
        %v594 = vadd.f32 0.0, %v593
        %v595 = vpop.f32.mrf.mxu0
        %v596 = vadd.f32 0.0, %v595
        %597 = vmatmul.bf16.gmra.mxu0 %v498
        %v598 = vpop.f32.mrf.mxu0
        %v599 = vadd.f32 0.0, %v598
        %v600 = vpop.f32.mrf.mxu0
        %v601 = vadd.f32 0.0, %v600
        %602 = vdwg.mxu0
        %v603 = vsel %vm445, %v277, 0
        %v605 = vsel %vm445, %v278, 0
        %v607 = vsel %vm445, %v279, 0
        %v609 = vsel %vm445, %v280, 0
        %v611 = vsel %vm445, %v281, 0
        %v613 = vsel %vm445, %v282, 0
        %v615 = vsel %vm445, %v283, 0
        %v617 = vsel %vm445, %v284, 0
        %v619 = vsel %vm445, %v285, 0
        %v621 = vsel %vm445, %v286, 0
        %v623 = vsel %vm445, %v287, 0
        %v625 = vsel %vm445, %v288, 0
        %v627 = vsel %vm445, %v289, 0
        %v629 = vsel %vm445, %v290, 0
        %v631 = vsel %vm445, %v291, 0
        %v633 = vsel %vm445, %v292, 0
        %v635 = vsel %vm445, %v293, 0
        %v637 = vsel %vm445, %v294, 0
        %v640 = vsel %vm500, %v199, 0
        %642 = vmatpush.bf16.msra.mxu0 0
        %643 = vmatpush.bf16.msra.mxu0 0
        %644 = vmatpush.bf16.msra.mxu0 0
        %645 = vmatpush.bf16.msra.mxu0 0
        %646 = vmatpush.bf16.msra.mxu0 0
        %647 = vmatpush.bf16.msra.mxu0 0
        %648 = vmatpush.bf16.msra.mxu0 0
        %649 = vmatpush.bf16.msra.mxu0 %v640
        %650 = vmatmul.bf16.gmra.mxu0 %v603
        %v651 = vpop.f32.mrf.mxu0
        %v652 = vadd.f32 %v514, %v651
        %v653 = vpop.f32.mrf.mxu0
        %v654 = vadd.f32 %v516, %v653
        %655 = vmatmul.bf16.gmra.mxu0 %v605
        %v656 = vpop.f32.mrf.mxu0
        %v657 = vadd.f32 %v519, %v656
        %v658 = vpop.f32.mrf.mxu0
        %v659 = vadd.f32 %v521, %v658
        %660 = vmatmul.bf16.gmra.mxu0 %v607
        %v661 = vpop.f32.mrf.mxu0
        %v662 = vadd.f32 %v524, %v661
        %v663 = vpop.f32.mrf.mxu0
        %v664 = vadd.f32 %v526, %v663
        %665 = vmatmul.bf16.gmra.mxu0 %v609
        %v666 = vpop.f32.mrf.mxu0
        %v667 = vadd.f32 %v529, %v666
        %v668 = vpop.f32.mrf.mxu0
        %v669 = vadd.f32 %v531, %v668
        %670 = vmatmul.bf16.gmra.mxu0 %v611
        %v671 = vpop.f32.mrf.mxu0
        %v672 = vadd.f32 %v534, %v671
        %v673 = vpop.f32.mrf.mxu0
        %v674 = vadd.f32 %v536, %v673
        %675 = vmatmul.bf16.gmra.mxu0 %v613
        %v676 = vpop.f32.mrf.mxu0
        %v677 = vadd.f32 %v539, %v676
        %v678 = vpop.f32.mrf.mxu0
        %v679 = vadd.f32 %v541, %v678
        %680 = vmatmul.bf16.gmra.mxu0 %v615
        %v681 = vpop.f32.mrf.mxu0
        %v682 = vadd.f32 %v544, %v681
        %v683 = vpop.f32.mrf.mxu0
        %v684 = vadd.f32 %v546, %v683
        %685 = vmatmul.bf16.gmra.mxu0 %v617
        %v686 = vpop.f32.mrf.mxu0
        %v687 = vadd.f32 %v549, %v686
        %v688 = vpop.f32.mrf.mxu0
        %v689 = vadd.f32 %v551, %v688
        %690 = vmatmul.bf16.gmra.mxu0 %v619
        %v691 = vpop.f32.mrf.mxu0
        %v692 = vadd.f32 %v554, %v691
        %v693 = vpop.f32.mrf.mxu0
        %v694 = vadd.f32 %v556, %v693
        %695 = vmatmul.bf16.gmra.mxu0 %v621
        %v696 = vpop.f32.mrf.mxu0
        %v697 = vadd.f32 %v559, %v696
        %v698 = vpop.f32.mrf.mxu0
        %v699 = vadd.f32 %v561, %v698
        %700 = vmatmul.bf16.gmra.mxu0 %v623
        %v701 = vpop.f32.mrf.mxu0
        %v702 = vadd.f32 %v564, %v701
        %v703 = vpop.f32.mrf.mxu0
        %v704 = vadd.f32 %v566, %v703
        %705 = vmatmul.bf16.gmra.mxu0 %v625
        %v706 = vpop.f32.mrf.mxu0
        %v707 = vadd.f32 %v569, %v706
        %v708 = vpop.f32.mrf.mxu0
        %v709 = vadd.f32 %v571, %v708
        %710 = vmatmul.bf16.gmra.mxu0 %v627
        %v711 = vpop.f32.mrf.mxu0
        %v712 = vadd.f32 %v574, %v711
        %v713 = vpop.f32.mrf.mxu0
        %v714 = vadd.f32 %v576, %v713
        %715 = vmatmul.bf16.gmra.mxu0 %v629
        %v716 = vpop.f32.mrf.mxu0
        %v717 = vadd.f32 %v579, %v716
        %v718 = vpop.f32.mrf.mxu0
        %v719 = vadd.f32 %v581, %v718
        %720 = vmatmul.bf16.gmra.mxu0 %v631
        %v721 = vpop.f32.mrf.mxu0
        %v722 = vadd.f32 %v584, %v721
        %v723 = vpop.f32.mrf.mxu0
        %v724 = vadd.f32 %v586, %v723
        %725 = vmatmul.bf16.gmra.mxu0 %v633
        %v726 = vpop.f32.mrf.mxu0
        %v727 = vadd.f32 %v589, %v726
        %v728 = vpop.f32.mrf.mxu0
        %v729 = vadd.f32 %v591, %v728
        %730 = vmatmul.bf16.gmra.mxu0 %v635
        %v731 = vpop.f32.mrf.mxu0
        %v732 = vadd.f32 %v594, %v731
        %v733 = vpop.f32.mrf.mxu0
        %v734 = vadd.f32 %v596, %v733
        %735 = vmatmul.bf16.gmra.mxu0 %v637
        %v736 = vpop.f32.mrf.mxu0
        %v737 = vadd.f32 %v599, %v736
        %v738 = vpop.f32.mrf.mxu0
        %v739 = vadd.f32 %v601, %v738
        %740 = vdwg.mxu0
        %v741 = vld [vmem:[%s155] sm:$0xe]
        %s742 = scalar_lea.vmem %s1, 4
        %v743 = vld [vmem:[%s742] sm:$0x3]
        %v745 = vunpack.c.l.b16 %v741
        %v746 = vpack.c.b16 %v241, %v745
        %vm747 = vcmask 1046528
        %v748 = vrot.slane %v746, 1
        %v749 = vrot.slane %v278, 1
        %v750 = vsel %vm747, %v748, %v749
        %v751 = vrot.slane %v279, 1
        %v752 = vsel %vm747, %v749, %v751
        %v753 = vrot.slane %v280, 1
        %v754 = vsel %vm747, %v751, %v753
        %v755 = vrot.slane %v281, 1
        %v756 = vsel %vm747, %v753, %v755
        %v757 = vrot.slane %v282, 1
        %v758 = vsel %vm747, %v755, %v757
        %v759 = vrot.slane %v283, 1
        %v760 = vsel %vm747, %v757, %v759
        %v761 = vrot.slane %v284, 1
        %v762 = vsel %vm747, %v759, %v761
        %v763 = vrot.slane %v285, 1
        %v764 = vsel %vm747, %v761, %v763
        %v765 = vrot.slane %v286, 1
        %v766 = vsel %vm747, %v763, %v765
        %v767 = vrot.slane %v287, 1
        %v768 = vsel %vm747, %v765, %v767
        %v769 = vrot.slane %v288, 1
        %v770 = vsel %vm747, %v767, %v769
        %v771 = vrot.slane %v289, 1
        %v772 = vsel %vm747, %v769, %v771
        %v773 = vrot.slane %v290, 1
        %v774 = vsel %vm747, %v771, %v773
        %v775 = vrot.slane %v291, 1
        %v776 = vsel %vm747, %v773, %v775
        %v777 = vrot.slane %v292, 1
        %v778 = vsel %vm747, %v775, %v777
        %v779 = vrot.slane %v293, 1
        %v780 = vsel %vm747, %v777, %v779
        %v781 = vrot.slane %v294, 1
        %v782 = vsel %vm747, %v779, %v781
        %v783 = vrot.slane %v295, 1
        %v784 = vsel %vm747, %v781, %v783
        %v786 = vsel %vm445, %v750, 0
        %v789 = vsel %vm445, %v752, 0
        %v792 = vsel %vm445, %v754, 0
        %v795 = vsel %vm445, %v756, 0
        %v798 = vsel %vm445, %v758, 0
        %v801 = vsel %vm445, %v760, 0
        %v804 = vsel %vm445, %v762, 0
        %v807 = vsel %vm445, %v764, 0
        %v810 = vsel %vm445, %v766, 0
        %v813 = vsel %vm445, %v768, 0
        %v816 = vsel %vm445, %v770, 0
        %v819 = vsel %vm445, %v772, 0
        %v822 = vsel %vm445, %v774, 0
        %v825 = vsel %vm445, %v776, 0
        %v828 = vsel %vm445, %v778, 0
        %v831 = vsel %vm445, %v780, 0
        %v834 = vsel %vm445, %v782, 0
        %v837 = vsel %vm445, %v784, 0
        %v840 = vsel %vm500, %v743, 0
        %842 = vmatpush.bf16.msra.mxu0 0
        %843 = vmatpush.bf16.msra.mxu0 0
        %844 = vmatpush.bf16.msra.mxu0 0
        %845 = vmatpush.bf16.msra.mxu0 0
        %846 = vmatpush.bf16.msra.mxu0 0
        %847 = vmatpush.bf16.msra.mxu0 0
        %848 = vmatpush.bf16.msra.mxu0 0
        %849 = vmatpush.bf16.msra.mxu0 %v840
        %850 = vmatmul.bf16.gmra.mxu0 %v786
        %v851 = vpop.f32.mrf.mxu0
        %v852 = vadd.f32 0.0, %v851
        %v853 = vpop.f32.mrf.mxu0
        %v854 = vadd.f32 0.0, %v853
        %855 = vmatmul.bf16.gmra.mxu0 %v789
        %v856 = vpop.f32.mrf.mxu0
        %v857 = vadd.f32 0.0, %v856
        %v858 = vpop.f32.mrf.mxu0
        %v859 = vadd.f32 0.0, %v858
        %860 = vmatmul.bf16.gmra.mxu0 %v792
        %v861 = vpop.f32.mrf.mxu0
        %v862 = vadd.f32 0.0, %v861
        %v863 = vpop.f32.mrf.mxu0
        %v864 = vadd.f32 0.0, %v863
        %865 = vmatmul.bf16.gmra.mxu0 %v795
        %v866 = vpop.f32.mrf.mxu0
        %v867 = vadd.f32 0.0, %v866
        %v868 = vpop.f32.mrf.mxu0
        %v869 = vadd.f32 0.0, %v868
        %870 = vmatmul.bf16.gmra.mxu0 %v798
        %v871 = vpop.f32.mrf.mxu0
        %v872 = vadd.f32 0.0, %v871
        %v873 = vpop.f32.mrf.mxu0
        %v874 = vadd.f32 0.0, %v873
        %875 = vmatmul.bf16.gmra.mxu0 %v801
        %v876 = vpop.f32.mrf.mxu0
        %v877 = vadd.f32 0.0, %v876
        %v878 = vpop.f32.mrf.mxu0
        %v879 = vadd.f32 0.0, %v878
        %880 = vmatmul.bf16.gmra.mxu0 %v804
        %v881 = vpop.f32.mrf.mxu0
        %v882 = vadd.f32 0.0, %v881
        %v883 = vpop.f32.mrf.mxu0
        %v884 = vadd.f32 0.0, %v883
        %885 = vmatmul.bf16.gmra.mxu0 %v807
        %v886 = vpop.f32.mrf.mxu0
        %v887 = vadd.f32 0.0, %v886
        %v888 = vpop.f32.mrf.mxu0
        %v889 = vadd.f32 0.0, %v888
        %890 = vmatmul.bf16.gmra.mxu0 %v810
        %v891 = vpop.f32.mrf.mxu0
        %v892 = vadd.f32 0.0, %v891
        %v893 = vpop.f32.mrf.mxu0
        %v894 = vadd.f32 0.0, %v893
        %895 = vmatmul.bf16.gmra.mxu0 %v813
        %v896 = vpop.f32.mrf.mxu0
        %v897 = vadd.f32 0.0, %v896
        %v898 = vpop.f32.mrf.mxu0
        %v899 = vadd.f32 0.0, %v898
        %900 = vmatmul.bf16.gmra.mxu0 %v816
        %v901 = vpop.f32.mrf.mxu0
        %v902 = vadd.f32 0.0, %v901
        %v903 = vpop.f32.mrf.mxu0
        %v904 = vadd.f32 0.0, %v903
        %905 = vmatmul.bf16.gmra.mxu0 %v819
        %v906 = vpop.f32.mrf.mxu0
        %v907 = vadd.f32 0.0, %v906
        %v908 = vpop.f32.mrf.mxu0
        %v909 = vadd.f32 0.0, %v908
        %910 = vmatmul.bf16.gmra.mxu0 %v822
        %v911 = vpop.f32.mrf.mxu0
        %v912 = vadd.f32 0.0, %v911
        %v913 = vpop.f32.mrf.mxu0
        %v914 = vadd.f32 0.0, %v913
        %915 = vmatmul.bf16.gmra.mxu0 %v825
        %v916 = vpop.f32.mrf.mxu0
        %v917 = vadd.f32 0.0, %v916
        %v918 = vpop.f32.mrf.mxu0
        %v919 = vadd.f32 0.0, %v918
        %920 = vmatmul.bf16.gmra.mxu0 %v828
        %v921 = vpop.f32.mrf.mxu0
        %v922 = vadd.f32 0.0, %v921
        %v923 = vpop.f32.mrf.mxu0
        %v924 = vadd.f32 0.0, %v923
        %925 = vmatmul.bf16.gmra.mxu0 %v831
        %v926 = vpop.f32.mrf.mxu0
        %v927 = vadd.f32 0.0, %v926
        %v928 = vpop.f32.mrf.mxu0
        %v929 = vadd.f32 0.0, %v928
        %930 = vmatmul.bf16.gmra.mxu0 %v834
        %v931 = vpop.f32.mrf.mxu0
        %v932 = vadd.f32 0.0, %v931
        %v933 = vpop.f32.mrf.mxu0
        %v934 = vadd.f32 0.0, %v933
        %935 = vmatmul.bf16.gmra.mxu0 %v837
        %v936 = vpop.f32.mrf.mxu0
        %v937 = vadd.f32 0.0, %v936
        %v938 = vpop.f32.mrf.mxu0
        %v939 = vadd.f32 0.0, %v938
        %940 = vdwg.mxu0
        %v941 = vadd.f32 %v652, %v852
        %v942 = vadd.f32 %v654, %v854
        %v943 = vadd.f32 %v657, %v857
        %v944 = vadd.f32 %v659, %v859
        %v945 = vadd.f32 %v662, %v862
        %v946 = vadd.f32 %v664, %v864
        %v947 = vadd.f32 %v667, %v867
        %v948 = vadd.f32 %v669, %v869
        %v949 = vadd.f32 %v672, %v872
        %v950 = vadd.f32 %v674, %v874
        %v951 = vadd.f32 %v677, %v877
        %v952 = vadd.f32 %v679, %v879
        %v953 = vadd.f32 %v682, %v882
        %v954 = vadd.f32 %v684, %v884
        %v955 = vadd.f32 %v687, %v887
        %v956 = vadd.f32 %v689, %v889
        %v957 = vadd.f32 %v692, %v892
        %v958 = vadd.f32 %v694, %v894
        %v959 = vadd.f32 %v697, %v897
        %v960 = vadd.f32 %v699, %v899
        %v961 = vadd.f32 %v702, %v902
        %v962 = vadd.f32 %v704, %v904
        %v963 = vadd.f32 %v707, %v907
        %v964 = vadd.f32 %v709, %v909
        %v965 = vadd.f32 %v712, %v912
        %v966 = vadd.f32 %v714, %v914
        %v967 = vadd.f32 %v717, %v917
        %v968 = vadd.f32 %v719, %v919
        %v969 = vadd.f32 %v722, %v922
        %v970 = vadd.f32 %v724, %v924
        %v971 = vadd.f32 %v727, %v927
        %v972 = vadd.f32 %v729, %v929
        %v973 = vadd.f32 %v732, %v932
        %v974 = vadd.f32 %v734, %v934
        %v975 = vadd.f32 %v737, %v937
        %v976 = vadd.f32 %v739, %v939
        %v977 = vld [vmem:[%s155 + $0x8] sm:$0xe]
        %v978 = vld [vmem:[%s155 + $0xc] sm:$0xf]
        %v979 = vld [vmem:[%s155 + $0x10] sm:$0xf]
        %v980 = vld [vmem:[%s155 + $0x14] sm:$0xf]
        %v981 = vld [vmem:[%s155 + $0x18] sm:$0xf]
        %v982 = vld [vmem:[%s155 + $0x1c] sm:$0xf]
        %v983 = vld [vmem:[%s155 + $0x20] sm:$0xf]
        %v984 = vld [vmem:[%s155 + $0x24] sm:$0xf]
        %v985 = vld [vmem:[%s155 + $0x28] sm:$0xf]
        %v986 = vld [vmem:[%s155 + $0x2c] sm:$0xf]
        %v987 = vld [vmem:[%s155 + $0x30] sm:$0xf]
        %v988 = vld [vmem:[%s155 + $0x34] sm:$0xf]
        %v989 = vld [vmem:[%s155 + $0x38] sm:$0xf]
        %v990 = vld [vmem:[%s155 + $0x3c] sm:$0xf]
        %v991 = vld [vmem:[%s155 + $0x40] sm:$0xf]
        %v992 = vld [vmem:[%s155 + $0x44] sm:$0xf]
        %v993 = vld [vmem:[%s155 + $0x48] sm:$0xf]
        %v994 = vld [vmem:[%s155 + $0x4c] sm:$0xf]
        %v995 = vld [vmem:[%s155 + $0x50] sm:$0xf]
        %v996 = vld [vmem:[%s155 + $0x54] sm:$0xf]
        %v997 = vld [vmem:[%s155 + $0x58] sm:$0xf]
        %v998 = vld [vmem:[%s155 + $0x5c] sm:$0xf]
        %v999 = vld [vmem:[%s155 + $0x60] sm:$0xf]
        %v1000 = vld [vmem:[%s155 + $0x64] sm:$0xf]
        %v1001 = vld [vmem:[%s155 + $0x68] sm:$0xf]
        %v1002 = vld [vmem:[%s155 + $0x6c] sm:$0xf]
        %v1003 = vld [vmem:[%s155 + $0x70] sm:$0xf]
        %v1004 = vld [vmem:[%s155 + $0x74] sm:$0xf]
        %v1005 = vld [vmem:[%s155 + $0x78] sm:$0xf]
        %v1006 = vld [vmem:[%s155 + $0x7c] sm:$0xf]
        %v1007 = vld [vmem:[%s155 + $0x80] sm:$0xf]
        %v1008 = vld [vmem:[%s155 + $0x84] sm:$0xf]
        %v1009 = vld [vmem:[%s155 + $0x88] sm:$0xf]
        %v1010 = vld [vmem:[%s155 + $0x8c] sm:$0xf]
        %v1011 = vld [vmem:[%s155 + $0x90] sm:$0xf]
        %v1012 = vld [vmem:[%s155 + $0x94] sm:$0xf]
        %v1013 = vld [vmem:[%s155 + $0x98] sm:$0x1]
        %s1014 = scalar_lea.vmem %s1, 6
        %v1015 = vld [vmem:[%s1014] sm:$0x3]
        %v1053 = vunpack.c.l.b16 %v977
        %v1054 = vunpack.c.l.b16 %v978
        %v1055 = vunpack.c.l.b16 %v979
        %v1056 = vunpack.c.l.b16 %v980
        %v1057 = vunpack.c.l.b16 %v981
        %v1058 = vunpack.c.l.b16 %v982
        %v1059 = vunpack.c.l.b16 %v983
        %v1060 = vunpack.c.l.b16 %v984
        %v1061 = vunpack.c.l.b16 %v985
        %v1062 = vunpack.c.l.b16 %v986
        %v1063 = vunpack.c.l.b16 %v987
        %v1064 = vunpack.c.l.b16 %v988
        %v1065 = vunpack.c.l.b16 %v989
        %v1066 = vunpack.c.l.b16 %v990
        %v1067 = vunpack.c.l.b16 %v991
        %v1068 = vunpack.c.l.b16 %v992
        %v1069 = vunpack.c.l.b16 %v993
        %v1070 = vunpack.c.l.b16 %v994
        %v1071 = vunpack.c.l.b16 %v995
        %v1072 = vunpack.c.l.b16 %v996
        %v1073 = vunpack.c.l.b16 %v997
        %v1074 = vunpack.c.l.b16 %v998
        %v1075 = vunpack.c.l.b16 %v999
        %v1076 = vunpack.c.l.b16 %v1000
        %v1077 = vunpack.c.l.b16 %v1001
        %v1078 = vunpack.c.l.b16 %v1002
        %v1079 = vunpack.c.l.b16 %v1003
        %v1080 = vunpack.c.l.b16 %v1004
        %v1081 = vunpack.c.l.b16 %v1005
        %v1082 = vunpack.c.l.b16 %v1006
        %v1083 = vunpack.c.l.b16 %v1007
        %v1084 = vunpack.c.l.b16 %v1008
        %v1085 = vunpack.c.l.b16 %v1009
        %v1086 = vunpack.c.l.b16 %v1010
        %v1087 = vunpack.c.l.b16 %v1011
        %v1088 = vunpack.c.l.b16 %v1012
        %v1089 = vunpack.c.l.b16 %v1013
        %v1090 = vpack.c.b16 %v1054, %v1053
        %v1091 = vpack.c.b16 %v1056, %v1055
        %v1092 = vpack.c.b16 %v1058, %v1057
        %v1093 = vpack.c.b16 %v1060, %v1059
        %v1094 = vpack.c.b16 %v1062, %v1061
        %v1095 = vpack.c.b16 %v1064, %v1063
        %v1096 = vpack.c.b16 %v1066, %v1065
        %v1097 = vpack.c.b16 %v1068, %v1067
        %v1098 = vpack.c.b16 %v1070, %v1069
        %v1099 = vpack.c.b16 %v1072, %v1071
        %v1100 = vpack.c.b16 %v1074, %v1073
        %v1101 = vpack.c.b16 %v1076, %v1075
        %v1102 = vpack.c.b16 %v1078, %v1077
        %v1103 = vpack.c.b16 %v1080, %v1079
        %v1104 = vpack.c.b16 %v1082, %v1081
        %v1105 = vpack.c.b16 %v1084, %v1083
        %v1106 = vpack.c.b16 %v1086, %v1085
        %v1107 = vpack.c.b16 %v1088, %v1087
        %v1108 = vpack.c.b16 %v1089, %v1089
        %v1109 = vrot.slane %v1090, 1
        %v1110 = vrot.slane %v1091, 1
        %v1111 = vsel %vm747, %v1109, %v1110
        %v1112 = vrot.slane %v1092, 1
        %v1113 = vsel %vm747, %v1110, %v1112
        %v1114 = vrot.slane %v1093, 1
        %v1115 = vsel %vm747, %v1112, %v1114
        %v1116 = vrot.slane %v1094, 1
        %v1117 = vsel %vm747, %v1114, %v1116
        %v1118 = vrot.slane %v1095, 1
        %v1119 = vsel %vm747, %v1116, %v1118
        %v1120 = vrot.slane %v1096, 1
        %v1121 = vsel %vm747, %v1118, %v1120
        %v1122 = vrot.slane %v1097, 1
        %v1123 = vsel %vm747, %v1120, %v1122
        %v1124 = vrot.slane %v1098, 1
        %v1125 = vsel %vm747, %v1122, %v1124
        %v1126 = vrot.slane %v1099, 1
        %v1127 = vsel %vm747, %v1124, %v1126
        %v1128 = vrot.slane %v1100, 1
        %v1129 = vsel %vm747, %v1126, %v1128
        %v1130 = vrot.slane %v1101, 1
        %v1131 = vsel %vm747, %v1128, %v1130
        %v1132 = vrot.slane %v1102, 1
        %v1133 = vsel %vm747, %v1130, %v1132
        %v1134 = vrot.slane %v1103, 1
        %v1135 = vsel %vm747, %v1132, %v1134
        %v1136 = vrot.slane %v1104, 1
        %v1137 = vsel %vm747, %v1134, %v1136
        %v1138 = vrot.slane %v1105, 1
        %v1139 = vsel %vm747, %v1136, %v1138
        %v1140 = vrot.slane %v1106, 1
        %v1141 = vsel %vm747, %v1138, %v1140
        %v1142 = vrot.slane %v1107, 1
        %v1143 = vsel %vm747, %v1140, %v1142
        %v1144 = vrot.slane %v1108, 1
        %v1145 = vsel %vm747, %v1142, %v1144
        %v1147 = vsel %vm445, %v1111, 0
        %v1150 = vsel %vm445, %v1113, 0
        %v1153 = vsel %vm445, %v1115, 0
        %v1156 = vsel %vm445, %v1117, 0
        %v1159 = vsel %vm445, %v1119, 0
        %v1162 = vsel %vm445, %v1121, 0
        %v1165 = vsel %vm445, %v1123, 0
        %v1168 = vsel %vm445, %v1125, 0
        %v1171 = vsel %vm445, %v1127, 0
        %v1174 = vsel %vm445, %v1129, 0
        %v1177 = vsel %vm445, %v1131, 0
        %v1180 = vsel %vm445, %v1133, 0
        %v1183 = vsel %vm445, %v1135, 0
        %v1186 = vsel %vm445, %v1137, 0
        %v1189 = vsel %vm445, %v1139, 0
        %v1192 = vsel %vm445, %v1141, 0
        %v1195 = vsel %vm445, %v1143, 0
        %v1198 = vsel %vm445, %v1145, 0
        %v1201 = vsel %vm500, %v1015, 0
        %1203 = vmatpush.bf16.msra.mxu0 0
        %1204 = vmatpush.bf16.msra.mxu0 0
        %1205 = vmatpush.bf16.msra.mxu0 0
        %1206 = vmatpush.bf16.msra.mxu0 0
        %1207 = vmatpush.bf16.msra.mxu0 0
        %1208 = vmatpush.bf16.msra.mxu0 0
        %1209 = vmatpush.bf16.msra.mxu0 0
        %1210 = vmatpush.bf16.msra.mxu0 %v1201
        %1211 = vmatmul.bf16.gmra.mxu0 %v1147
        %v1212 = vpop.f32.mrf.mxu0
        %v1213 = vadd.f32 0.0, %v1212
        %v1214 = vpop.f32.mrf.mxu0
        %v1215 = vadd.f32 0.0, %v1214
        %1216 = vmatmul.bf16.gmra.mxu0 %v1150
        %v1217 = vpop.f32.mrf.mxu0
        %v1218 = vadd.f32 0.0, %v1217
        %v1219 = vpop.f32.mrf.mxu0
        %v1220 = vadd.f32 0.0, %v1219
        %1221 = vmatmul.bf16.gmra.mxu0 %v1153
        %v1222 = vpop.f32.mrf.mxu0
        %v1223 = vadd.f32 0.0, %v1222
        %v1224 = vpop.f32.mrf.mxu0
        %v1225 = vadd.f32 0.0, %v1224
        %1226 = vmatmul.bf16.gmra.mxu0 %v1156
        %v1227 = vpop.f32.mrf.mxu0
        %v1228 = vadd.f32 0.0, %v1227
        %v1229 = vpop.f32.mrf.mxu0
        %v1230 = vadd.f32 0.0, %v1229
        %1231 = vmatmul.bf16.gmra.mxu0 %v1159
        %v1232 = vpop.f32.mrf.mxu0
        %v1233 = vadd.f32 0.0, %v1232
        %v1234 = vpop.f32.mrf.mxu0
        %v1235 = vadd.f32 0.0, %v1234
        %1236 = vmatmul.bf16.gmra.mxu0 %v1162
        %v1237 = vpop.f32.mrf.mxu0
        %v1238 = vadd.f32 0.0, %v1237
        %v1239 = vpop.f32.mrf.mxu0
        %v1240 = vadd.f32 0.0, %v1239
        %1241 = vmatmul.bf16.gmra.mxu0 %v1165
        %v1242 = vpop.f32.mrf.mxu0
        %v1243 = vadd.f32 0.0, %v1242
        %v1244 = vpop.f32.mrf.mxu0
        %v1245 = vadd.f32 0.0, %v1244
        %1246 = vmatmul.bf16.gmra.mxu0 %v1168
        %v1247 = vpop.f32.mrf.mxu0
        %v1248 = vadd.f32 0.0, %v1247
        %v1249 = vpop.f32.mrf.mxu0
        %v1250 = vadd.f32 0.0, %v1249
        %1251 = vmatmul.bf16.gmra.mxu0 %v1171
        %v1252 = vpop.f32.mrf.mxu0
        %v1253 = vadd.f32 0.0, %v1252
        %v1254 = vpop.f32.mrf.mxu0
        %v1255 = vadd.f32 0.0, %v1254
        %1256 = vmatmul.bf16.gmra.mxu0 %v1174
        %v1257 = vpop.f32.mrf.mxu0
        %v1258 = vadd.f32 0.0, %v1257
        %v1259 = vpop.f32.mrf.mxu0
        %v1260 = vadd.f32 0.0, %v1259
        %1261 = vmatmul.bf16.gmra.mxu0 %v1177
        %v1262 = vpop.f32.mrf.mxu0
        %v1263 = vadd.f32 0.0, %v1262
        %v1264 = vpop.f32.mrf.mxu0
        %v1265 = vadd.f32 0.0, %v1264
        %1266 = vmatmul.bf16.gmra.mxu0 %v1180
        %v1267 = vpop.f32.mrf.mxu0
        %v1268 = vadd.f32 0.0, %v1267
        %v1269 = vpop.f32.mrf.mxu0
        %v1270 = vadd.f32 0.0, %v1269
        %1271 = vmatmul.bf16.gmra.mxu0 %v1183
        %v1272 = vpop.f32.mrf.mxu0
        %v1273 = vadd.f32 0.0, %v1272
        %v1274 = vpop.f32.mrf.mxu0
        %v1275 = vadd.f32 0.0, %v1274
        %1276 = vmatmul.bf16.gmra.mxu0 %v1186
        %v1277 = vpop.f32.mrf.mxu0
        %v1278 = vadd.f32 0.0, %v1277
        %v1279 = vpop.f32.mrf.mxu0
        %v1280 = vadd.f32 0.0, %v1279
        %1281 = vmatmul.bf16.gmra.mxu0 %v1189
        %v1282 = vpop.f32.mrf.mxu0
        %v1283 = vadd.f32 0.0, %v1282
        %v1284 = vpop.f32.mrf.mxu0
        %v1285 = vadd.f32 0.0, %v1284
        %1286 = vmatmul.bf16.gmra.mxu0 %v1192
        %v1287 = vpop.f32.mrf.mxu0
        %v1288 = vadd.f32 0.0, %v1287
        %v1289 = vpop.f32.mrf.mxu0
        %v1290 = vadd.f32 0.0, %v1289
        %1291 = vmatmul.bf16.gmra.mxu0 %v1195
        %v1292 = vpop.f32.mrf.mxu0
        %v1293 = vadd.f32 0.0, %v1292
        %v1294 = vpop.f32.mrf.mxu0
        %v1295 = vadd.f32 0.0, %v1294
        %1296 = vmatmul.bf16.gmra.mxu0 %v1198
        %v1297 = vpop.f32.mrf.mxu0
        %v1298 = vadd.f32 0.0, %v1297
        %v1299 = vpop.f32.mrf.mxu0
        %v1300 = vadd.f32 0.0, %v1299
        %1301 = vdwg.mxu0
        %v1302 = vadd.f32 %v941, %v1213
        %v1303 = vadd.f32 %v942, %v1215
        %v1304 = vadd.f32 %v943, %v1218
        %v1305 = vadd.f32 %v944, %v1220
        %v1306 = vadd.f32 %v945, %v1223
        %v1307 = vadd.f32 %v946, %v1225
        %v1308 = vadd.f32 %v947, %v1228
        %v1309 = vadd.f32 %v948, %v1230
        %v1310 = vadd.f32 %v949, %v1233
        %v1311 = vadd.f32 %v950, %v1235
        %v1312 = vadd.f32 %v951, %v1238
        %v1313 = vadd.f32 %v952, %v1240
        %v1314 = vadd.f32 %v953, %v1243
        %v1315 = vadd.f32 %v954, %v1245
        %v1316 = vadd.f32 %v955, %v1248
        %v1317 = vadd.f32 %v956, %v1250
        %v1318 = vadd.f32 %v957, %v1253
        %v1319 = vadd.f32 %v958, %v1255
        %v1320 = vadd.f32 %v959, %v1258
        %v1321 = vadd.f32 %v960, %v1260
        %v1322 = vadd.f32 %v961, %v1263
        %v1323 = vadd.f32 %v962, %v1265
        %v1324 = vadd.f32 %v963, %v1268
        %v1325 = vadd.f32 %v964, %v1270
        %v1326 = vadd.f32 %v965, %v1273
        %v1327 = vadd.f32 %v966, %v1275
        %v1328 = vadd.f32 %v967, %v1278
        %v1329 = vadd.f32 %v968, %v1280
        %v1330 = vadd.f32 %v969, %v1283
        %v1331 = vadd.f32 %v970, %v1285
        %v1332 = vadd.f32 %v971, %v1288
        %v1333 = vadd.f32 %v972, %v1290
        %v1334 = vadd.f32 %v973, %v1293
        %v1335 = vadd.f32 %v974, %v1295
        %v1336 = vadd.f32 %v975, %v1298
        %v1337 = vadd.f32 %v976, %v1300
        %v1338 = vld [vmem:[%s155 + $0x98] sm:$0x3]
        %s1339 = scalar_lea.vmem %s1, 8
        %v1340 = vld [vmem:[%s1339] sm:$0x3]
        %v1342 = vunpack.c.l.b16 %v1338
        %v1343 = vpack.c.b16 %v1342, %v1342
        %vm1344 = vsmask.f32 6400
        %v1346 = vshrl.u32 %v1090, 16
        %v1348 = vrot.slane %v1346, 1
        %v1349 = vshll.u32 %v1090, 16
        %v1351 = vrot.slane %v1349, 2
        %v1352 = vor.u32 %v1348, %v1351
        %v1354 = vshrl.u32 %v1091, 16
        %v1356 = vrot.slane %v1354, 1
        %v1357 = vshll.u32 %v1091, 16
        %v1359 = vrot.slane %v1357, 2
        %v1360 = vor.u32 %v1356, %v1359
        %v1361 = vsel %vm1344, %v1352, %v1360
        %v1363 = vshrl.u32 %v1092, 16
        %v1365 = vrot.slane %v1363, 1
        %v1366 = vshll.u32 %v1092, 16
        %v1368 = vrot.slane %v1366, 2
        %v1369 = vor.u32 %v1365, %v1368
        %v1370 = vsel %vm1344, %v1360, %v1369
        %v1372 = vshrl.u32 %v1093, 16
        %v1374 = vrot.slane %v1372, 1
        %v1375 = vshll.u32 %v1093, 16
        %v1377 = vrot.slane %v1375, 2
        %v1378 = vor.u32 %v1374, %v1377
        %v1379 = vsel %vm1344, %v1369, %v1378
        %v1381 = vshrl.u32 %v1094, 16
        %v1383 = vrot.slane %v1381, 1
        %v1384 = vshll.u32 %v1094, 16
        %v1386 = vrot.slane %v1384, 2
        %v1387 = vor.u32 %v1383, %v1386
        %v1388 = vsel %vm1344, %v1378, %v1387
        %v1390 = vshrl.u32 %v1095, 16
        %v1392 = vrot.slane %v1390, 1
        %v1393 = vshll.u32 %v1095, 16
        %v1395 = vrot.slane %v1393, 2
        %v1396 = vor.u32 %v1392, %v1395
        %v1397 = vsel %vm1344, %v1387, %v1396
        %v1399 = vshrl.u32 %v1096, 16
        %v1401 = vrot.slane %v1399, 1
        %v1402 = vshll.u32 %v1096, 16
        %v1404 = vrot.slane %v1402, 2
        %v1405 = vor.u32 %v1401, %v1404
        %v1406 = vsel %vm1344, %v1396, %v1405
        %v1408 = vshrl.u32 %v1097, 16
        %v1410 = vrot.slane %v1408, 1
        %v1411 = vshll.u32 %v1097, 16
        %v1413 = vrot.slane %v1411, 2
        %v1414 = vor.u32 %v1410, %v1413
        %v1415 = vsel %vm1344, %v1405, %v1414
        %v1417 = vshrl.u32 %v1098, 16
        %v1419 = vrot.slane %v1417, 1
        %v1420 = vshll.u32 %v1098, 16
        %v1422 = vrot.slane %v1420, 2
        %v1423 = vor.u32 %v1419, %v1422
        %v1424 = vsel %vm1344, %v1414, %v1423
        %v1426 = vshrl.u32 %v1099, 16
        %v1428 = vrot.slane %v1426, 1
        %v1429 = vshll.u32 %v1099, 16
        %v1431 = vrot.slane %v1429, 2
        %v1432 = vor.u32 %v1428, %v1431
        %v1433 = vsel %vm1344, %v1423, %v1432
        %v1435 = vshrl.u32 %v1100, 16
        %v1437 = vrot.slane %v1435, 1
        %v1438 = vshll.u32 %v1100, 16
        %v1440 = vrot.slane %v1438, 2
        %v1441 = vor.u32 %v1437, %v1440
        %v1442 = vsel %vm1344, %v1432, %v1441
        %v1444 = vshrl.u32 %v1101, 16
        %v1446 = vrot.slane %v1444, 1
        %v1447 = vshll.u32 %v1101, 16
        %v1449 = vrot.slane %v1447, 2
        %v1450 = vor.u32 %v1446, %v1449
        %v1451 = vsel %vm1344, %v1441, %v1450
        %v1453 = vshrl.u32 %v1102, 16
        %v1455 = vrot.slane %v1453, 1
        %v1456 = vshll.u32 %v1102, 16
        %v1458 = vrot.slane %v1456, 2
        %v1459 = vor.u32 %v1455, %v1458
        %v1460 = vsel %vm1344, %v1450, %v1459
        %v1462 = vshrl.u32 %v1103, 16
        %v1464 = vrot.slane %v1462, 1
        %v1465 = vshll.u32 %v1103, 16
        %v1467 = vrot.slane %v1465, 2
        %v1468 = vor.u32 %v1464, %v1467
        %v1469 = vsel %vm1344, %v1459, %v1468
        %v1471 = vshrl.u32 %v1104, 16
        %v1473 = vrot.slane %v1471, 1
        %v1474 = vshll.u32 %v1104, 16
        %v1476 = vrot.slane %v1474, 2
        %v1477 = vor.u32 %v1473, %v1476
        %v1478 = vsel %vm1344, %v1468, %v1477
        %v1480 = vshrl.u32 %v1105, 16
        %v1482 = vrot.slane %v1480, 1
        %v1483 = vshll.u32 %v1105, 16
        %v1485 = vrot.slane %v1483, 2
        %v1486 = vor.u32 %v1482, %v1485
        %v1487 = vsel %vm1344, %v1477, %v1486
        %v1489 = vshrl.u32 %v1106, 16
        %v1491 = vrot.slane %v1489, 1
        %v1492 = vshll.u32 %v1106, 16
        %v1494 = vrot.slane %v1492, 2
        %v1495 = vor.u32 %v1491, %v1494
        %v1496 = vsel %vm1344, %v1486, %v1495
        %v1498 = vshrl.u32 %v1107, 16
        %v1500 = vrot.slane %v1498, 1
        %v1501 = vshll.u32 %v1107, 16
        %v1503 = vrot.slane %v1501, 2
        %v1504 = vor.u32 %v1500, %v1503
        %v1505 = vsel %vm1344, %v1495, %v1504
        %v1507 = vshrl.u32 %v1343, 16
        %v1509 = vrot.slane %v1507, 1
        %v1510 = vshll.u32 %v1343, 16
        %v1512 = vrot.slane %v1510, 2
        %v1513 = vor.u32 %v1509, %v1512
        %v1514 = vsel %vm1344, %v1504, %v1513
        %v1516 = vsel %vm445, %v1361, 0
        %v1519 = vsel %vm445, %v1370, 0
        %v1522 = vsel %vm445, %v1379, 0
        %v1525 = vsel %vm445, %v1388, 0
        %v1528 = vsel %vm445, %v1397, 0
        %v1531 = vsel %vm445, %v1406, 0
        %v1534 = vsel %vm445, %v1415, 0
        %v1537 = vsel %vm445, %v1424, 0
        %v1540 = vsel %vm445, %v1433, 0
        %v1543 = vsel %vm445, %v1442, 0
        %v1546 = vsel %vm445, %v1451, 0
        %v1549 = vsel %vm445, %v1460, 0
        %v1552 = vsel %vm445, %v1469, 0
        %v1555 = vsel %vm445, %v1478, 0
        %v1558 = vsel %vm445, %v1487, 0
        %v1561 = vsel %vm445, %v1496, 0
        %v1564 = vsel %vm445, %v1505, 0
        %v1567 = vsel %vm445, %v1514, 0
        %v1570 = vsel %vm500, %v1340, 0
        %1572 = vmatpush.bf16.msra.mxu0 0
        %1573 = vmatpush.bf16.msra.mxu0 0
        %1574 = vmatpush.bf16.msra.mxu0 0
        %1575 = vmatpush.bf16.msra.mxu0 0
        %1576 = vmatpush.bf16.msra.mxu0 0
        %1577 = vmatpush.bf16.msra.mxu0 0
        %1578 = vmatpush.bf16.msra.mxu0 0
        %1579 = vmatpush.bf16.msra.mxu0 %v1570
        %1580 = vmatmul.bf16.gmra.mxu0 %v1516
        %v1581 = vpop.f32.mrf.mxu0
        %v1582 = vadd.f32 0.0, %v1581
        %v1583 = vpop.f32.mrf.mxu0
        %v1584 = vadd.f32 0.0, %v1583
        %1585 = vmatmul.bf16.gmra.mxu0 %v1519
        %v1586 = vpop.f32.mrf.mxu0
        %v1587 = vadd.f32 0.0, %v1586
        %v1588 = vpop.f32.mrf.mxu0
        %v1589 = vadd.f32 0.0, %v1588
        %1590 = vmatmul.bf16.gmra.mxu0 %v1522
        %v1591 = vpop.f32.mrf.mxu0
        %v1592 = vadd.f32 0.0, %v1591
        %v1593 = vpop.f32.mrf.mxu0
        %v1594 = vadd.f32 0.0, %v1593
        %1595 = vmatmul.bf16.gmra.mxu0 %v1525
        %v1596 = vpop.f32.mrf.mxu0
        %v1597 = vadd.f32 0.0, %v1596
        %v1598 = vpop.f32.mrf.mxu0
        %v1599 = vadd.f32 0.0, %v1598
        %1600 = vmatmul.bf16.gmra.mxu0 %v1528
        %v1601 = vpop.f32.mrf.mxu0
        %v1602 = vadd.f32 0.0, %v1601
        %v1603 = vpop.f32.mrf.mxu0
        %v1604 = vadd.f32 0.0, %v1603
        %1605 = vmatmul.bf16.gmra.mxu0 %v1531
        %v1606 = vpop.f32.mrf.mxu0
        %v1607 = vadd.f32 0.0, %v1606
        %v1608 = vpop.f32.mrf.mxu0
        %v1609 = vadd.f32 0.0, %v1608
        %1610 = vmatmul.bf16.gmra.mxu0 %v1534
        %v1611 = vpop.f32.mrf.mxu0
        %v1612 = vadd.f32 0.0, %v1611
        %v1613 = vpop.f32.mrf.mxu0
        %v1614 = vadd.f32 0.0, %v1613
        %1615 = vmatmul.bf16.gmra.mxu0 %v1537
        %v1616 = vpop.f32.mrf.mxu0
        %v1617 = vadd.f32 0.0, %v1616
        %v1618 = vpop.f32.mrf.mxu0
        %v1619 = vadd.f32 0.0, %v1618
        %1620 = vmatmul.bf16.gmra.mxu0 %v1540
        %v1621 = vpop.f32.mrf.mxu0
        %v1622 = vadd.f32 0.0, %v1621
        %v1623 = vpop.f32.mrf.mxu0
        %v1624 = vadd.f32 0.0, %v1623
        %1625 = vmatmul.bf16.gmra.mxu0 %v1543
        %v1626 = vpop.f32.mrf.mxu0
        %v1627 = vadd.f32 0.0, %v1626
        %v1628 = vpop.f32.mrf.mxu0
        %v1629 = vadd.f32 0.0, %v1628
        %1630 = vmatmul.bf16.gmra.mxu0 %v1546
        %v1631 = vpop.f32.mrf.mxu0
        %v1632 = vadd.f32 0.0, %v1631
        %v1633 = vpop.f32.mrf.mxu0
        %v1634 = vadd.f32 0.0, %v1633
        %1635 = vmatmul.bf16.gmra.mxu0 %v1549
        %v1636 = vpop.f32.mrf.mxu0
        %v1637 = vadd.f32 0.0, %v1636
        %v1638 = vpop.f32.mrf.mxu0
        %v1639 = vadd.f32 0.0, %v1638
        %1640 = vmatmul.bf16.gmra.mxu0 %v1552
        %v1641 = vpop.f32.mrf.mxu0
        %v1642 = vadd.f32 0.0, %v1641
        %v1643 = vpop.f32.mrf.mxu0
        %v1644 = vadd.f32 0.0, %v1643
        %1645 = vmatmul.bf16.gmra.mxu0 %v1555
        %v1646 = vpop.f32.mrf.mxu0
        %v1647 = vadd.f32 0.0, %v1646
        %v1648 = vpop.f32.mrf.mxu0
        %v1649 = vadd.f32 0.0, %v1648
        %1650 = vmatmul.bf16.gmra.mxu0 %v1558
        %v1651 = vpop.f32.mrf.mxu0
        %v1652 = vadd.f32 0.0, %v1651
        %v1653 = vpop.f32.mrf.mxu0
        %v1654 = vadd.f32 0.0, %v1653
        %1655 = vmatmul.bf16.gmra.mxu0 %v1561
        %v1656 = vpop.f32.mrf.mxu0
        %v1657 = vadd.f32 0.0, %v1656
        %v1658 = vpop.f32.mrf.mxu0
        %v1659 = vadd.f32 0.0, %v1658
        %1660 = vmatmul.bf16.gmra.mxu0 %v1564
        %v1661 = vpop.f32.mrf.mxu0
        %v1662 = vadd.f32 0.0, %v1661
        %v1663 = vpop.f32.mrf.mxu0
        %v1664 = vadd.f32 0.0, %v1663
        %1665 = vmatmul.bf16.gmra.mxu0 %v1567
        %v1666 = vpop.f32.mrf.mxu0
        %v1667 = vadd.f32 0.0, %v1666
        %v1668 = vpop.f32.mrf.mxu0
        %v1669 = vadd.f32 0.0, %v1668
        %1670 = vdwg.mxu0
        %v1671 = vadd.f32 %v1302, %v1582
        %v1672 = vadd.f32 %v1303, %v1584
        %v1673 = vadd.f32 %v1304, %v1587
        %v1674 = vadd.f32 %v1305, %v1589
        %v1675 = vadd.f32 %v1306, %v1592
        %v1676 = vadd.f32 %v1307, %v1594
        %v1677 = vadd.f32 %v1308, %v1597
        %v1678 = vadd.f32 %v1309, %v1599
        %v1679 = vadd.f32 %v1310, %v1602
        %v1680 = vadd.f32 %v1311, %v1604
        %v1681 = vadd.f32 %v1312, %v1607
        %v1682 = vadd.f32 %v1313, %v1609
        %v1683 = vadd.f32 %v1314, %v1612
        %v1684 = vadd.f32 %v1315, %v1614
        %v1685 = vadd.f32 %v1316, %v1617
        %v1686 = vadd.f32 %v1317, %v1619
        %v1687 = vadd.f32 %v1318, %v1622
        %v1688 = vadd.f32 %v1319, %v1624
        %v1689 = vadd.f32 %v1320, %v1627
        %v1690 = vadd.f32 %v1321, %v1629
        %v1691 = vadd.f32 %v1322, %v1632
        %v1692 = vadd.f32 %v1323, %v1634
        %v1693 = vadd.f32 %v1324, %v1637
        %v1694 = vadd.f32 %v1325, %v1639
        %v1695 = vadd.f32 %v1326, %v1642
        %v1696 = vadd.f32 %v1327, %v1644
        %v1697 = vadd.f32 %v1328, %v1647
        %v1698 = vadd.f32 %v1329, %v1649
        %v1699 = vadd.f32 %v1330, %v1652
        %v1700 = vadd.f32 %v1331, %v1654
        %v1701 = vadd.f32 %v1332, %v1657
        %v1702 = vadd.f32 %v1333, %v1659
        %v1703 = vadd.f32 %v1334, %v1662
        %v1704 = vadd.f32 %v1335, %v1664
        %v1705 = vadd.f32 %v1336, %v1667
        %v1706 = vadd.f32 %v1337, %v1669
        %v1707 = vld [vmem:[%s155 + $0x8] sm:$0xc]
        %s1708 = scalar_lea.vmem %s1, 10
        %v1709 = vld [vmem:[%s1708] sm:$0x3]
        %v1711 = vunpack.c.l.b16 %v1707
        %v1712 = vpack.c.b16 %v1054, %v1711
        %vm1713 = vcmask 1045504
        %v1714 = vrot.slane %v1712, 2
        %v1715 = vrot.slane %v1091, 2
        %v1716 = vsel %vm1713, %v1714, %v1715
        %v1717 = vrot.slane %v1092, 2
        %v1718 = vsel %vm1713, %v1715, %v1717
        %v1719 = vrot.slane %v1093, 2
        %v1720 = vsel %vm1713, %v1717, %v1719
        %v1721 = vrot.slane %v1094, 2
        %v1722 = vsel %vm1713, %v1719, %v1721
        %v1723 = vrot.slane %v1095, 2
        %v1724 = vsel %vm1713, %v1721, %v1723
        %v1725 = vrot.slane %v1096, 2
        %v1726 = vsel %vm1713, %v1723, %v1725
        %v1727 = vrot.slane %v1097, 2
        %v1728 = vsel %vm1713, %v1725, %v1727
        %v1729 = vrot.slane %v1098, 2
        %v1730 = vsel %vm1713, %v1727, %v1729
        %v1731 = vrot.slane %v1099, 2
        %v1732 = vsel %vm1713, %v1729, %v1731
        %v1733 = vrot.slane %v1100, 2
        %v1734 = vsel %vm1713, %v1731, %v1733
        %v1735 = vrot.slane %v1101, 2
        %v1736 = vsel %vm1713, %v1733, %v1735
        %v1737 = vrot.slane %v1102, 2
        %v1738 = vsel %vm1713, %v1735, %v1737
        %v1739 = vrot.slane %v1103, 2
        %v1740 = vsel %vm1713, %v1737, %v1739
        %v1741 = vrot.slane %v1104, 2
        %v1742 = vsel %vm1713, %v1739, %v1741
        %v1743 = vrot.slane %v1105, 2
        %v1744 = vsel %vm1713, %v1741, %v1743
        %v1745 = vrot.slane %v1106, 2
        %v1746 = vsel %vm1713, %v1743, %v1745
        %v1747 = vrot.slane %v1107, 2
        %v1748 = vsel %vm1713, %v1745, %v1747
        %v1749 = vrot.slane %v1343, 2
        %v1750 = vsel %vm1713, %v1747, %v1749
        %v1752 = vsel %vm445, %v1716, 0
        %v1755 = vsel %vm445, %v1718, 0
        %v1758 = vsel %vm445, %v1720, 0
        %v1761 = vsel %vm445, %v1722, 0
        %v1764 = vsel %vm445, %v1724, 0
        %v1767 = vsel %vm445, %v1726, 0
        %v1770 = vsel %vm445, %v1728, 0
        %v1773 = vsel %vm445, %v1730, 0
        %v1776 = vsel %vm445, %v1732, 0
        %v1779 = vsel %vm445, %v1734, 0
        %v1782 = vsel %vm445, %v1736, 0
        %v1785 = vsel %vm445, %v1738, 0
        %v1788 = vsel %vm445, %v1740, 0
        %v1791 = vsel %vm445, %v1742, 0
        %v1794 = vsel %vm445, %v1744, 0
        %v1797 = vsel %vm445, %v1746, 0
        %v1800 = vsel %vm445, %v1748, 0
        %v1803 = vsel %vm445, %v1750, 0
        %v1806 = vsel %vm500, %v1709, 0
        %1808 = vmatpush.bf16.msra.mxu0 0
        %1809 = vmatpush.bf16.msra.mxu0 0
        %1810 = vmatpush.bf16.msra.mxu0 0
        %1811 = vmatpush.bf16.msra.mxu0 0
        %1812 = vmatpush.bf16.msra.mxu0 0
        %1813 = vmatpush.bf16.msra.mxu0 0
        %1814 = vmatpush.bf16.msra.mxu0 0
        %1815 = vmatpush.bf16.msra.mxu0 %v1806
        %1816 = vmatmul.bf16.gmra.mxu0 %v1752
        %v1817 = vpop.f32.mrf.mxu0
        %v1818 = vadd.f32 0.0, %v1817
        %v1819 = vpop.f32.mrf.mxu0
        %v1820 = vadd.f32 0.0, %v1819
        %1821 = vmatmul.bf16.gmra.mxu0 %v1755
        %v1822 = vpop.f32.mrf.mxu0
        %v1823 = vadd.f32 0.0, %v1822
        %v1824 = vpop.f32.mrf.mxu0
        %v1825 = vadd.f32 0.0, %v1824
        %1826 = vmatmul.bf16.gmra.mxu0 %v1758
        %v1827 = vpop.f32.mrf.mxu0
        %v1828 = vadd.f32 0.0, %v1827
        %v1829 = vpop.f32.mrf.mxu0
        %v1830 = vadd.f32 0.0, %v1829
        %1831 = vmatmul.bf16.gmra.mxu0 %v1761
        %v1832 = vpop.f32.mrf.mxu0
        %v1833 = vadd.f32 0.0, %v1832
        %v1834 = vpop.f32.mrf.mxu0
        %v1835 = vadd.f32 0.0, %v1834
        %1836 = vmatmul.bf16.gmra.mxu0 %v1764
        %v1837 = vpop.f32.mrf.mxu0
        %v1838 = vadd.f32 0.0, %v1837
        %v1839 = vpop.f32.mrf.mxu0
        %v1840 = vadd.f32 0.0, %v1839
        %1841 = vmatmul.bf16.gmra.mxu0 %v1767
        %v1842 = vpop.f32.mrf.mxu0
        %v1843 = vadd.f32 0.0, %v1842
        %v1844 = vpop.f32.mrf.mxu0
        %v1845 = vadd.f32 0.0, %v1844
        %1846 = vmatmul.bf16.gmra.mxu0 %v1770
        %v1847 = vpop.f32.mrf.mxu0
        %v1848 = vadd.f32 0.0, %v1847
        %v1849 = vpop.f32.mrf.mxu0
        %v1850 = vadd.f32 0.0, %v1849
        %1851 = vmatmul.bf16.gmra.mxu0 %v1773
        %v1852 = vpop.f32.mrf.mxu0
        %v1853 = vadd.f32 0.0, %v1852
        %v1854 = vpop.f32.mrf.mxu0
        %v1855 = vadd.f32 0.0, %v1854
        %1856 = vmatmul.bf16.gmra.mxu0 %v1776
        %v1857 = vpop.f32.mrf.mxu0
        %v1858 = vadd.f32 0.0, %v1857
        %v1859 = vpop.f32.mrf.mxu0
        %v1860 = vadd.f32 0.0, %v1859
        %1861 = vmatmul.bf16.gmra.mxu0 %v1779
        %v1862 = vpop.f32.mrf.mxu0
        %v1863 = vadd.f32 0.0, %v1862
        %v1864 = vpop.f32.mrf.mxu0
        %v1865 = vadd.f32 0.0, %v1864
        %1866 = vmatmul.bf16.gmra.mxu0 %v1782
        %v1867 = vpop.f32.mrf.mxu0
        %v1868 = vadd.f32 0.0, %v1867
        %v1869 = vpop.f32.mrf.mxu0
        %v1870 = vadd.f32 0.0, %v1869
        %1871 = vmatmul.bf16.gmra.mxu0 %v1785
        %v1872 = vpop.f32.mrf.mxu0
        %v1873 = vadd.f32 0.0, %v1872
        %v1874 = vpop.f32.mrf.mxu0
        %v1875 = vadd.f32 0.0, %v1874
        %1876 = vmatmul.bf16.gmra.mxu0 %v1788
        %v1877 = vpop.f32.mrf.mxu0
        %v1878 = vadd.f32 0.0, %v1877
        %v1879 = vpop.f32.mrf.mxu0
        %v1880 = vadd.f32 0.0, %v1879
        %1881 = vmatmul.bf16.gmra.mxu0 %v1791
        %v1882 = vpop.f32.mrf.mxu0
        %v1883 = vadd.f32 0.0, %v1882
        %v1884 = vpop.f32.mrf.mxu0
        %v1885 = vadd.f32 0.0, %v1884
        %1886 = vmatmul.bf16.gmra.mxu0 %v1794
        %v1887 = vpop.f32.mrf.mxu0
        %v1888 = vadd.f32 0.0, %v1887
        %v1889 = vpop.f32.mrf.mxu0
        %v1890 = vadd.f32 0.0, %v1889
        %1891 = vmatmul.bf16.gmra.mxu0 %v1797
        %v1892 = vpop.f32.mrf.mxu0
        %v1893 = vadd.f32 0.0, %v1892
        %v1894 = vpop.f32.mrf.mxu0
        %v1895 = vadd.f32 0.0, %v1894
        %1896 = vmatmul.bf16.gmra.mxu0 %v1800
        %v1897 = vpop.f32.mrf.mxu0
        %v1898 = vadd.f32 0.0, %v1897
        %v1899 = vpop.f32.mrf.mxu0
        %v1900 = vadd.f32 0.0, %v1899
        %1901 = vmatmul.bf16.gmra.mxu0 %v1803
        %v1902 = vpop.f32.mrf.mxu0
        %v1903 = vadd.f32 0.0, %v1902
        %v1904 = vpop.f32.mrf.mxu0
        %v1905 = vadd.f32 0.0, %v1904
        %1906 = vdwg.mxu0
        %v1907 = vadd.f32 %v1671, %v1818
        %v1908 = vadd.f32 %v1672, %v1820
        %v1909 = vadd.f32 %v1673, %v1823
        %v1910 = vadd.f32 %v1674, %v1825
        %v1911 = vadd.f32 %v1675, %v1828
        %v1912 = vadd.f32 %v1676, %v1830
        %v1913 = vadd.f32 %v1677, %v1833
        %v1914 = vadd.f32 %v1678, %v1835
        %v1915 = vadd.f32 %v1679, %v1838
        %v1916 = vadd.f32 %v1680, %v1840
        %v1917 = vadd.f32 %v1681, %v1843
        %v1918 = vadd.f32 %v1682, %v1845
        %v1919 = vadd.f32 %v1683, %v1848
        %v1920 = vadd.f32 %v1684, %v1850
        %v1921 = vadd.f32 %v1685, %v1853
        %v1922 = vadd.f32 %v1686, %v1855
        %v1923 = vadd.f32 %v1687, %v1858
        %v1924 = vadd.f32 %v1688, %v1860
        %v1925 = vadd.f32 %v1689, %v1863
        %v1926 = vadd.f32 %v1690, %v1865
        %v1927 = vadd.f32 %v1691, %v1868
        %v1928 = vadd.f32 %v1692, %v1870
        %v1929 = vadd.f32 %v1693, %v1873
        %v1930 = vadd.f32 %v1694, %v1875
        %v1931 = vadd.f32 %v1695, %v1878
        %v1932 = vadd.f32 %v1696, %v1880
        %v1933 = vadd.f32 %v1697, %v1883
        %v1934 = vadd.f32 %v1698, %v1885
        %v1935 = vadd.f32 %v1699, %v1888
        %v1936 = vadd.f32 %v1700, %v1890
        %v1937 = vadd.f32 %v1701, %v1893
        %v1938 = vadd.f32 %v1702, %v1895
        %v1939 = vadd.f32 %v1703, %v1898
        %v1940 = vadd.f32 %v1704, %v1900
        %v1941 = vadd.f32 %v1705, %v1903
        %v1942 = vadd.f32 %v1706, %v1905
        %v1943 = vld [vmem:[%s155 + $0x10] sm:$0xc]
        %v1944 = vld [vmem:[%s155 + $0x14] sm:$0xf]
        %v1945 = vld [vmem:[%s155 + $0x18] sm:$0xf]
        %v1946 = vld [vmem:[%s155 + $0x1c] sm:$0xf]
        %v1947 = vld [vmem:[%s155 + $0x20] sm:$0xf]
        %v1948 = vld [vmem:[%s155 + $0x24] sm:$0xf]
        %v1949 = vld [vmem:[%s155 + $0x28] sm:$0xf]
        %v1950 = vld [vmem:[%s155 + $0x2c] sm:$0xf]
        %v1951 = vld [vmem:[%s155 + $0x30] sm:$0xf]
        %v1952 = vld [vmem:[%s155 + $0x34] sm:$0xf]
        %v1953 = vld [vmem:[%s155 + $0x38] sm:$0xf]
        %v1954 = vld [vmem:[%s155 + $0x3c] sm:$0xf]
        %v1955 = vld [vmem:[%s155 + $0x40] sm:$0xf]
        %v1956 = vld [vmem:[%s155 + $0x44] sm:$0xf]
        %v1957 = vld [vmem:[%s155 + $0x48] sm:$0xf]
        %v1958 = vld [vmem:[%s155 + $0x4c] sm:$0xf]
        %v1959 = vld [vmem:[%s155 + $0x50] sm:$0xf]
        %v1960 = vld [vmem:[%s155 + $0x54] sm:$0xf]
        %v1961 = vld [vmem:[%s155 + $0x58] sm:$0xf]
        %v1962 = vld [vmem:[%s155 + $0x5c] sm:$0xf]
        %v1963 = vld [vmem:[%s155 + $0x60] sm:$0xf]
        %v1964 = vld [vmem:[%s155 + $0x64] sm:$0xf]
        %v1965 = vld [vmem:[%s155 + $0x68] sm:$0xf]
        %v1966 = vld [vmem:[%s155 + $0x6c] sm:$0xf]
        %v1967 = vld [vmem:[%s155 + $0x70] sm:$0xf]
        %v1968 = vld [vmem:[%s155 + $0x74] sm:$0xf]
        %v1969 = vld [vmem:[%s155 + $0x78] sm:$0xf]
        %v1970 = vld [vmem:[%s155 + $0x7c] sm:$0xf]
        %v1971 = vld [vmem:[%s155 + $0x80] sm:$0xf]
        %v1972 = vld [vmem:[%s155 + $0x84] sm:$0xf]
        %v1973 = vld [vmem:[%s155 + $0x88] sm:$0xf]
        %v1974 = vld [vmem:[%s155 + $0x8c] sm:$0xf]
        %v1975 = vld [vmem:[%s155 + $0x90] sm:$0xf]
        %v1976 = vld [vmem:[%s155 + $0x94] sm:$0xf]
        %v1977 = vld [vmem:[%s155 + $0x98] sm:$0xf]
        %v1978 = vld [vmem:[%s155 + $0x9c] sm:$0xf]
        %v1979 = vld [vmem:[%s155 + $0xa0] sm:$0x3]
        %s1980 = scalar_lea.vmem %s1, 12
        %v1981 = vld [vmem:[%s1980] sm:$0x3]
        %v2019 = vunpack.c.l.b16 %v1943
        %v2020 = vunpack.c.l.b16 %v1944
        %v2021 = vunpack.c.l.b16 %v1945
        %v2022 = vunpack.c.l.b16 %v1946
        %v2023 = vunpack.c.l.b16 %v1947
        %v2024 = vunpack.c.l.b16 %v1948
        %v2025 = vunpack.c.l.b16 %v1949
        %v2026 = vunpack.c.l.b16 %v1950
        %v2027 = vunpack.c.l.b16 %v1951
        %v2028 = vunpack.c.l.b16 %v1952
        %v2029 = vunpack.c.l.b16 %v1953
        %v2030 = vunpack.c.l.b16 %v1954
        %v2031 = vunpack.c.l.b16 %v1955
        %v2032 = vunpack.c.l.b16 %v1956
        %v2033 = vunpack.c.l.b16 %v1957
        %v2034 = vunpack.c.l.b16 %v1958
        %v2035 = vunpack.c.l.b16 %v1959
        %v2036 = vunpack.c.l.b16 %v1960
        %v2037 = vunpack.c.l.b16 %v1961
        %v2038 = vunpack.c.l.b16 %v1962
        %v2039 = vunpack.c.l.b16 %v1963
        %v2040 = vunpack.c.l.b16 %v1964
        %v2041 = vunpack.c.l.b16 %v1965
        %v2042 = vunpack.c.l.b16 %v1966
        %v2043 = vunpack.c.l.b16 %v1967
        %v2044 = vunpack.c.l.b16 %v1968
        %v2045 = vunpack.c.l.b16 %v1969
        %v2046 = vunpack.c.l.b16 %v1970
        %v2047 = vunpack.c.l.b16 %v1971
        %v2048 = vunpack.c.l.b16 %v1972
        %v2049 = vunpack.c.l.b16 %v1973
        %v2050 = vunpack.c.l.b16 %v1974
        %v2051 = vunpack.c.l.b16 %v1975
        %v2052 = vunpack.c.l.b16 %v1976
        %v2053 = vunpack.c.l.b16 %v1977
        %v2054 = vunpack.c.l.b16 %v1978
        %v2055 = vunpack.c.l.b16 %v1979
        %v2056 = vpack.c.b16 %v2020, %v2019
        %v2057 = vpack.c.b16 %v2022, %v2021
        %v2058 = vpack.c.b16 %v2024, %v2023
        %v2059 = vpack.c.b16 %v2026, %v2025
        %v2060 = vpack.c.b16 %v2028, %v2027
        %v2061 = vpack.c.b16 %v2030, %v2029
        %v2062 = vpack.c.b16 %v2032, %v2031
        %v2063 = vpack.c.b16 %v2034, %v2033
        %v2064 = vpack.c.b16 %v2036, %v2035
        %v2065 = vpack.c.b16 %v2038, %v2037
        %v2066 = vpack.c.b16 %v2040, %v2039
        %v2067 = vpack.c.b16 %v2042, %v2041
        %v2068 = vpack.c.b16 %v2044, %v2043
        %v2069 = vpack.c.b16 %v2046, %v2045
        %v2070 = vpack.c.b16 %v2048, %v2047
        %v2071 = vpack.c.b16 %v2050, %v2049
        %v2072 = vpack.c.b16 %v2052, %v2051
        %v2073 = vpack.c.b16 %v2054, %v2053
        %v2074 = vpack.c.b16 %v2055, %v2055
        %v2075 = vrot.slane %v2056, 2
        %v2076 = vrot.slane %v2057, 2
        %v2077 = vsel %vm1713, %v2075, %v2076
        %v2078 = vrot.slane %v2058, 2
        %v2079 = vsel %vm1713, %v2076, %v2078
        %v2080 = vrot.slane %v2059, 2
        %v2081 = vsel %vm1713, %v2078, %v2080
        %v2082 = vrot.slane %v2060, 2
        %v2083 = vsel %vm1713, %v2080, %v2082
        %v2084 = vrot.slane %v2061, 2
        %v2085 = vsel %vm1713, %v2082, %v2084
        %v2086 = vrot.slane %v2062, 2
        %v2087 = vsel %vm1713, %v2084, %v2086
        %v2088 = vrot.slane %v2063, 2
        %v2089 = vsel %vm1713, %v2086, %v2088
        %v2090 = vrot.slane %v2064, 2
        %v2091 = vsel %vm1713, %v2088, %v2090
        %v2092 = vrot.slane %v2065, 2
        %v2093 = vsel %vm1713, %v2090, %v2092
        %v2094 = vrot.slane %v2066, 2
        %v2095 = vsel %vm1713, %v2092, %v2094
        %v2096 = vrot.slane %v2067, 2
        %v2097 = vsel %vm1713, %v2094, %v2096
        %v2098 = vrot.slane %v2068, 2
        %v2099 = vsel %vm1713, %v2096, %v2098
        %v2100 = vrot.slane %v2069, 2
        %v2101 = vsel %vm1713, %v2098, %v2100
        %v2102 = vrot.slane %v2070, 2
        %v2103 = vsel %vm1713, %v2100, %v2102
        %v2104 = vrot.slane %v2071, 2
        %v2105 = vsel %vm1713, %v2102, %v2104
        %v2106 = vrot.slane %v2072, 2
        %v2107 = vsel %vm1713, %v2104, %v2106
        %v2108 = vrot.slane %v2073, 2
        %v2109 = vsel %vm1713, %v2106, %v2108
        %v2110 = vrot.slane %v2074, 2
        %v2111 = vsel %vm1713, %v2108, %v2110
        %v2113 = vsel %vm445, %v2077, 0
        %v2116 = vsel %vm445, %v2079, 0
        %v2119 = vsel %vm445, %v2081, 0
        %v2122 = vsel %vm445, %v2083, 0
        %v2125 = vsel %vm445, %v2085, 0
        %v2128 = vsel %vm445, %v2087, 0
        %v2131 = vsel %vm445, %v2089, 0
        %v2134 = vsel %vm445, %v2091, 0
        %v2137 = vsel %vm445, %v2093, 0
        %v2140 = vsel %vm445, %v2095, 0
        %v2143 = vsel %vm445, %v2097, 0
        %v2146 = vsel %vm445, %v2099, 0
        %v2149 = vsel %vm445, %v2101, 0
        %v2152 = vsel %vm445, %v2103, 0
        %v2155 = vsel %vm445, %v2105, 0
        %v2158 = vsel %vm445, %v2107, 0
        %v2161 = vsel %vm445, %v2109, 0
        %v2164 = vsel %vm445, %v2111, 0
        %v2167 = vsel %vm500, %v1981, 0
        %2169 = vmatpush.bf16.msra.mxu0 0
        %2170 = vmatpush.bf16.msra.mxu0 0
        %2171 = vmatpush.bf16.msra.mxu0 0
        %2172 = vmatpush.bf16.msra.mxu0 0
        %2173 = vmatpush.bf16.msra.mxu0 0
        %2174 = vmatpush.bf16.msra.mxu0 0
        %2175 = vmatpush.bf16.msra.mxu0 0
        %2176 = vmatpush.bf16.msra.mxu0 %v2167
        %2177 = vmatmul.bf16.gmra.mxu0 %v2113
        %v2178 = vpop.f32.mrf.mxu0
        %v2179 = vadd.f32 0.0, %v2178
        %v2180 = vpop.f32.mrf.mxu0
        %v2181 = vadd.f32 0.0, %v2180
        %2182 = vmatmul.bf16.gmra.mxu0 %v2116
        %v2183 = vpop.f32.mrf.mxu0
        %v2184 = vadd.f32 0.0, %v2183
        %v2185 = vpop.f32.mrf.mxu0
        %v2186 = vadd.f32 0.0, %v2185
        %2187 = vmatmul.bf16.gmra.mxu0 %v2119
        %v2188 = vpop.f32.mrf.mxu0
        %v2189 = vadd.f32 0.0, %v2188
        %v2190 = vpop.f32.mrf.mxu0
        %v2191 = vadd.f32 0.0, %v2190
        %2192 = vmatmul.bf16.gmra.mxu0 %v2122
        %v2193 = vpop.f32.mrf.mxu0
        %v2194 = vadd.f32 0.0, %v2193
        %v2195 = vpop.f32.mrf.mxu0
        %v2196 = vadd.f32 0.0, %v2195
        %2197 = vmatmul.bf16.gmra.mxu0 %v2125
        %v2198 = vpop.f32.mrf.mxu0
        %v2199 = vadd.f32 0.0, %v2198
        %v2200 = vpop.f32.mrf.mxu0
        %v2201 = vadd.f32 0.0, %v2200
        %2202 = vmatmul.bf16.gmra.mxu0 %v2128
        %v2203 = vpop.f32.mrf.mxu0
        %v2204 = vadd.f32 0.0, %v2203
        %v2205 = vpop.f32.mrf.mxu0
        %v2206 = vadd.f32 0.0, %v2205
        %2207 = vmatmul.bf16.gmra.mxu0 %v2131
        %v2208 = vpop.f32.mrf.mxu0
        %v2209 = vadd.f32 0.0, %v2208
        %v2210 = vpop.f32.mrf.mxu0
        %v2211 = vadd.f32 0.0, %v2210
        %2212 = vmatmul.bf16.gmra.mxu0 %v2134
        %v2213 = vpop.f32.mrf.mxu0
        %v2214 = vadd.f32 0.0, %v2213
        %v2215 = vpop.f32.mrf.mxu0
        %v2216 = vadd.f32 0.0, %v2215
        %2217 = vmatmul.bf16.gmra.mxu0 %v2137
        %v2218 = vpop.f32.mrf.mxu0
        %v2219 = vadd.f32 0.0, %v2218
        %v2220 = vpop.f32.mrf.mxu0
        %v2221 = vadd.f32 0.0, %v2220
        %2222 = vmatmul.bf16.gmra.mxu0 %v2140
        %v2223 = vpop.f32.mrf.mxu0
        %v2224 = vadd.f32 0.0, %v2223
        %v2225 = vpop.f32.mrf.mxu0
        %v2226 = vadd.f32 0.0, %v2225
        %2227 = vmatmul.bf16.gmra.mxu0 %v2143
        %v2228 = vpop.f32.mrf.mxu0
        %v2229 = vadd.f32 0.0, %v2228
        %v2230 = vpop.f32.mrf.mxu0
        %v2231 = vadd.f32 0.0, %v2230
        %2232 = vmatmul.bf16.gmra.mxu0 %v2146
        %v2233 = vpop.f32.mrf.mxu0
        %v2234 = vadd.f32 0.0, %v2233
        %v2235 = vpop.f32.mrf.mxu0
        %v2236 = vadd.f32 0.0, %v2235
        %2237 = vmatmul.bf16.gmra.mxu0 %v2149
        %v2238 = vpop.f32.mrf.mxu0
        %v2239 = vadd.f32 0.0, %v2238
        %v2240 = vpop.f32.mrf.mxu0
        %v2241 = vadd.f32 0.0, %v2240
        %2242 = vmatmul.bf16.gmra.mxu0 %v2152
        %v2243 = vpop.f32.mrf.mxu0
        %v2244 = vadd.f32 0.0, %v2243
        %v2245 = vpop.f32.mrf.mxu0
        %v2246 = vadd.f32 0.0, %v2245
        %2247 = vmatmul.bf16.gmra.mxu0 %v2155
        %v2248 = vpop.f32.mrf.mxu0
        %v2249 = vadd.f32 0.0, %v2248
        %v2250 = vpop.f32.mrf.mxu0
        %v2251 = vadd.f32 0.0, %v2250
        %2252 = vmatmul.bf16.gmra.mxu0 %v2158
        %v2253 = vpop.f32.mrf.mxu0
        %v2254 = vadd.f32 0.0, %v2253
        %v2255 = vpop.f32.mrf.mxu0
        %v2256 = vadd.f32 0.0, %v2255
        %2257 = vmatmul.bf16.gmra.mxu0 %v2161
        %v2258 = vpop.f32.mrf.mxu0
        %v2259 = vadd.f32 0.0, %v2258
        %v2260 = vpop.f32.mrf.mxu0
        %v2261 = vadd.f32 0.0, %v2260
        %2262 = vmatmul.bf16.gmra.mxu0 %v2164
        %v2263 = vpop.f32.mrf.mxu0
        %v2264 = vadd.f32 0.0, %v2263
        %v2265 = vpop.f32.mrf.mxu0
        %v2266 = vadd.f32 0.0, %v2265
        %2267 = vdwg.mxu0
        %v2268 = vadd.f32 %v1907, %v2179
        %v2269 = vadd.f32 %v1908, %v2181
        %v2270 = vadd.f32 %v1909, %v2184
        %v2271 = vadd.f32 %v1910, %v2186
        %v2272 = vadd.f32 %v1911, %v2189
        %v2273 = vadd.f32 %v1912, %v2191
        %v2274 = vadd.f32 %v1913, %v2194
        %v2275 = vadd.f32 %v1914, %v2196
        %v2276 = vadd.f32 %v1915, %v2199
        %v2277 = vadd.f32 %v1916, %v2201
        %v2278 = vadd.f32 %v1917, %v2204
        %v2279 = vadd.f32 %v1918, %v2206
        %v2280 = vadd.f32 %v1919, %v2209
        %v2281 = vadd.f32 %v1920, %v2211
        %v2282 = vadd.f32 %v1921, %v2214
        %v2283 = vadd.f32 %v1922, %v2216
        %v2284 = vadd.f32 %v1923, %v2219
        %v2285 = vadd.f32 %v1924, %v2221
        %v2286 = vadd.f32 %v1925, %v2224
        %v2287 = vadd.f32 %v1926, %v2226
        %v2288 = vadd.f32 %v1927, %v2229
        %v2289 = vadd.f32 %v1928, %v2231
        %v2290 = vadd.f32 %v1929, %v2234
        %v2291 = vadd.f32 %v1930, %v2236
        %v2292 = vadd.f32 %v1931, %v2239
        %v2293 = vadd.f32 %v1932, %v2241
        %v2294 = vadd.f32 %v1933, %v2244
        %v2295 = vadd.f32 %v1934, %v2246
        %v2296 = vadd.f32 %v1935, %v2249
        %v2297 = vadd.f32 %v1936, %v2251
        %v2298 = vadd.f32 %v1937, %v2254
        %v2299 = vadd.f32 %v1938, %v2256
        %v2300 = vadd.f32 %v1939, %v2259
        %v2301 = vadd.f32 %v1940, %v2261
        %v2302 = vadd.f32 %v1941, %v2264
        %v2303 = vadd.f32 %v1942, %v2266
        %v2304 = vld [vmem:[%s155 + $0xa0] sm:$0x7]
        %s2305 = scalar_lea.vmem %s1, 14
        %v2306 = vld [vmem:[%s2305] sm:$0x3]
        %v2308 = vunpack.c.l.b16 %v2304
        %v2309 = vpack.c.b16 %v2308, %v2308
        %vm2310 = vsmask.f32 5376
        %v2312 = vshrl.u32 %v2056, 16
        %v2314 = vrot.slane %v2312, 2
        %v2315 = vshll.u32 %v2056, 16
        %v2317 = vrot.slane %v2315, 3
        %v2318 = vor.u32 %v2314, %v2317
        %v2320 = vshrl.u32 %v2057, 16
        %v2322 = vrot.slane %v2320, 2
        %v2323 = vshll.u32 %v2057, 16
        %v2325 = vrot.slane %v2323, 3
        %v2326 = vor.u32 %v2322, %v2325
        %v2327 = vsel %vm2310, %v2318, %v2326
        %v2329 = vshrl.u32 %v2058, 16
        %v2331 = vrot.slane %v2329, 2
        %v2332 = vshll.u32 %v2058, 16
        %v2334 = vrot.slane %v2332, 3
        %v2335 = vor.u32 %v2331, %v2334
        %v2336 = vsel %vm2310, %v2326, %v2335
        %v2338 = vshrl.u32 %v2059, 16
        %v2340 = vrot.slane %v2338, 2
        %v2341 = vshll.u32 %v2059, 16
        %v2343 = vrot.slane %v2341, 3
        %v2344 = vor.u32 %v2340, %v2343
        %v2345 = vsel %vm2310, %v2335, %v2344
        %v2347 = vshrl.u32 %v2060, 16
        %v2349 = vrot.slane %v2347, 2
        %v2350 = vshll.u32 %v2060, 16
        %v2352 = vrot.slane %v2350, 3
        %v2353 = vor.u32 %v2349, %v2352
        %v2354 = vsel %vm2310, %v2344, %v2353
        %v2356 = vshrl.u32 %v2061, 16
        %v2358 = vrot.slane %v2356, 2
        %v2359 = vshll.u32 %v2061, 16
        %v2361 = vrot.slane %v2359, 3
        %v2362 = vor.u32 %v2358, %v2361
        %v2363 = vsel %vm2310, %v2353, %v2362
        %v2365 = vshrl.u32 %v2062, 16
        %v2367 = vrot.slane %v2365, 2
        %v2368 = vshll.u32 %v2062, 16
        %v2370 = vrot.slane %v2368, 3
        %v2371 = vor.u32 %v2367, %v2370
        %v2372 = vsel %vm2310, %v2362, %v2371
        %v2374 = vshrl.u32 %v2063, 16
        %v2376 = vrot.slane %v2374, 2
        %v2377 = vshll.u32 %v2063, 16
        %v2379 = vrot.slane %v2377, 3
        %v2380 = vor.u32 %v2376, %v2379
        %v2381 = vsel %vm2310, %v2371, %v2380
        %v2383 = vshrl.u32 %v2064, 16
        %v2385 = vrot.slane %v2383, 2
        %v2386 = vshll.u32 %v2064, 16
        %v2388 = vrot.slane %v2386, 3
        %v2389 = vor.u32 %v2385, %v2388
        %v2390 = vsel %vm2310, %v2380, %v2389
        %v2392 = vshrl.u32 %v2065, 16
        %v2394 = vrot.slane %v2392, 2
        %v2395 = vshll.u32 %v2065, 16
        %v2397 = vrot.slane %v2395, 3
        %v2398 = vor.u32 %v2394, %v2397
        %v2399 = vsel %vm2310, %v2389, %v2398
        %v2401 = vshrl.u32 %v2066, 16
        %v2403 = vrot.slane %v2401, 2
        %v2404 = vshll.u32 %v2066, 16
        %v2406 = vrot.slane %v2404, 3
        %v2407 = vor.u32 %v2403, %v2406
        %v2408 = vsel %vm2310, %v2398, %v2407
        %v2410 = vshrl.u32 %v2067, 16
        %v2412 = vrot.slane %v2410, 2
        %v2413 = vshll.u32 %v2067, 16
        %v2415 = vrot.slane %v2413, 3
        %v2416 = vor.u32 %v2412, %v2415
        %v2417 = vsel %vm2310, %v2407, %v2416
        %v2419 = vshrl.u32 %v2068, 16
        %v2421 = vrot.slane %v2419, 2
        %v2422 = vshll.u32 %v2068, 16
        %v2424 = vrot.slane %v2422, 3
        %v2425 = vor.u32 %v2421, %v2424
        %v2426 = vsel %vm2310, %v2416, %v2425
        %v2428 = vshrl.u32 %v2069, 16
        %v2430 = vrot.slane %v2428, 2
        %v2431 = vshll.u32 %v2069, 16
        %v2433 = vrot.slane %v2431, 3
        %v2434 = vor.u32 %v2430, %v2433
        %v2435 = vsel %vm2310, %v2425, %v2434
        %v2437 = vshrl.u32 %v2070, 16
        %v2439 = vrot.slane %v2437, 2
        %v2440 = vshll.u32 %v2070, 16
        %v2442 = vrot.slane %v2440, 3
        %v2443 = vor.u32 %v2439, %v2442
        %v2444 = vsel %vm2310, %v2434, %v2443
        %v2446 = vshrl.u32 %v2071, 16
        %v2448 = vrot.slane %v2446, 2
        %v2449 = vshll.u32 %v2071, 16
        %v2451 = vrot.slane %v2449, 3
        %v2452 = vor.u32 %v2448, %v2451
        %v2453 = vsel %vm2310, %v2443, %v2452
        %v2455 = vshrl.u32 %v2072, 16
        %v2457 = vrot.slane %v2455, 2
        %v2458 = vshll.u32 %v2072, 16
        %v2460 = vrot.slane %v2458, 3
        %v2461 = vor.u32 %v2457, %v2460
        %v2462 = vsel %vm2310, %v2452, %v2461
        %v2464 = vshrl.u32 %v2073, 16
        %v2466 = vrot.slane %v2464, 2
        %v2467 = vshll.u32 %v2073, 16
        %v2469 = vrot.slane %v2467, 3
        %v2470 = vor.u32 %v2466, %v2469
        %v2471 = vsel %vm2310, %v2461, %v2470
        %v2473 = vshrl.u32 %v2309, 16
        %v2475 = vrot.slane %v2473, 2
        %v2476 = vshll.u32 %v2309, 16
        %v2478 = vrot.slane %v2476, 3
        %v2479 = vor.u32 %v2475, %v2478
        %v2480 = vsel %vm2310, %v2470, %v2479
        %v2482 = vsel %vm445, %v2327, 0
        %v2485 = vsel %vm445, %v2336, 0
        %v2488 = vsel %vm445, %v2345, 0
        %v2491 = vsel %vm445, %v2354, 0
        %v2494 = vsel %vm445, %v2363, 0
        %v2497 = vsel %vm445, %v2372, 0
        %v2500 = vsel %vm445, %v2381, 0
        %v2503 = vsel %vm445, %v2390, 0
        %v2506 = vsel %vm445, %v2399, 0
        %v2509 = vsel %vm445, %v2408, 0
        %v2512 = vsel %vm445, %v2417, 0
        %v2515 = vsel %vm445, %v2426, 0
        %v2518 = vsel %vm445, %v2435, 0
        %v2521 = vsel %vm445, %v2444, 0
        %v2524 = vsel %vm445, %v2453, 0
        %v2527 = vsel %vm445, %v2462, 0
        %v2530 = vsel %vm445, %v2471, 0
        %v2533 = vsel %vm445, %v2480, 0
        %v2536 = vsel %vm500, %v2306, 0
        %2538 = vmatpush.bf16.msra.mxu0 0
        %2539 = vmatpush.bf16.msra.mxu0 0
        %2540 = vmatpush.bf16.msra.mxu0 0
        %2541 = vmatpush.bf16.msra.mxu0 0
        %2542 = vmatpush.bf16.msra.mxu0 0
        %2543 = vmatpush.bf16.msra.mxu0 0
        %2544 = vmatpush.bf16.msra.mxu0 0
        %2545 = vmatpush.bf16.msra.mxu0 %v2536
        %2546 = vmatmul.bf16.gmra.mxu0 %v2482
        %v2547 = vpop.f32.mrf.mxu0
        %v2548 = vadd.f32 0.0, %v2547
        %v2549 = vpop.f32.mrf.mxu0
        %v2550 = vadd.f32 0.0, %v2549
        %2551 = vmatmul.bf16.gmra.mxu0 %v2485
        %v2552 = vpop.f32.mrf.mxu0
        %v2553 = vadd.f32 0.0, %v2552
        %v2554 = vpop.f32.mrf.mxu0
        %v2555 = vadd.f32 0.0, %v2554
        %2556 = vmatmul.bf16.gmra.mxu0 %v2488
        %v2557 = vpop.f32.mrf.mxu0
        %v2558 = vadd.f32 0.0, %v2557
        %v2559 = vpop.f32.mrf.mxu0
        %v2560 = vadd.f32 0.0, %v2559
        %2561 = vmatmul.bf16.gmra.mxu0 %v2491
        %v2562 = vpop.f32.mrf.mxu0
        %v2563 = vadd.f32 0.0, %v2562
        %v2564 = vpop.f32.mrf.mxu0
        %v2565 = vadd.f32 0.0, %v2564
        %2566 = vmatmul.bf16.gmra.mxu0 %v2494
        %v2567 = vpop.f32.mrf.mxu0
        %v2568 = vadd.f32 0.0, %v2567
        %v2569 = vpop.f32.mrf.mxu0
        %v2570 = vadd.f32 0.0, %v2569
        %2571 = vmatmul.bf16.gmra.mxu0 %v2497
        %v2572 = vpop.f32.mrf.mxu0
        %v2573 = vadd.f32 0.0, %v2572
        %v2574 = vpop.f32.mrf.mxu0
        %v2575 = vadd.f32 0.0, %v2574
        %2576 = vmatmul.bf16.gmra.mxu0 %v2500
        %v2577 = vpop.f32.mrf.mxu0
        %v2578 = vadd.f32 0.0, %v2577
        %v2579 = vpop.f32.mrf.mxu0
        %v2580 = vadd.f32 0.0, %v2579
        %2581 = vmatmul.bf16.gmra.mxu0 %v2503
        %v2582 = vpop.f32.mrf.mxu0
        %v2583 = vadd.f32 0.0, %v2582
        %v2584 = vpop.f32.mrf.mxu0
        %v2585 = vadd.f32 0.0, %v2584
        %2586 = vmatmul.bf16.gmra.mxu0 %v2506
        %v2587 = vpop.f32.mrf.mxu0
        %v2588 = vadd.f32 0.0, %v2587
        %v2589 = vpop.f32.mrf.mxu0
        %v2590 = vadd.f32 0.0, %v2589
        %2591 = vmatmul.bf16.gmra.mxu0 %v2509
        %v2592 = vpop.f32.mrf.mxu0
        %v2593 = vadd.f32 0.0, %v2592
        %v2594 = vpop.f32.mrf.mxu0
        %v2595 = vadd.f32 0.0, %v2594
        %2596 = vmatmul.bf16.gmra.mxu0 %v2512
        %v2597 = vpop.f32.mrf.mxu0
        %v2598 = vadd.f32 0.0, %v2597
        %v2599 = vpop.f32.mrf.mxu0
        %v2600 = vadd.f32 0.0, %v2599
        %2601 = vmatmul.bf16.gmra.mxu0 %v2515
        %v2602 = vpop.f32.mrf.mxu0
        %v2603 = vadd.f32 0.0, %v2602
        %v2604 = vpop.f32.mrf.mxu0
        %v2605 = vadd.f32 0.0, %v2604
        %2606 = vmatmul.bf16.gmra.mxu0 %v2518
        %v2607 = vpop.f32.mrf.mxu0
        %v2608 = vadd.f32 0.0, %v2607
        %v2609 = vpop.f32.mrf.mxu0
        %v2610 = vadd.f32 0.0, %v2609
        %2611 = vmatmul.bf16.gmra.mxu0 %v2521
        %v2612 = vpop.f32.mrf.mxu0
        %v2613 = vadd.f32 0.0, %v2612
        %v2614 = vpop.f32.mrf.mxu0
        %v2615 = vadd.f32 0.0, %v2614
        %2616 = vmatmul.bf16.gmra.mxu0 %v2524
        %v2617 = vpop.f32.mrf.mxu0
        %v2618 = vadd.f32 0.0, %v2617
        %v2619 = vpop.f32.mrf.mxu0
        %v2620 = vadd.f32 0.0, %v2619
        %2621 = vmatmul.bf16.gmra.mxu0 %v2527
        %v2622 = vpop.f32.mrf.mxu0
        %v2623 = vadd.f32 0.0, %v2622
        %v2624 = vpop.f32.mrf.mxu0
        %v2625 = vadd.f32 0.0, %v2624
        %2626 = vmatmul.bf16.gmra.mxu0 %v2530
        %v2627 = vpop.f32.mrf.mxu0
        %v2628 = vadd.f32 0.0, %v2627
        %v2629 = vpop.f32.mrf.mxu0
        %v2630 = vadd.f32 0.0, %v2629
        %2631 = vmatmul.bf16.gmra.mxu0 %v2533
        %v2632 = vpop.f32.mrf.mxu0
        %v2633 = vadd.f32 0.0, %v2632
        %v2634 = vpop.f32.mrf.mxu0
        %v2635 = vadd.f32 0.0, %v2634
        %2636 = vdwg.mxu0
        %v2637 = vadd.f32 %v2268, %v2548
        %v2638 = vadd.f32 %v2269, %v2550
        %v2639 = vadd.f32 %v2270, %v2553
        %v2640 = vadd.f32 %v2271, %v2555
        %v2641 = vadd.f32 %v2272, %v2558
        %v2642 = vadd.f32 %v2273, %v2560
        %v2643 = vadd.f32 %v2274, %v2563
        %v2644 = vadd.f32 %v2275, %v2565
        %v2645 = vadd.f32 %v2276, %v2568
        %v2646 = vadd.f32 %v2277, %v2570
        %v2647 = vadd.f32 %v2278, %v2573
        %v2648 = vadd.f32 %v2279, %v2575
        %v2649 = vadd.f32 %v2280, %v2578
        %v2650 = vadd.f32 %v2281, %v2580
        %v2651 = vadd.f32 %v2282, %v2583
        %v2652 = vadd.f32 %v2283, %v2585
        %v2653 = vadd.f32 %v2284, %v2588
        %v2654 = vadd.f32 %v2285, %v2590
        %v2655 = vadd.f32 %v2286, %v2593
        %v2656 = vadd.f32 %v2287, %v2595
        %v2657 = vadd.f32 %v2288, %v2598
        %v2658 = vadd.f32 %v2289, %v2600
        %v2659 = vadd.f32 %v2290, %v2603
        %v2660 = vadd.f32 %v2291, %v2605
        %v2661 = vadd.f32 %v2292, %v2608
        %v2662 = vadd.f32 %v2293, %v2610
        %v2663 = vadd.f32 %v2294, %v2613
        %v2664 = vadd.f32 %v2295, %v2615
        %v2665 = vadd.f32 %v2296, %v2618
        %v2666 = vadd.f32 %v2297, %v2620
        %v2667 = vadd.f32 %v2298, %v2623
        %v2668 = vadd.f32 %v2299, %v2625
        %v2669 = vadd.f32 %v2300, %v2628
        %v2670 = vadd.f32 %v2301, %v2630
        %v2671 = vadd.f32 %v2302, %v2633
        %v2672 = vadd.f32 %v2303, %v2635
        %v2673 = vld [vmem:[%s155 + $0x10] sm:$0x8]
        %s2674 = scalar_lea.vmem %s1, 16
        %v2675 = vld [vmem:[%s2674] sm:$0x3]
        %v2677 = vunpack.c.l.b16 %v2673
        %v2678 = vpack.c.b16 %v2020, %v2677
        %vm2679 = vcmask 1044480
        %v2680 = vrot.slane %v2678, 3
        %v2681 = vrot.slane %v2057, 3
        %v2682 = vsel %vm2679, %v2680, %v2681
        %v2683 = vrot.slane %v2058, 3
        %v2684 = vsel %vm2679, %v2681, %v2683
        %v2685 = vrot.slane %v2059, 3
        %v2686 = vsel %vm2679, %v2683, %v2685
        %v2687 = vrot.slane %v2060, 3
        %v2688 = vsel %vm2679, %v2685, %v2687
        %v2689 = vrot.slane %v2061, 3
        %v2690 = vsel %vm2679, %v2687, %v2689
        %v2691 = vrot.slane %v2062, 3
        %v2692 = vsel %vm2679, %v2689, %v2691
        %v2693 = vrot.slane %v2063, 3
        %v2694 = vsel %vm2679, %v2691, %v2693
        %v2695 = vrot.slane %v2064, 3
        %v2696 = vsel %vm2679, %v2693, %v2695
        %v2697 = vrot.slane %v2065, 3
        %v2698 = vsel %vm2679, %v2695, %v2697
        %v2699 = vrot.slane %v2066, 3
        %v2700 = vsel %vm2679, %v2697, %v2699
        %v2701 = vrot.slane %v2067, 3
        %v2702 = vsel %vm2679, %v2699, %v2701
        %v2703 = vrot.slane %v2068, 3
        %v2704 = vsel %vm2679, %v2701, %v2703
        %v2705 = vrot.slane %v2069, 3
        %v2706 = vsel %vm2679, %v2703, %v2705
        %v2707 = vrot.slane %v2070, 3
        %v2708 = vsel %vm2679, %v2705, %v2707
        %v2709 = vrot.slane %v2071, 3
        %v2710 = vsel %vm2679, %v2707, %v2709
        %v2711 = vrot.slane %v2072, 3
        %v2712 = vsel %vm2679, %v2709, %v2711
        %v2713 = vrot.slane %v2073, 3
        %v2714 = vsel %vm2679, %v2711, %v2713
        %v2715 = vrot.slane %v2309, 3
        %v2716 = vsel %vm2679, %v2713, %v2715
        %v2718 = vsel %vm445, %v2682, 0
        %v2721 = vsel %vm445, %v2684, 0
        %v2724 = vsel %vm445, %v2686, 0
        %v2727 = vsel %vm445, %v2688, 0
        %v2730 = vsel %vm445, %v2690, 0
        %v2733 = vsel %vm445, %v2692, 0
        %v2736 = vsel %vm445, %v2694, 0
        %v2739 = vsel %vm445, %v2696, 0
        %v2742 = vsel %vm445, %v2698, 0
        %v2745 = vsel %vm445, %v2700, 0
        %v2748 = vsel %vm445, %v2702, 0
        %v2751 = vsel %vm445, %v2704, 0
        %v2754 = vsel %vm445, %v2706, 0
        %v2757 = vsel %vm445, %v2708, 0
        %v2760 = vsel %vm445, %v2710, 0
        %v2763 = vsel %vm445, %v2712, 0
        %v2766 = vsel %vm445, %v2714, 0
        %v2769 = vsel %vm445, %v2716, 0
        %v2772 = vsel %vm500, %v2675, 0
        %2774 = vmatpush.bf16.msra.mxu0 0
        %2775 = vmatpush.bf16.msra.mxu0 0
        %2776 = vmatpush.bf16.msra.mxu0 0
        %2777 = vmatpush.bf16.msra.mxu0 0
        %2778 = vmatpush.bf16.msra.mxu0 0
        %2779 = vmatpush.bf16.msra.mxu0 0
        %2780 = vmatpush.bf16.msra.mxu0 0
        %2781 = vmatpush.bf16.msra.mxu0 %v2772
        %2782 = vmatmul.bf16.gmra.mxu0 %v2718
        %v2783 = vpop.f32.mrf.mxu0
        %v2784 = vadd.f32 0.0, %v2783
        %v2785 = vpop.f32.mrf.mxu0
        %v2786 = vadd.f32 0.0, %v2785
        %2787 = vmatmul.bf16.gmra.mxu0 %v2721
        %v2788 = vpop.f32.mrf.mxu0
        %v2789 = vadd.f32 0.0, %v2788
        %v2790 = vpop.f32.mrf.mxu0
        %v2791 = vadd.f32 0.0, %v2790
        %2792 = vmatmul.bf16.gmra.mxu0 %v2724
        %v2793 = vpop.f32.mrf.mxu0
        %v2794 = vadd.f32 0.0, %v2793
        %v2795 = vpop.f32.mrf.mxu0
        %v2796 = vadd.f32 0.0, %v2795
        %2797 = vmatmul.bf16.gmra.mxu0 %v2727
        %v2798 = vpop.f32.mrf.mxu0
        %v2799 = vadd.f32 0.0, %v2798
        %v2800 = vpop.f32.mrf.mxu0
        %v2801 = vadd.f32 0.0, %v2800
        %2802 = vmatmul.bf16.gmra.mxu0 %v2730
        %v2803 = vpop.f32.mrf.mxu0
        %v2804 = vadd.f32 0.0, %v2803
        %v2805 = vpop.f32.mrf.mxu0
        %v2806 = vadd.f32 0.0, %v2805
        %2807 = vmatmul.bf16.gmra.mxu0 %v2733
        %v2808 = vpop.f32.mrf.mxu0
        %v2809 = vadd.f32 0.0, %v2808
        %v2810 = vpop.f32.mrf.mxu0
        %v2811 = vadd.f32 0.0, %v2810
        %2812 = vmatmul.bf16.gmra.mxu0 %v2736
        %v2813 = vpop.f32.mrf.mxu0
        %v2814 = vadd.f32 0.0, %v2813
        %v2815 = vpop.f32.mrf.mxu0
        %v2816 = vadd.f32 0.0, %v2815
        %2817 = vmatmul.bf16.gmra.mxu0 %v2739
        %v2818 = vpop.f32.mrf.mxu0
        %v2819 = vadd.f32 0.0, %v2818
        %v2820 = vpop.f32.mrf.mxu0
        %v2821 = vadd.f32 0.0, %v2820
        %2822 = vmatmul.bf16.gmra.mxu0 %v2742
        %v2823 = vpop.f32.mrf.mxu0
        %v2824 = vadd.f32 0.0, %v2823
        %v2825 = vpop.f32.mrf.mxu0
        %v2826 = vadd.f32 0.0, %v2825
        %2827 = vmatmul.bf16.gmra.mxu0 %v2745
        %v2828 = vpop.f32.mrf.mxu0
        %v2829 = vadd.f32 0.0, %v2828
        %v2830 = vpop.f32.mrf.mxu0
        %v2831 = vadd.f32 0.0, %v2830
        %2832 = vmatmul.bf16.gmra.mxu0 %v2748
        %v2833 = vpop.f32.mrf.mxu0
        %v2834 = vadd.f32 0.0, %v2833
        %v2835 = vpop.f32.mrf.mxu0
        %v2836 = vadd.f32 0.0, %v2835
        %2837 = vmatmul.bf16.gmra.mxu0 %v2751
        %v2838 = vpop.f32.mrf.mxu0
        %v2839 = vadd.f32 0.0, %v2838
        %v2840 = vpop.f32.mrf.mxu0
        %v2841 = vadd.f32 0.0, %v2840
        %2842 = vmatmul.bf16.gmra.mxu0 %v2754
        %v2843 = vpop.f32.mrf.mxu0
        %v2844 = vadd.f32 0.0, %v2843
        %v2845 = vpop.f32.mrf.mxu0
        %v2846 = vadd.f32 0.0, %v2845
        %2847 = vmatmul.bf16.gmra.mxu0 %v2757
        %v2848 = vpop.f32.mrf.mxu0
        %v2849 = vadd.f32 0.0, %v2848
        %v2850 = vpop.f32.mrf.mxu0
        %v2851 = vadd.f32 0.0, %v2850
        %2852 = vmatmul.bf16.gmra.mxu0 %v2760
        %v2853 = vpop.f32.mrf.mxu0
        %v2854 = vadd.f32 0.0, %v2853
        %v2855 = vpop.f32.mrf.mxu0
        %v2856 = vadd.f32 0.0, %v2855
        %2857 = vmatmul.bf16.gmra.mxu0 %v2763
        %v2858 = vpop.f32.mrf.mxu0
        %v2859 = vadd.f32 0.0, %v2858
        %v2860 = vpop.f32.mrf.mxu0
        %v2861 = vadd.f32 0.0, %v2860
        %2862 = vmatmul.bf16.gmra.mxu0 %v2766
        %v2863 = vpop.f32.mrf.mxu0
        %v2864 = vadd.f32 0.0, %v2863
        %v2865 = vpop.f32.mrf.mxu0
        %v2866 = vadd.f32 0.0, %v2865
        %2867 = vmatmul.bf16.gmra.mxu0 %v2769
        %v2868 = vpop.f32.mrf.mxu0
        %v2869 = vadd.f32 0.0, %v2868
        %v2870 = vpop.f32.mrf.mxu0
        %v2871 = vadd.f32 0.0, %v2870
        %2872 = vdwg.mxu0
        %v2873 = vadd.f32 %v2637, %v2784
        %v2874 = vadd.f32 %v2638, %v2786
        %v2875 = vadd.f32 %v2639, %v2789
        %v2876 = vadd.f32 %v2640, %v2791
        %v2877 = vadd.f32 %v2641, %v2794
        %v2878 = vadd.f32 %v2642, %v2796
        %v2879 = vadd.f32 %v2643, %v2799
        %v2880 = vadd.f32 %v2644, %v2801
        %v2881 = vadd.f32 %v2645, %v2804
        %v2882 = vadd.f32 %v2646, %v2806
        %v2883 = vadd.f32 %v2647, %v2809
        %v2884 = vadd.f32 %v2648, %v2811
        %v2885 = vadd.f32 %v2649, %v2814
        %v2886 = vadd.f32 %v2650, %v2816
        %v2887 = vadd.f32 %v2651, %v2819
        %v2888 = vadd.f32 %v2652, %v2821
        %v2889 = vadd.f32 %v2653, %v2824
        %v2890 = vadd.f32 %v2654, %v2826
        %v2891 = vadd.f32 %v2655, %v2829
        %v2892 = vadd.f32 %v2656, %v2831
        %v2893 = vadd.f32 %v2657, %v2834
        %v2894 = vadd.f32 %v2658, %v2836
        %v2895 = vadd.f32 %v2659, %v2839
        %v2896 = vadd.f32 %v2660, %v2841
        %v2897 = vadd.f32 %v2661, %v2844
        %v2898 = vadd.f32 %v2662, %v2846
        %v2899 = vadd.f32 %v2663, %v2849
        %v2900 = vadd.f32 %v2664, %v2851
        %v2901 = vadd.f32 %v2665, %v2854
        %v2902 = vadd.f32 %v2666, %v2856
        %v2903 = vadd.f32 %v2667, %v2859
        %v2904 = vadd.f32 %v2668, %v2861
        %v2905 = vadd.f32 %v2669, %v2864
        %v2906 = vadd.f32 %v2670, %v2866
        %v2907 = vadd.f32 %v2671, %v2869
        %v2908 = vadd.f32 %v2672, %v2871
        %v2909 = vld [vmem:[%s155 + $0x18] sm:$0x8]
        %v2910 = vld [vmem:[%s155 + $0x1c] sm:$0xf]
        %v2911 = vld [vmem:[%s155 + $0x20] sm:$0xf]
        %v2912 = vld [vmem:[%s155 + $0x24] sm:$0xf]
        %v2913 = vld [vmem:[%s155 + $0x28] sm:$0xf]
        %v2914 = vld [vmem:[%s155 + $0x2c] sm:$0xf]
        %v2915 = vld [vmem:[%s155 + $0x30] sm:$0xf]
        %v2916 = vld [vmem:[%s155 + $0x34] sm:$0xf]
        %v2917 = vld [vmem:[%s155 + $0x38] sm:$0xf]
        %v2918 = vld [vmem:[%s155 + $0x3c] sm:$0xf]
        %v2919 = vld [vmem:[%s155 + $0x40] sm:$0xf]
        %v2920 = vld [vmem:[%s155 + $0x44] sm:$0xf]
        %v2921 = vld [vmem:[%s155 + $0x48] sm:$0xf]
        %v2922 = vld [vmem:[%s155 + $0x4c] sm:$0xf]
        %v2923 = vld [vmem:[%s155 + $0x50] sm:$0xf]
        %v2924 = vld [vmem:[%s155 + $0x54] sm:$0xf]
        %v2925 = vld [vmem:[%s155 + $0x58] sm:$0xf]
        %v2926 = vld [vmem:[%s155 + $0x5c] sm:$0xf]
        %v2927 = vld [vmem:[%s155 + $0x60] sm:$0xf]
        %v2928 = vld [vmem:[%s155 + $0x64] sm:$0xf]
        %v2929 = vld [vmem:[%s155 + $0x68] sm:$0xf]
        %v2930 = vld [vmem:[%s155 + $0x6c] sm:$0xf]
        %v2931 = vld [vmem:[%s155 + $0x70] sm:$0xf]
        %v2932 = vld [vmem:[%s155 + $0x74] sm:$0xf]
        %v2933 = vld [vmem:[%s155 + $0x78] sm:$0xf]
        %v2934 = vld [vmem:[%s155 + $0x7c] sm:$0xf]
        %v2935 = vld [vmem:[%s155 + $0x80] sm:$0xf]
        %v2936 = vld [vmem:[%s155 + $0x84] sm:$0xf]
        %v2937 = vld [vmem:[%s155 + $0x88] sm:$0xf]
        %v2938 = vld [vmem:[%s155 + $0x8c] sm:$0xf]
        %v2939 = vld [vmem:[%s155 + $0x90] sm:$0xf]
        %v2940 = vld [vmem:[%s155 + $0x94] sm:$0xf]
        %v2941 = vld [vmem:[%s155 + $0x98] sm:$0xf]
        %v2942 = vld [vmem:[%s155 + $0x9c] sm:$0xf]
        %v2943 = vld [vmem:[%s155 + $0xa0] sm:$0xf]
        %v2944 = vld [vmem:[%s155 + $0xa4] sm:$0xf]
        %v2945 = vld [vmem:[%s155 + $0xa8] sm:$0x7]
        %s2946 = scalar_lea.vmem %s1, 18
        %v2947 = vld [vmem:[%s2946] sm:$0x3]
        %v2985 = vunpack.c.l.b16 %v2909
        %v2986 = vunpack.c.l.b16 %v2910
        %v2987 = vunpack.c.l.b16 %v2911
        %v2988 = vunpack.c.l.b16 %v2912
        %v2989 = vunpack.c.l.b16 %v2913
        %v2990 = vunpack.c.l.b16 %v2914
        %v2991 = vunpack.c.l.b16 %v2915
        %v2992 = vunpack.c.l.b16 %v2916
        %v2993 = vunpack.c.l.b16 %v2917
        %v2994 = vunpack.c.l.b16 %v2918
        %v2995 = vunpack.c.l.b16 %v2919
        %v2996 = vunpack.c.l.b16 %v2920
        %v2997 = vunpack.c.l.b16 %v2921
        %v2998 = vunpack.c.l.b16 %v2922
        %v2999 = vunpack.c.l.b16 %v2923
        %v3000 = vunpack.c.l.b16 %v2924
        %v3001 = vunpack.c.l.b16 %v2925
        %v3002 = vunpack.c.l.b16 %v2926
        %v3003 = vunpack.c.l.b16 %v2927
        %v3004 = vunpack.c.l.b16 %v2928
        %v3005 = vunpack.c.l.b16 %v2929
        %v3006 = vunpack.c.l.b16 %v2930
        %v3007 = vunpack.c.l.b16 %v2931
        %v3008 = vunpack.c.l.b16 %v2932
        %v3009 = vunpack.c.l.b16 %v2933
        %v3010 = vunpack.c.l.b16 %v2934
        %v3011 = vunpack.c.l.b16 %v2935
        %v3012 = vunpack.c.l.b16 %v2936
        %v3013 = vunpack.c.l.b16 %v2937
        %v3014 = vunpack.c.l.b16 %v2938
        %v3015 = vunpack.c.l.b16 %v2939
        %v3016 = vunpack.c.l.b16 %v2940
        %v3017 = vunpack.c.l.b16 %v2941
        %v3018 = vunpack.c.l.b16 %v2942
        %v3019 = vunpack.c.l.b16 %v2943
        %v3020 = vunpack.c.l.b16 %v2944
        %v3021 = vunpack.c.l.b16 %v2945
        %v3022 = vpack.c.b16 %v2986, %v2985
        %v3023 = vpack.c.b16 %v2988, %v2987
        %v3024 = vpack.c.b16 %v2990, %v2989
        %v3025 = vpack.c.b16 %v2992, %v2991
        %v3026 = vpack.c.b16 %v2994, %v2993
        %v3027 = vpack.c.b16 %v2996, %v2995
        %v3028 = vpack.c.b16 %v2998, %v2997
        %v3029 = vpack.c.b16 %v3000, %v2999
        %v3030 = vpack.c.b16 %v3002, %v3001
        %v3031 = vpack.c.b16 %v3004, %v3003
        %v3032 = vpack.c.b16 %v3006, %v3005
        %v3033 = vpack.c.b16 %v3008, %v3007
        %v3034 = vpack.c.b16 %v3010, %v3009
        %v3035 = vpack.c.b16 %v3012, %v3011
        %v3036 = vpack.c.b16 %v3014, %v3013
        %v3037 = vpack.c.b16 %v3016, %v3015
        %v3038 = vpack.c.b16 %v3018, %v3017
        %v3039 = vpack.c.b16 %v3020, %v3019
        %v3040 = vpack.c.b16 %v3021, %v3021
        %v3041 = vrot.slane %v3022, 3
        %v3042 = vrot.slane %v3023, 3
        %v3043 = vsel %vm2679, %v3041, %v3042
        %v3044 = vrot.slane %v3024, 3
        %v3045 = vsel %vm2679, %v3042, %v3044
        %v3046 = vrot.slane %v3025, 3
        %v3047 = vsel %vm2679, %v3044, %v3046
        %v3048 = vrot.slane %v3026, 3
        %v3049 = vsel %vm2679, %v3046, %v3048
        %v3050 = vrot.slane %v3027, 3
        %v3051 = vsel %vm2679, %v3048, %v3050
        %v3052 = vrot.slane %v3028, 3
        %v3053 = vsel %vm2679, %v3050, %v3052
        %v3054 = vrot.slane %v3029, 3
        %v3055 = vsel %vm2679, %v3052, %v3054
        %v3056 = vrot.slane %v3030, 3
        %v3057 = vsel %vm2679, %v3054, %v3056
        %v3058 = vrot.slane %v3031, 3
        %v3059 = vsel %vm2679, %v3056, %v3058
        %v3060 = vrot.slane %v3032, 3
        %v3061 = vsel %vm2679, %v3058, %v3060
        %v3062 = vrot.slane %v3033, 3
        %v3063 = vsel %vm2679, %v3060, %v3062
        %v3064 = vrot.slane %v3034, 3
        %v3065 = vsel %vm2679, %v3062, %v3064
        %v3066 = vrot.slane %v3035, 3
        %v3067 = vsel %vm2679, %v3064, %v3066
        %v3068 = vrot.slane %v3036, 3
        %v3069 = vsel %vm2679, %v3066, %v3068
        %v3070 = vrot.slane %v3037, 3
        %v3071 = vsel %vm2679, %v3068, %v3070
        %v3072 = vrot.slane %v3038, 3
        %v3073 = vsel %vm2679, %v3070, %v3072
        %v3074 = vrot.slane %v3039, 3
        %v3075 = vsel %vm2679, %v3072, %v3074
        %v3076 = vrot.slane %v3040, 3
        %v3077 = vsel %vm2679, %v3074, %v3076
        %v3079 = vsel %vm445, %v3043, 0
        %v3082 = vsel %vm445, %v3045, 0
        %v3085 = vsel %vm445, %v3047, 0
        %v3088 = vsel %vm445, %v3049, 0
        %v3091 = vsel %vm445, %v3051, 0
        %v3094 = vsel %vm445, %v3053, 0
        %v3097 = vsel %vm445, %v3055, 0
        %v3100 = vsel %vm445, %v3057, 0
        %v3103 = vsel %vm445, %v3059, 0
        %v3106 = vsel %vm445, %v3061, 0
        %v3109 = vsel %vm445, %v3063, 0
        %v3112 = vsel %vm445, %v3065, 0
        %v3115 = vsel %vm445, %v3067, 0
        %v3118 = vsel %vm445, %v3069, 0
        %v3121 = vsel %vm445, %v3071, 0
        %v3124 = vsel %vm445, %v3073, 0
        %v3127 = vsel %vm445, %v3075, 0
        %v3130 = vsel %vm445, %v3077, 0
        %v3133 = vsel %vm500, %v2947, 0
        %3135 = vmatpush.bf16.msra.mxu0 0
        %3136 = vmatpush.bf16.msra.mxu0 0
        %3137 = vmatpush.bf16.msra.mxu0 0
        %3138 = vmatpush.bf16.msra.mxu0 0
        %3139 = vmatpush.bf16.msra.mxu0 0
        %3140 = vmatpush.bf16.msra.mxu0 0
        %3141 = vmatpush.bf16.msra.mxu0 0
        %3142 = vmatpush.bf16.msra.mxu0 %v3133
        %3143 = vmatmul.bf16.gmra.mxu0 %v3079
        %v3144 = vpop.f32.mrf.mxu0
        %v3145 = vadd.f32 0.0, %v3144
        %v3146 = vpop.f32.mrf.mxu0
        %v3147 = vadd.f32 0.0, %v3146
        %3148 = vmatmul.bf16.gmra.mxu0 %v3082
        %v3149 = vpop.f32.mrf.mxu0
        %v3150 = vadd.f32 0.0, %v3149
        %v3151 = vpop.f32.mrf.mxu0
        %v3152 = vadd.f32 0.0, %v3151
        %3153 = vmatmul.bf16.gmra.mxu0 %v3085
        %v3154 = vpop.f32.mrf.mxu0
        %v3155 = vadd.f32 0.0, %v3154
        %v3156 = vpop.f32.mrf.mxu0
        %v3157 = vadd.f32 0.0, %v3156
        %3158 = vmatmul.bf16.gmra.mxu0 %v3088
        %v3159 = vpop.f32.mrf.mxu0
        %v3160 = vadd.f32 0.0, %v3159
        %v3161 = vpop.f32.mrf.mxu0
        %v3162 = vadd.f32 0.0, %v3161
        %3163 = vmatmul.bf16.gmra.mxu0 %v3091
        %v3164 = vpop.f32.mrf.mxu0
        %v3165 = vadd.f32 0.0, %v3164
        %v3166 = vpop.f32.mrf.mxu0
        %v3167 = vadd.f32 0.0, %v3166
        %3168 = vmatmul.bf16.gmra.mxu0 %v3094
        %v3169 = vpop.f32.mrf.mxu0
        %v3170 = vadd.f32 0.0, %v3169
        %v3171 = vpop.f32.mrf.mxu0
        %v3172 = vadd.f32 0.0, %v3171
        %3173 = vmatmul.bf16.gmra.mxu0 %v3097
        %v3174 = vpop.f32.mrf.mxu0
        %v3175 = vadd.f32 0.0, %v3174
        %v3176 = vpop.f32.mrf.mxu0
        %v3177 = vadd.f32 0.0, %v3176
        %3178 = vmatmul.bf16.gmra.mxu0 %v3100
        %v3179 = vpop.f32.mrf.mxu0
        %v3180 = vadd.f32 0.0, %v3179
        %v3181 = vpop.f32.mrf.mxu0
        %v3182 = vadd.f32 0.0, %v3181
        %3183 = vmatmul.bf16.gmra.mxu0 %v3103
        %v3184 = vpop.f32.mrf.mxu0
        %v3185 = vadd.f32 0.0, %v3184
        %v3186 = vpop.f32.mrf.mxu0
        %v3187 = vadd.f32 0.0, %v3186
        %3188 = vmatmul.bf16.gmra.mxu0 %v3106
        %v3189 = vpop.f32.mrf.mxu0
        %v3190 = vadd.f32 0.0, %v3189
        %v3191 = vpop.f32.mrf.mxu0
        %v3192 = vadd.f32 0.0, %v3191
        %3193 = vmatmul.bf16.gmra.mxu0 %v3109
        %v3194 = vpop.f32.mrf.mxu0
        %v3195 = vadd.f32 0.0, %v3194
        %v3196 = vpop.f32.mrf.mxu0
        %v3197 = vadd.f32 0.0, %v3196
        %3198 = vmatmul.bf16.gmra.mxu0 %v3112
        %v3199 = vpop.f32.mrf.mxu0
        %v3200 = vadd.f32 0.0, %v3199
        %v3201 = vpop.f32.mrf.mxu0
        %v3202 = vadd.f32 0.0, %v3201
        %3203 = vmatmul.bf16.gmra.mxu0 %v3115
        %v3204 = vpop.f32.mrf.mxu0
        %v3205 = vadd.f32 0.0, %v3204
        %v3206 = vpop.f32.mrf.mxu0
        %v3207 = vadd.f32 0.0, %v3206
        %3208 = vmatmul.bf16.gmra.mxu0 %v3118
        %v3209 = vpop.f32.mrf.mxu0
        %v3210 = vadd.f32 0.0, %v3209
        %v3211 = vpop.f32.mrf.mxu0
        %v3212 = vadd.f32 0.0, %v3211
        %3213 = vmatmul.bf16.gmra.mxu0 %v3121
        %v3214 = vpop.f32.mrf.mxu0
        %v3215 = vadd.f32 0.0, %v3214
        %v3216 = vpop.f32.mrf.mxu0
        %v3217 = vadd.f32 0.0, %v3216
        %3218 = vmatmul.bf16.gmra.mxu0 %v3124
        %v3219 = vpop.f32.mrf.mxu0
        %v3220 = vadd.f32 0.0, %v3219
        %v3221 = vpop.f32.mrf.mxu0
        %v3222 = vadd.f32 0.0, %v3221
        %3223 = vmatmul.bf16.gmra.mxu0 %v3127
        %v3224 = vpop.f32.mrf.mxu0
        %v3225 = vadd.f32 0.0, %v3224
        %v3226 = vpop.f32.mrf.mxu0
        %v3227 = vadd.f32 0.0, %v3226
        %3228 = vmatmul.bf16.gmra.mxu0 %v3130
        %v3229 = vpop.f32.mrf.mxu0
        %v3230 = vadd.f32 0.0, %v3229
        %v3231 = vpop.f32.mrf.mxu0
        %v3232 = vadd.f32 0.0, %v3231
        %3233 = vdwg.mxu0
        %v3234 = vadd.f32 %v2873, %v3145
        %v3235 = vadd.f32 %v2874, %v3147
        %v3236 = vadd.f32 %v2875, %v3150
        %v3237 = vadd.f32 %v2876, %v3152
        %v3238 = vadd.f32 %v2877, %v3155
        %v3239 = vadd.f32 %v2878, %v3157
        %v3240 = vadd.f32 %v2879, %v3160
        %v3241 = vadd.f32 %v2880, %v3162
        %v3242 = vadd.f32 %v2881, %v3165
        %v3243 = vadd.f32 %v2882, %v3167
        %v3244 = vadd.f32 %v2883, %v3170
        %v3245 = vadd.f32 %v2884, %v3172
        %v3246 = vadd.f32 %v2885, %v3175
        %v3247 = vadd.f32 %v2886, %v3177
        %v3248 = vadd.f32 %v2887, %v3180
        %v3249 = vadd.f32 %v2888, %v3182
        %v3250 = vadd.f32 %v2889, %v3185
        %v3251 = vadd.f32 %v2890, %v3187
        %v3252 = vadd.f32 %v2891, %v3190
        %v3253 = vadd.f32 %v2892, %v3192
        %v3254 = vadd.f32 %v2893, %v3195
        %v3255 = vadd.f32 %v2894, %v3197
        %v3256 = vadd.f32 %v2895, %v3200
        %v3257 = vadd.f32 %v2896, %v3202
        %v3258 = vadd.f32 %v2897, %v3205
        %v3259 = vadd.f32 %v2898, %v3207
        %v3260 = vadd.f32 %v2899, %v3210
        %v3261 = vadd.f32 %v2900, %v3212
        %v3262 = vadd.f32 %v2901, %v3215
        %v3263 = vadd.f32 %v2902, %v3217
        %v3264 = vadd.f32 %v2903, %v3220
        %v3265 = vadd.f32 %v2904, %v3222
        %v3266 = vadd.f32 %v2905, %v3225
        %v3267 = vadd.f32 %v2906, %v3227
        %v3268 = vadd.f32 %v2907, %v3230
        %v3269 = vadd.f32 %v2908, %v3232
        %v3270 = vld [vmem:[%s155 + $0xa8] sm:$0xf]
        %s3271 = scalar_lea.vmem %s1, 20
        %v3272 = vld [vmem:[%s3271] sm:$0x3]
        %v3274 = vunpack.c.l.b16 %v3270
        %v3275 = vpack.c.b16 %v3274, %v3274
        %vm3276 = vsmask.f32 4352
        %v3278 = vshrl.u32 %v3022, 16
        %v3280 = vrot.slane %v3278, 3
        %v3281 = vshll.u32 %v3022, 16
        %v3283 = vrot.slane %v3281, 4
        %v3284 = vor.u32 %v3280, %v3283
        %v3286 = vshrl.u32 %v3023, 16
        %v3288 = vrot.slane %v3286, 3
        %v3289 = vshll.u32 %v3023, 16
        %v3291 = vrot.slane %v3289, 4
        %v3292 = vor.u32 %v3288, %v3291
        %v3293 = vsel %vm3276, %v3284, %v3292
        %v3295 = vshrl.u32 %v3024, 16
        %v3297 = vrot.slane %v3295, 3
        %v3298 = vshll.u32 %v3024, 16
        %v3300 = vrot.slane %v3298, 4
        %v3301 = vor.u32 %v3297, %v3300
        %v3302 = vsel %vm3276, %v3292, %v3301
        %v3304 = vshrl.u32 %v3025, 16
        %v3306 = vrot.slane %v3304, 3
        %v3307 = vshll.u32 %v3025, 16
        %v3309 = vrot.slane %v3307, 4
        %v3310 = vor.u32 %v3306, %v3309
        %v3311 = vsel %vm3276, %v3301, %v3310
        %v3313 = vshrl.u32 %v3026, 16
        %v3315 = vrot.slane %v3313, 3
        %v3316 = vshll.u32 %v3026, 16
        %v3318 = vrot.slane %v3316, 4
        %v3319 = vor.u32 %v3315, %v3318
        %v3320 = vsel %vm3276, %v3310, %v3319
        %v3322 = vshrl.u32 %v3027, 16
        %v3324 = vrot.slane %v3322, 3
        %v3325 = vshll.u32 %v3027, 16
        %v3327 = vrot.slane %v3325, 4
        %v3328 = vor.u32 %v3324, %v3327
        %v3329 = vsel %vm3276, %v3319, %v3328
        %v3331 = vshrl.u32 %v3028, 16
        %v3333 = vrot.slane %v3331, 3
        %v3334 = vshll.u32 %v3028, 16
        %v3336 = vrot.slane %v3334, 4
        %v3337 = vor.u32 %v3333, %v3336
        %v3338 = vsel %vm3276, %v3328, %v3337
        %v3340 = vshrl.u32 %v3029, 16
        %v3342 = vrot.slane %v3340, 3
        %v3343 = vshll.u32 %v3029, 16
        %v3345 = vrot.slane %v3343, 4
        %v3346 = vor.u32 %v3342, %v3345
        %v3347 = vsel %vm3276, %v3337, %v3346
        %v3349 = vshrl.u32 %v3030, 16
        %v3351 = vrot.slane %v3349, 3
        %v3352 = vshll.u32 %v3030, 16
        %v3354 = vrot.slane %v3352, 4
        %v3355 = vor.u32 %v3351, %v3354
        %v3356 = vsel %vm3276, %v3346, %v3355
        %v3358 = vshrl.u32 %v3031, 16
        %v3360 = vrot.slane %v3358, 3
        %v3361 = vshll.u32 %v3031, 16
        %v3363 = vrot.slane %v3361, 4
        %v3364 = vor.u32 %v3360, %v3363
        %v3365 = vsel %vm3276, %v3355, %v3364
        %v3367 = vshrl.u32 %v3032, 16
        %v3369 = vrot.slane %v3367, 3
        %v3370 = vshll.u32 %v3032, 16
        %v3372 = vrot.slane %v3370, 4
        %v3373 = vor.u32 %v3369, %v3372
        %v3374 = vsel %vm3276, %v3364, %v3373
        %v3376 = vshrl.u32 %v3033, 16
        %v3378 = vrot.slane %v3376, 3
        %v3379 = vshll.u32 %v3033, 16
        %v3381 = vrot.slane %v3379, 4
        %v3382 = vor.u32 %v3378, %v3381
        %v3383 = vsel %vm3276, %v3373, %v3382
        %v3385 = vshrl.u32 %v3034, 16
        %v3387 = vrot.slane %v3385, 3
        %v3388 = vshll.u32 %v3034, 16
        %v3390 = vrot.slane %v3388, 4
        %v3391 = vor.u32 %v3387, %v3390
        %v3392 = vsel %vm3276, %v3382, %v3391
        %v3394 = vshrl.u32 %v3035, 16
        %v3396 = vrot.slane %v3394, 3
        %v3397 = vshll.u32 %v3035, 16
        %v3399 = vrot.slane %v3397, 4
        %v3400 = vor.u32 %v3396, %v3399
        %v3401 = vsel %vm3276, %v3391, %v3400
        %v3403 = vshrl.u32 %v3036, 16
        %v3405 = vrot.slane %v3403, 3
        %v3406 = vshll.u32 %v3036, 16
        %v3408 = vrot.slane %v3406, 4
        %v3409 = vor.u32 %v3405, %v3408
        %v3410 = vsel %vm3276, %v3400, %v3409
        %v3412 = vshrl.u32 %v3037, 16
        %v3414 = vrot.slane %v3412, 3
        %v3415 = vshll.u32 %v3037, 16
        %v3417 = vrot.slane %v3415, 4
        %v3418 = vor.u32 %v3414, %v3417
        %v3419 = vsel %vm3276, %v3409, %v3418
        %v3421 = vshrl.u32 %v3038, 16
        %v3423 = vrot.slane %v3421, 3
        %v3424 = vshll.u32 %v3038, 16
        %v3426 = vrot.slane %v3424, 4
        %v3427 = vor.u32 %v3423, %v3426
        %v3428 = vsel %vm3276, %v3418, %v3427
        %v3430 = vshrl.u32 %v3039, 16
        %v3432 = vrot.slane %v3430, 3
        %v3433 = vshll.u32 %v3039, 16
        %v3435 = vrot.slane %v3433, 4
        %v3436 = vor.u32 %v3432, %v3435
        %v3437 = vsel %vm3276, %v3427, %v3436
        %v3439 = vshrl.u32 %v3275, 16
        %v3441 = vrot.slane %v3439, 3
        %v3442 = vshll.u32 %v3275, 16
        %v3444 = vrot.slane %v3442, 4
        %v3445 = vor.u32 %v3441, %v3444
        %v3446 = vsel %vm3276, %v3436, %v3445
        %v3448 = vsel %vm445, %v3293, 0
        %v3451 = vsel %vm445, %v3302, 0
        %v3454 = vsel %vm445, %v3311, 0
        %v3457 = vsel %vm445, %v3320, 0
        %v3460 = vsel %vm445, %v3329, 0
        %v3463 = vsel %vm445, %v3338, 0
        %v3466 = vsel %vm445, %v3347, 0
        %v3469 = vsel %vm445, %v3356, 0
        %v3472 = vsel %vm445, %v3365, 0
        %v3475 = vsel %vm445, %v3374, 0
        %v3478 = vsel %vm445, %v3383, 0
        %v3481 = vsel %vm445, %v3392, 0
        %v3484 = vsel %vm445, %v3401, 0
        %v3487 = vsel %vm445, %v3410, 0
        %v3490 = vsel %vm445, %v3419, 0
        %v3493 = vsel %vm445, %v3428, 0
        %v3496 = vsel %vm445, %v3437, 0
        %v3499 = vsel %vm445, %v3446, 0
        %v3502 = vsel %vm500, %v3272, 0
        %3504 = vmatpush.bf16.msra.mxu0 0
        %3505 = vmatpush.bf16.msra.mxu0 0
        %3506 = vmatpush.bf16.msra.mxu0 0
        %3507 = vmatpush.bf16.msra.mxu0 0
        %3508 = vmatpush.bf16.msra.mxu0 0
        %3509 = vmatpush.bf16.msra.mxu0 0
        %3510 = vmatpush.bf16.msra.mxu0 0
        %3511 = vmatpush.bf16.msra.mxu0 %v3502
        %3512 = vmatmul.bf16.gmra.mxu0 %v3448
        %v3513 = vpop.f32.mrf.mxu0
        %v3514 = vadd.f32 0.0, %v3513
        %v3515 = vpop.f32.mrf.mxu0
        %v3516 = vadd.f32 0.0, %v3515
        %3517 = vmatmul.bf16.gmra.mxu0 %v3451
        %v3518 = vpop.f32.mrf.mxu0
        %v3519 = vadd.f32 0.0, %v3518
        %v3520 = vpop.f32.mrf.mxu0
        %v3521 = vadd.f32 0.0, %v3520
        %3522 = vmatmul.bf16.gmra.mxu0 %v3454
        %v3523 = vpop.f32.mrf.mxu0
        %v3524 = vadd.f32 0.0, %v3523
        %v3525 = vpop.f32.mrf.mxu0
        %v3526 = vadd.f32 0.0, %v3525
        %3527 = vmatmul.bf16.gmra.mxu0 %v3457
        %v3528 = vpop.f32.mrf.mxu0
        %v3529 = vadd.f32 0.0, %v3528
        %v3530 = vpop.f32.mrf.mxu0
        %v3531 = vadd.f32 0.0, %v3530
        %3532 = vmatmul.bf16.gmra.mxu0 %v3460
        %v3533 = vpop.f32.mrf.mxu0
        %v3534 = vadd.f32 0.0, %v3533
        %v3535 = vpop.f32.mrf.mxu0
        %v3536 = vadd.f32 0.0, %v3535
        %3537 = vmatmul.bf16.gmra.mxu0 %v3463
        %v3538 = vpop.f32.mrf.mxu0
        %v3539 = vadd.f32 0.0, %v3538
        %v3540 = vpop.f32.mrf.mxu0
        %v3541 = vadd.f32 0.0, %v3540
        %3542 = vmatmul.bf16.gmra.mxu0 %v3466
        %v3543 = vpop.f32.mrf.mxu0
        %v3544 = vadd.f32 0.0, %v3543
        %v3545 = vpop.f32.mrf.mxu0
        %v3546 = vadd.f32 0.0, %v3545
        %3547 = vmatmul.bf16.gmra.mxu0 %v3469
        %v3548 = vpop.f32.mrf.mxu0
        %v3549 = vadd.f32 0.0, %v3548
        %v3550 = vpop.f32.mrf.mxu0
        %v3551 = vadd.f32 0.0, %v3550
        %3552 = vmatmul.bf16.gmra.mxu0 %v3472
        %v3553 = vpop.f32.mrf.mxu0
        %v3554 = vadd.f32 0.0, %v3553
        %v3555 = vpop.f32.mrf.mxu0
        %v3556 = vadd.f32 0.0, %v3555
        %3557 = vmatmul.bf16.gmra.mxu0 %v3475
        %v3558 = vpop.f32.mrf.mxu0
        %v3559 = vadd.f32 0.0, %v3558
        %v3560 = vpop.f32.mrf.mxu0
        %v3561 = vadd.f32 0.0, %v3560
        %3562 = vmatmul.bf16.gmra.mxu0 %v3478
        %v3563 = vpop.f32.mrf.mxu0
        %v3564 = vadd.f32 0.0, %v3563
        %v3565 = vpop.f32.mrf.mxu0
        %v3566 = vadd.f32 0.0, %v3565
        %3567 = vmatmul.bf16.gmra.mxu0 %v3481
        %v3568 = vpop.f32.mrf.mxu0
        %v3569 = vadd.f32 0.0, %v3568
        %v3570 = vpop.f32.mrf.mxu0
        %v3571 = vadd.f32 0.0, %v3570
        %3572 = vmatmul.bf16.gmra.mxu0 %v3484
        %v3573 = vpop.f32.mrf.mxu0
        %v3574 = vadd.f32 0.0, %v3573
        %v3575 = vpop.f32.mrf.mxu0
        %v3576 = vadd.f32 0.0, %v3575
        %3577 = vmatmul.bf16.gmra.mxu0 %v3487
        %v3578 = vpop.f32.mrf.mxu0
        %v3579 = vadd.f32 0.0, %v3578
        %v3580 = vpop.f32.mrf.mxu0
        %v3581 = vadd.f32 0.0, %v3580
        %3582 = vmatmul.bf16.gmra.mxu0 %v3490
        %v3583 = vpop.f32.mrf.mxu0
        %v3584 = vadd.f32 0.0, %v3583
        %v3585 = vpop.f32.mrf.mxu0
        %v3586 = vadd.f32 0.0, %v3585
        %3587 = vmatmul.bf16.gmra.mxu0 %v3493
        %v3588 = vpop.f32.mrf.mxu0
        %v3589 = vadd.f32 0.0, %v3588
        %v3590 = vpop.f32.mrf.mxu0
        %v3591 = vadd.f32 0.0, %v3590
        %3592 = vmatmul.bf16.gmra.mxu0 %v3496
        %v3593 = vpop.f32.mrf.mxu0
        %v3594 = vadd.f32 0.0, %v3593
        %v3595 = vpop.f32.mrf.mxu0
        %v3596 = vadd.f32 0.0, %v3595
        %3597 = vmatmul.bf16.gmra.mxu0 %v3499
        %v3598 = vpop.f32.mrf.mxu0
        %v3599 = vadd.f32 0.0, %v3598
        %v3600 = vpop.f32.mrf.mxu0
        %v3601 = vadd.f32 0.0, %v3600
        %3602 = vdwg.mxu0
        %v3603 = vadd.f32 %v3234, %v3514
        %v3604 = vadd.f32 %v3235, %v3516
        %v3605 = vadd.f32 %v3236, %v3519
        %v3606 = vadd.f32 %v3237, %v3521
        %v3607 = vadd.f32 %v3238, %v3524
        %v3608 = vadd.f32 %v3239, %v3526
        %v3609 = vadd.f32 %v3240, %v3529
        %v3610 = vadd.f32 %v3241, %v3531
        %v3611 = vadd.f32 %v3242, %v3534
        %v3612 = vadd.f32 %v3243, %v3536
        %v3613 = vadd.f32 %v3244, %v3539
        %v3614 = vadd.f32 %v3245, %v3541
        %v3615 = vadd.f32 %v3246, %v3544
        %v3616 = vadd.f32 %v3247, %v3546
        %v3617 = vadd.f32 %v3248, %v3549
        %v3618 = vadd.f32 %v3249, %v3551
        %v3619 = vadd.f32 %v3250, %v3554
        %v3620 = vadd.f32 %v3251, %v3556
        %v3621 = vadd.f32 %v3252, %v3559
        %v3622 = vadd.f32 %v3253, %v3561
        %v3623 = vadd.f32 %v3254, %v3564
        %v3624 = vadd.f32 %v3255, %v3566
        %v3625 = vadd.f32 %v3256, %v3569
        %v3626 = vadd.f32 %v3257, %v3571
        %v3627 = vadd.f32 %v3258, %v3574
        %v3628 = vadd.f32 %v3259, %v3576
        %v3629 = vadd.f32 %v3260, %v3579
        %v3630 = vadd.f32 %v3261, %v3581
        %v3631 = vadd.f32 %v3262, %v3584
        %v3632 = vadd.f32 %v3263, %v3586
        %v3633 = vadd.f32 %v3264, %v3589
        %v3634 = vadd.f32 %v3265, %v3591
        %v3635 = vadd.f32 %v3266, %v3594
        %v3636 = vadd.f32 %v3267, %v3596
        %v3637 = vadd.f32 %v3268, %v3599
        %v3638 = vadd.f32 %v3269, %v3601
        %s3639 = scalar_lea.vmem %s1, 22
        %v3640 = vld [vmem:[%s3639] sm:$0x3]
        %v3641 = vpack.c.b16 %v2987, %v2986
        %v3642 = vpack.c.b16 %v2989, %v2988
        %v3643 = vpack.c.b16 %v2991, %v2990
        %v3644 = vpack.c.b16 %v2993, %v2992
        %v3645 = vpack.c.b16 %v2995, %v2994
        %v3646 = vpack.c.b16 %v2997, %v2996
        %v3647 = vpack.c.b16 %v2999, %v2998
        %v3648 = vpack.c.b16 %v3001, %v3000
        %v3649 = vpack.c.b16 %v3003, %v3002
        %v3650 = vpack.c.b16 %v3005, %v3004
        %v3651 = vpack.c.b16 %v3007, %v3006
        %v3652 = vpack.c.b16 %v3009, %v3008
        %v3653 = vpack.c.b16 %v3011, %v3010
        %v3654 = vpack.c.b16 %v3013, %v3012
        %v3655 = vpack.c.b16 %v3015, %v3014
        %v3656 = vpack.c.b16 %v3017, %v3016
        %v3657 = vpack.c.b16 %v3019, %v3018
        %v3658 = vpack.c.b16 %v3274, %v3020
        %v3660 = vsel %vm445, %v3641, 0
        %v3663 = vsel %vm445, %v3642, 0
        %v3666 = vsel %vm445, %v3643, 0
        %v3669 = vsel %vm445, %v3644, 0
        %v3672 = vsel %vm445, %v3645, 0
        %v3675 = vsel %vm445, %v3646, 0
        %v3678 = vsel %vm445, %v3647, 0
        %v3681 = vsel %vm445, %v3648, 0
        %v3684 = vsel %vm445, %v3649, 0
        %v3687 = vsel %vm445, %v3650, 0
        %v3690 = vsel %vm445, %v3651, 0
        %v3693 = vsel %vm445, %v3652, 0
        %v3696 = vsel %vm445, %v3653, 0
        %v3699 = vsel %vm445, %v3654, 0
        %v3702 = vsel %vm445, %v3655, 0
        %v3705 = vsel %vm445, %v3656, 0
        %v3708 = vsel %vm445, %v3657, 0
        %v3711 = vsel %vm445, %v3658, 0
        %v3714 = vsel %vm500, %v3640, 0
        %3716 = vmatpush.bf16.msra.mxu0 0
        %3717 = vmatpush.bf16.msra.mxu0 0
        %3718 = vmatpush.bf16.msra.mxu0 0
        %3719 = vmatpush.bf16.msra.mxu0 0
        %3720 = vmatpush.bf16.msra.mxu0 0
        %3721 = vmatpush.bf16.msra.mxu0 0
        %3722 = vmatpush.bf16.msra.mxu0 0
        %3723 = vmatpush.bf16.msra.mxu0 %v3714
        %3724 = vmatmul.bf16.gmra.mxu0 %v3660
        %v3725 = vpop.f32.mrf.mxu0
        %v3726 = vadd.f32 0.0, %v3725
        %v3727 = vpop.f32.mrf.mxu0
        %v3728 = vadd.f32 0.0, %v3727
        %3729 = vmatmul.bf16.gmra.mxu0 %v3663
        %v3730 = vpop.f32.mrf.mxu0
        %v3731 = vadd.f32 0.0, %v3730
        %v3732 = vpop.f32.mrf.mxu0
        %v3733 = vadd.f32 0.0, %v3732
        %3734 = vmatmul.bf16.gmra.mxu0 %v3666
        %v3735 = vpop.f32.mrf.mxu0
        %v3736 = vadd.f32 0.0, %v3735
        %v3737 = vpop.f32.mrf.mxu0
        %v3738 = vadd.f32 0.0, %v3737
        %3739 = vmatmul.bf16.gmra.mxu0 %v3669
        %v3740 = vpop.f32.mrf.mxu0
        %v3741 = vadd.f32 0.0, %v3740
        %v3742 = vpop.f32.mrf.mxu0
        %v3743 = vadd.f32 0.0, %v3742
        %3744 = vmatmul.bf16.gmra.mxu0 %v3672
        %v3745 = vpop.f32.mrf.mxu0
        %v3746 = vadd.f32 0.0, %v3745
        %v3747 = vpop.f32.mrf.mxu0
        %v3748 = vadd.f32 0.0, %v3747
        %3749 = vmatmul.bf16.gmra.mxu0 %v3675
        %v3750 = vpop.f32.mrf.mxu0
        %v3751 = vadd.f32 0.0, %v3750
        %v3752 = vpop.f32.mrf.mxu0
        %v3753 = vadd.f32 0.0, %v3752
        %3754 = vmatmul.bf16.gmra.mxu0 %v3678
        %v3755 = vpop.f32.mrf.mxu0
        %v3756 = vadd.f32 0.0, %v3755
        %v3757 = vpop.f32.mrf.mxu0
        %v3758 = vadd.f32 0.0, %v3757
        %3759 = vmatmul.bf16.gmra.mxu0 %v3681
        %v3760 = vpop.f32.mrf.mxu0
        %v3761 = vadd.f32 0.0, %v3760
        %v3762 = vpop.f32.mrf.mxu0
        %v3763 = vadd.f32 0.0, %v3762
        %3764 = vmatmul.bf16.gmra.mxu0 %v3684
        %v3765 = vpop.f32.mrf.mxu0
        %v3766 = vadd.f32 0.0, %v3765
        %v3767 = vpop.f32.mrf.mxu0
        %v3768 = vadd.f32 0.0, %v3767
        %3769 = vmatmul.bf16.gmra.mxu0 %v3687
        %v3770 = vpop.f32.mrf.mxu0
        %v3771 = vadd.f32 0.0, %v3770
        %v3772 = vpop.f32.mrf.mxu0
        %v3773 = vadd.f32 0.0, %v3772
        %3774 = vmatmul.bf16.gmra.mxu0 %v3690
        %v3775 = vpop.f32.mrf.mxu0
        %v3776 = vadd.f32 0.0, %v3775
        %v3777 = vpop.f32.mrf.mxu0
        %v3778 = vadd.f32 0.0, %v3777
        %3779 = vmatmul.bf16.gmra.mxu0 %v3693
        %v3780 = vpop.f32.mrf.mxu0
        %v3781 = vadd.f32 0.0, %v3780
        %v3782 = vpop.f32.mrf.mxu0
        %v3783 = vadd.f32 0.0, %v3782
        %3784 = vmatmul.bf16.gmra.mxu0 %v3696
        %v3785 = vpop.f32.mrf.mxu0
        %v3786 = vadd.f32 0.0, %v3785
        %v3787 = vpop.f32.mrf.mxu0
        %v3788 = vadd.f32 0.0, %v3787
        %3789 = vmatmul.bf16.gmra.mxu0 %v3699
        %v3790 = vpop.f32.mrf.mxu0
        %v3791 = vadd.f32 0.0, %v3790
        %v3792 = vpop.f32.mrf.mxu0
        %v3793 = vadd.f32 0.0, %v3792
        %3794 = vmatmul.bf16.gmra.mxu0 %v3702
        %v3795 = vpop.f32.mrf.mxu0
        %v3796 = vadd.f32 0.0, %v3795
        %v3797 = vpop.f32.mrf.mxu0
        %v3798 = vadd.f32 0.0, %v3797
        %3799 = vmatmul.bf16.gmra.mxu0 %v3705
        %v3800 = vpop.f32.mrf.mxu0
        %v3801 = vadd.f32 0.0, %v3800
        %v3802 = vpop.f32.mrf.mxu0
        %v3803 = vadd.f32 0.0, %v3802
        %3804 = vmatmul.bf16.gmra.mxu0 %v3708
        %v3805 = vpop.f32.mrf.mxu0
        %v3806 = vadd.f32 0.0, %v3805
        %v3807 = vpop.f32.mrf.mxu0
        %v3808 = vadd.f32 0.0, %v3807
        %3809 = vmatmul.bf16.gmra.mxu0 %v3711
        %v3810 = vpop.f32.mrf.mxu0
        %v3811 = vadd.f32 0.0, %v3810
        %v3812 = vpop.f32.mrf.mxu0
        %v3813 = vadd.f32 0.0, %v3812
        %3814 = vdwg.mxu0
        %v3815 = vadd.f32 %v3603, %v3726
        %v3816 = vadd.f32 %v3604, %v3728
        %v3817 = vadd.f32 %v3605, %v3731
        %v3818 = vadd.f32 %v3606, %v3733
        %v3819 = vadd.f32 %v3607, %v3736
        %v3820 = vadd.f32 %v3608, %v3738
        %v3821 = vadd.f32 %v3609, %v3741
        %v3822 = vadd.f32 %v3610, %v3743
        %v3823 = vadd.f32 %v3611, %v3746
        %v3824 = vadd.f32 %v3612, %v3748
        %v3825 = vadd.f32 %v3613, %v3751
        %v3826 = vadd.f32 %v3614, %v3753
        %v3827 = vadd.f32 %v3615, %v3756
        %v3828 = vadd.f32 %v3616, %v3758
        %v3829 = vadd.f32 %v3617, %v3761
        %v3830 = vadd.f32 %v3618, %v3763
        %v3831 = vadd.f32 %v3619, %v3766
        %v3832 = vadd.f32 %v3620, %v3768
        %v3833 = vadd.f32 %v3621, %v3771
        %v3834 = vadd.f32 %v3622, %v3773
        %v3835 = vadd.f32 %v3623, %v3776
        %v3836 = vadd.f32 %v3624, %v3778
        %v3837 = vadd.f32 %v3625, %v3781
        %v3838 = vadd.f32 %v3626, %v3783
        %v3839 = vadd.f32 %v3627, %v3786
        %v3840 = vadd.f32 %v3628, %v3788
        %v3841 = vadd.f32 %v3629, %v3791
        %v3842 = vadd.f32 %v3630, %v3793
        %v3843 = vadd.f32 %v3631, %v3796
        %v3844 = vadd.f32 %v3632, %v3798
        %v3845 = vadd.f32 %v3633, %v3801
        %v3846 = vadd.f32 %v3634, %v3803
        %v3847 = vadd.f32 %v3635, %v3806
        %v3848 = vadd.f32 %v3636, %v3808
        %v3849 = vadd.f32 %v3637, %v3811
        %v3850 = vadd.f32 %v3638, %v3813
        %v3851 = vld [vmem:[%s155 + $0x24] sm:$0xf]
        %v3852 = vld [vmem:[%s155 + $0x28] sm:$0xf]
        %v3853 = vld [vmem:[%s155 + $0x2c] sm:$0xf]
        %v3854 = vld [vmem:[%s155 + $0x30] sm:$0xf]
        %v3855 = vld [vmem:[%s155 + $0x34] sm:$0xf]
        %v3856 = vld [vmem:[%s155 + $0x38] sm:$0xf]
        %v3857 = vld [vmem:[%s155 + $0x3c] sm:$0xf]
        %v3858 = vld [vmem:[%s155 + $0x40] sm:$0xf]
        %v3859 = vld [vmem:[%s155 + $0x44] sm:$0xf]
        %v3860 = vld [vmem:[%s155 + $0x48] sm:$0xf]
        %v3861 = vld [vmem:[%s155 + $0x4c] sm:$0xf]
        %v3862 = vld [vmem:[%s155 + $0x50] sm:$0xf]
        %v3863 = vld [vmem:[%s155 + $0x54] sm:$0xf]
        %v3864 = vld [vmem:[%s155 + $0x58] sm:$0xf]
        %v3865 = vld [vmem:[%s155 + $0x5c] sm:$0xf]
        %v3866 = vld [vmem:[%s155 + $0x60] sm:$0xf]
        %v3867 = vld [vmem:[%s155 + $0x64] sm:$0xf]
        %v3868 = vld [vmem:[%s155 + $0x68] sm:$0xf]
        %v3869 = vld [vmem:[%s155 + $0x6c] sm:$0xf]
        %v3870 = vld [vmem:[%s155 + $0x70] sm:$0xf]
        %v3871 = vld [vmem:[%s155 + $0x74] sm:$0xf]
        %v3872 = vld [vmem:[%s155 + $0x78] sm:$0xf]
        %v3873 = vld [vmem:[%s155 + $0x7c] sm:$0xf]
        %v3874 = vld [vmem:[%s155 + $0x80] sm:$0xf]
        %v3875 = vld [vmem:[%s155 + $0x84] sm:$0xf]
        %v3876 = vld [vmem:[%s155 + $0x88] sm:$0xf]
        %v3877 = vld [vmem:[%s155 + $0x8c] sm:$0xf]
        %v3878 = vld [vmem:[%s155 + $0x90] sm:$0xf]
        %v3879 = vld [vmem:[%s155 + $0x94] sm:$0xf]
        %v3880 = vld [vmem:[%s155 + $0x98] sm:$0xf]
        %v3881 = vld [vmem:[%s155 + $0x9c] sm:$0xf]
        %v3882 = vld [vmem:[%s155 + $0xa0] sm:$0xf]
        %v3883 = vld [vmem:[%s155 + $0xa4] sm:$0xf]
        %v3884 = vld [vmem:[%s155 + $0xa8] sm:$0xf]
        %v3885 = vld [vmem:[%s155 + $0xac] sm:$0xf]
        %v3886 = vld [vmem:[%s155 + $0xb0] sm:$0xf]
        %s3887 = scalar_lea.vmem %s1, 24
        %v3888 = vld [vmem:[%s3887] sm:$0x3]
        %v3925 = vunpack.c.l.b16 %v3851
        %v3926 = vunpack.c.l.b16 %v3852
        %v3927 = vunpack.c.l.b16 %v3853
        %v3928 = vunpack.c.l.b16 %v3854
        %v3929 = vunpack.c.l.b16 %v3855
        %v3930 = vunpack.c.l.b16 %v3856
        %v3931 = vunpack.c.l.b16 %v3857
        %v3932 = vunpack.c.l.b16 %v3858
        %v3933 = vunpack.c.l.b16 %v3859
        %v3934 = vunpack.c.l.b16 %v3860
        %v3935 = vunpack.c.l.b16 %v3861
        %v3936 = vunpack.c.l.b16 %v3862
        %v3937 = vunpack.c.l.b16 %v3863
        %v3938 = vunpack.c.l.b16 %v3864
        %v3939 = vunpack.c.l.b16 %v3865
        %v3940 = vunpack.c.l.b16 %v3866
        %v3941 = vunpack.c.l.b16 %v3867
        %v3942 = vunpack.c.l.b16 %v3868
        %v3943 = vunpack.c.l.b16 %v3869
        %v3944 = vunpack.c.l.b16 %v3870
        %v3945 = vunpack.c.l.b16 %v3871
        %v3946 = vunpack.c.l.b16 %v3872
        %v3947 = vunpack.c.l.b16 %v3873
        %v3948 = vunpack.c.l.b16 %v3874
        %v3949 = vunpack.c.l.b16 %v3875
        %v3950 = vunpack.c.l.b16 %v3876
        %v3951 = vunpack.c.l.b16 %v3877
        %v3952 = vunpack.c.l.b16 %v3878
        %v3953 = vunpack.c.l.b16 %v3879
        %v3954 = vunpack.c.l.b16 %v3880
        %v3955 = vunpack.c.l.b16 %v3881
        %v3956 = vunpack.c.l.b16 %v3882
        %v3957 = vunpack.c.l.b16 %v3883
        %v3958 = vunpack.c.l.b16 %v3884
        %v3959 = vunpack.c.l.b16 %v3885
        %v3960 = vunpack.c.l.b16 %v3886
        %v3961 = vpack.c.b16 %v3926, %v3925
        %v3962 = vpack.c.b16 %v3928, %v3927
        %v3963 = vpack.c.b16 %v3930, %v3929
        %v3964 = vpack.c.b16 %v3932, %v3931
        %v3965 = vpack.c.b16 %v3934, %v3933
        %v3966 = vpack.c.b16 %v3936, %v3935
        %v3967 = vpack.c.b16 %v3938, %v3937
        %v3968 = vpack.c.b16 %v3940, %v3939
        %v3969 = vpack.c.b16 %v3942, %v3941
        %v3970 = vpack.c.b16 %v3944, %v3943
        %v3971 = vpack.c.b16 %v3946, %v3945
        %v3972 = vpack.c.b16 %v3948, %v3947
        %v3973 = vpack.c.b16 %v3950, %v3949
        %v3974 = vpack.c.b16 %v3952, %v3951
        %v3975 = vpack.c.b16 %v3954, %v3953
        %v3976 = vpack.c.b16 %v3956, %v3955
        %v3977 = vpack.c.b16 %v3958, %v3957
        %v3978 = vpack.c.b16 %v3960, %v3959
        %v3980 = vsel %vm445, %v3961, 0
        %v3983 = vsel %vm445, %v3962, 0
        %v3986 = vsel %vm445, %v3963, 0
        %v3989 = vsel %vm445, %v3964, 0
        %v3992 = vsel %vm445, %v3965, 0
        %v3995 = vsel %vm445, %v3966, 0
        %v3998 = vsel %vm445, %v3967, 0
        %v4001 = vsel %vm445, %v3968, 0
        %v4004 = vsel %vm445, %v3969, 0
        %v4007 = vsel %vm445, %v3970, 0
        %v4010 = vsel %vm445, %v3971, 0
        %v4013 = vsel %vm445, %v3972, 0
        %v4016 = vsel %vm445, %v3973, 0
        %v4019 = vsel %vm445, %v3974, 0
        %v4022 = vsel %vm445, %v3975, 0
        %v4025 = vsel %vm445, %v3976, 0
        %v4028 = vsel %vm445, %v3977, 0
        %v4031 = vsel %vm445, %v3978, 0
        %v4034 = vsel %vm500, %v3888, 0
        %4036 = vmatpush.bf16.msra.mxu0 0
        %4037 = vmatpush.bf16.msra.mxu0 0
        %4038 = vmatpush.bf16.msra.mxu0 0
        %4039 = vmatpush.bf16.msra.mxu0 0
        %4040 = vmatpush.bf16.msra.mxu0 0
        %4041 = vmatpush.bf16.msra.mxu0 0
        %4042 = vmatpush.bf16.msra.mxu0 0
        %4043 = vmatpush.bf16.msra.mxu0 %v4034
        %4044 = vmatmul.bf16.gmra.mxu0 %v3980
        %v4045 = vpop.f32.mrf.mxu0
        %v4046 = vadd.f32 0.0, %v4045
        %v4047 = vpop.f32.mrf.mxu0
        %v4048 = vadd.f32 0.0, %v4047
        %4049 = vmatmul.bf16.gmra.mxu0 %v3983
        %v4050 = vpop.f32.mrf.mxu0
        %v4051 = vadd.f32 0.0, %v4050
        %v4052 = vpop.f32.mrf.mxu0
        %v4053 = vadd.f32 0.0, %v4052
        %4054 = vmatmul.bf16.gmra.mxu0 %v3986
        %v4055 = vpop.f32.mrf.mxu0
        %v4056 = vadd.f32 0.0, %v4055
        %v4057 = vpop.f32.mrf.mxu0
        %v4058 = vadd.f32 0.0, %v4057
        %4059 = vmatmul.bf16.gmra.mxu0 %v3989
        %v4060 = vpop.f32.mrf.mxu0
        %v4061 = vadd.f32 0.0, %v4060
        %v4062 = vpop.f32.mrf.mxu0
        %v4063 = vadd.f32 0.0, %v4062
        %4064 = vmatmul.bf16.gmra.mxu0 %v3992
        %v4065 = vpop.f32.mrf.mxu0
        %v4066 = vadd.f32 0.0, %v4065
        %v4067 = vpop.f32.mrf.mxu0
        %v4068 = vadd.f32 0.0, %v4067
        %4069 = vmatmul.bf16.gmra.mxu0 %v3995
        %v4070 = vpop.f32.mrf.mxu0
        %v4071 = vadd.f32 0.0, %v4070
        %v4072 = vpop.f32.mrf.mxu0
        %v4073 = vadd.f32 0.0, %v4072
        %4074 = vmatmul.bf16.gmra.mxu0 %v3998
        %v4075 = vpop.f32.mrf.mxu0
        %v4076 = vadd.f32 0.0, %v4075
        %v4077 = vpop.f32.mrf.mxu0
        %v4078 = vadd.f32 0.0, %v4077
        %4079 = vmatmul.bf16.gmra.mxu0 %v4001
        %v4080 = vpop.f32.mrf.mxu0
        %v4081 = vadd.f32 0.0, %v4080
        %v4082 = vpop.f32.mrf.mxu0
        %v4083 = vadd.f32 0.0, %v4082
        %4084 = vmatmul.bf16.gmra.mxu0 %v4004
        %v4085 = vpop.f32.mrf.mxu0
        %v4086 = vadd.f32 0.0, %v4085
        %v4087 = vpop.f32.mrf.mxu0
        %v4088 = vadd.f32 0.0, %v4087
        %4089 = vmatmul.bf16.gmra.mxu0 %v4007
        %v4090 = vpop.f32.mrf.mxu0
        %v4091 = vadd.f32 0.0, %v4090
        %v4092 = vpop.f32.mrf.mxu0
        %v4093 = vadd.f32 0.0, %v4092
        %4094 = vmatmul.bf16.gmra.mxu0 %v4010
        %v4095 = vpop.f32.mrf.mxu0
        %v4096 = vadd.f32 0.0, %v4095
        %v4097 = vpop.f32.mrf.mxu0
        %v4098 = vadd.f32 0.0, %v4097
        %4099 = vmatmul.bf16.gmra.mxu0 %v4013
        %v4100 = vpop.f32.mrf.mxu0
        %v4101 = vadd.f32 0.0, %v4100
        %v4102 = vpop.f32.mrf.mxu0
        %v4103 = vadd.f32 0.0, %v4102
        %4104 = vmatmul.bf16.gmra.mxu0 %v4016
        %v4105 = vpop.f32.mrf.mxu0
        %v4106 = vadd.f32 0.0, %v4105
        %v4107 = vpop.f32.mrf.mxu0
        %v4108 = vadd.f32 0.0, %v4107
        %4109 = vmatmul.bf16.gmra.mxu0 %v4019
        %v4110 = vpop.f32.mrf.mxu0
        %v4111 = vadd.f32 0.0, %v4110
        %v4112 = vpop.f32.mrf.mxu0
        %v4113 = vadd.f32 0.0, %v4112
        %4114 = vmatmul.bf16.gmra.mxu0 %v4022
        %v4115 = vpop.f32.mrf.mxu0
        %v4116 = vadd.f32 0.0, %v4115
        %v4117 = vpop.f32.mrf.mxu0
        %v4118 = vadd.f32 0.0, %v4117
        %4119 = vmatmul.bf16.gmra.mxu0 %v4025
        %v4120 = vpop.f32.mrf.mxu0
        %v4121 = vadd.f32 0.0, %v4120
        %v4122 = vpop.f32.mrf.mxu0
        %v4123 = vadd.f32 0.0, %v4122
        %4124 = vmatmul.bf16.gmra.mxu0 %v4028
        %v4125 = vpop.f32.mrf.mxu0
        %v4126 = vadd.f32 0.0, %v4125
        %v4127 = vpop.f32.mrf.mxu0
        %v4128 = vadd.f32 0.0, %v4127
        %4129 = vmatmul.bf16.gmra.mxu0 %v4031
        %v4130 = vpop.f32.mrf.mxu0
        %v4131 = vadd.f32 0.0, %v4130
        %v4132 = vpop.f32.mrf.mxu0
        %v4133 = vadd.f32 0.0, %v4132
        %4134 = vdwg.mxu0
        %v4135 = vadd.f32 %v3815, %v4046
        %v4136 = vadd.f32 %v3816, %v4048
        %v4137 = vadd.f32 %v3817, %v4051
        %v4138 = vadd.f32 %v3818, %v4053
        %v4139 = vadd.f32 %v3819, %v4056
        %v4140 = vadd.f32 %v3820, %v4058
        %v4141 = vadd.f32 %v3821, %v4061
        %v4142 = vadd.f32 %v3822, %v4063
        %v4143 = vadd.f32 %v3823, %v4066
        %v4144 = vadd.f32 %v3824, %v4068
        %v4145 = vadd.f32 %v3825, %v4071
        %v4146 = vadd.f32 %v3826, %v4073
        %v4147 = vadd.f32 %v3827, %v4076
        %v4148 = vadd.f32 %v3828, %v4078
        %v4149 = vadd.f32 %v3829, %v4081
        %v4150 = vadd.f32 %v3830, %v4083
        %v4151 = vadd.f32 %v3831, %v4086
        %v4152 = vadd.f32 %v3832, %v4088
        %v4153 = vadd.f32 %v3833, %v4091
        %v4154 = vadd.f32 %v3834, %v4093
        %v4155 = vadd.f32 %v3835, %v4096
        %v4156 = vadd.f32 %v3836, %v4098
        %v4157 = vadd.f32 %v3837, %v4101
        %v4158 = vadd.f32 %v3838, %v4103
        %v4159 = vadd.f32 %v3839, %v4106
        %v4160 = vadd.f32 %v3840, %v4108
        %v4161 = vadd.f32 %v3841, %v4111
        %v4162 = vadd.f32 %v3842, %v4113
        %v4163 = vadd.f32 %v3843, %v4116
        %v4164 = vadd.f32 %v3844, %v4118
        %v4165 = vadd.f32 %v3845, %v4121
        %v4166 = vadd.f32 %v3846, %v4123
        %v4167 = vadd.f32 %v3847, %v4126
        %v4168 = vadd.f32 %v3848, %v4128
        %v4169 = vadd.f32 %v3849, %v4131
        %v4170 = vadd.f32 %v3850, %v4133
        %v4171 = vld [vmem:[%s155 + $0x24] sm:$0xf]
        %v4172 = vld [vmem:[%s155 + $0x28] sm:$0xf]
        %v4173 = vld [vmem:[%s155 + $0x2c] sm:$0xf]
        %v4174 = vld [vmem:[%s155 + $0x30] sm:$0xf]
        %v4175 = vld [vmem:[%s155 + $0x34] sm:$0xf]
        %v4176 = vld [vmem:[%s155 + $0x38] sm:$0xf]
        %v4177 = vld [vmem:[%s155 + $0x3c] sm:$0xf]
        %v4178 = vld [vmem:[%s155 + $0x40] sm:$0xf]
        %v4179 = vld [vmem:[%s155 + $0x44] sm:$0xf]
        %v4180 = vld [vmem:[%s155 + $0x48] sm:$0xf]
        %v4181 = vld [vmem:[%s155 + $0x4c] sm:$0xf]
        %v4182 = vld [vmem:[%s155 + $0x50] sm:$0xf]
        %v4183 = vld [vmem:[%s155 + $0x54] sm:$0xf]
        %v4184 = vld [vmem:[%s155 + $0x58] sm:$0xf]
        %v4185 = vld [vmem:[%s155 + $0x5c] sm:$0xf]
        %v4186 = vld [vmem:[%s155 + $0x60] sm:$0xf]
        %v4187 = vld [vmem:[%s155 + $0x64] sm:$0xf]
        %v4188 = vld [vmem:[%s155 + $0x68] sm:$0xf]
        %v4189 = vld [vmem:[%s155 + $0x6c] sm:$0xf]
        %v4190 = vld [vmem:[%s155 + $0x70] sm:$0xf]
        %v4191 = vld [vmem:[%s155 + $0x74] sm:$0xf]
        %v4192 = vld [vmem:[%s155 + $0x78] sm:$0xf]
        %v4193 = vld [vmem:[%s155 + $0x7c] sm:$0xf]
        %v4194 = vld [vmem:[%s155 + $0x80] sm:$0xf]
        %v4195 = vld [vmem:[%s155 + $0x84] sm:$0xf]
        %v4196 = vld [vmem:[%s155 + $0x88] sm:$0xf]
        %v4197 = vld [vmem:[%s155 + $0x8c] sm:$0xf]
        %v4198 = vld [vmem:[%s155 + $0x90] sm:$0xf]
        %v4199 = vld [vmem:[%s155 + $0x94] sm:$0xf]
        %v4200 = vld [vmem:[%s155 + $0x98] sm:$0xf]
        %v4201 = vld [vmem:[%s155 + $0x9c] sm:$0xf]
        %v4202 = vld [vmem:[%s155 + $0xa0] sm:$0xf]
        %v4203 = vld [vmem:[%s155 + $0xa4] sm:$0xf]
        %v4204 = vld [vmem:[%s155 + $0xa8] sm:$0xf]
        %v4205 = vld [vmem:[%s155 + $0xac] sm:$0xf]
        %v4206 = vld [vmem:[%s155 + $0xb0] sm:$0xf]
        %v4207 = vld [vmem:[%s155 + $0xb4] sm:$0x1]
        %s4208 = scalar_lea.vmem %s1, 26
        %v4209 = vld [vmem:[%s4208] sm:$0x3]
        %v4247 = vunpack.c.l.b16 %v4171
        %v4248 = vunpack.c.l.b16 %v4172
        %v4249 = vunpack.c.l.b16 %v4173
        %v4250 = vunpack.c.l.b16 %v4174
        %v4251 = vunpack.c.l.b16 %v4175
        %v4252 = vunpack.c.l.b16 %v4176
        %v4253 = vunpack.c.l.b16 %v4177
        %v4254 = vunpack.c.l.b16 %v4178
        %v4255 = vunpack.c.l.b16 %v4179
        %v4256 = vunpack.c.l.b16 %v4180
        %v4257 = vunpack.c.l.b16 %v4181
        %v4258 = vunpack.c.l.b16 %v4182
        %v4259 = vunpack.c.l.b16 %v4183
        %v4260 = vunpack.c.l.b16 %v4184
        %v4261 = vunpack.c.l.b16 %v4185
        %v4262 = vunpack.c.l.b16 %v4186
        %v4263 = vunpack.c.l.b16 %v4187
        %v4264 = vunpack.c.l.b16 %v4188
        %v4265 = vunpack.c.l.b16 %v4189
        %v4266 = vunpack.c.l.b16 %v4190
        %v4267 = vunpack.c.l.b16 %v4191
        %v4268 = vunpack.c.l.b16 %v4192
        %v4269 = vunpack.c.l.b16 %v4193
        %v4270 = vunpack.c.l.b16 %v4194
        %v4271 = vunpack.c.l.b16 %v4195
        %v4272 = vunpack.c.l.b16 %v4196
        %v4273 = vunpack.c.l.b16 %v4197
        %v4274 = vunpack.c.l.b16 %v4198
        %v4275 = vunpack.c.l.b16 %v4199
        %v4276 = vunpack.c.l.b16 %v4200
        %v4277 = vunpack.c.l.b16 %v4201
        %v4278 = vunpack.c.l.b16 %v4202
        %v4279 = vunpack.c.l.b16 %v4203
        %v4280 = vunpack.c.l.b16 %v4204
        %v4281 = vunpack.c.l.b16 %v4205
        %v4282 = vunpack.c.l.b16 %v4206
        %v4283 = vunpack.c.l.b16 %v4207
        %v4284 = vpack.c.b16 %v4248, %v4247
        %v4285 = vpack.c.b16 %v4250, %v4249
        %v4286 = vpack.c.b16 %v4252, %v4251
        %v4287 = vpack.c.b16 %v4254, %v4253
        %v4288 = vpack.c.b16 %v4256, %v4255
        %v4289 = vpack.c.b16 %v4258, %v4257
        %v4290 = vpack.c.b16 %v4260, %v4259
        %v4291 = vpack.c.b16 %v4262, %v4261
        %v4292 = vpack.c.b16 %v4264, %v4263
        %v4293 = vpack.c.b16 %v4266, %v4265
        %v4294 = vpack.c.b16 %v4268, %v4267
        %v4295 = vpack.c.b16 %v4270, %v4269
        %v4296 = vpack.c.b16 %v4272, %v4271
        %v4297 = vpack.c.b16 %v4274, %v4273
        %v4298 = vpack.c.b16 %v4276, %v4275
        %v4299 = vpack.c.b16 %v4278, %v4277
        %v4300 = vpack.c.b16 %v4280, %v4279
        %v4301 = vpack.c.b16 %v4282, %v4281
        %v4302 = vpack.c.b16 %v4283, %v4283
        %v4304 = vshrl.u32 %v4284, 16
        %v4306 = vshll.u32 %v4284, 16
        %v4308 = vrot.slane %v4306, 1
        %v4309 = vor.u32 %v4304, %v4308
        %v4311 = vshll.u32 %v4285, 16
        %v4313 = vrot.slane %v4311, 1
        %v4314 = vsel %vm296, %v4309, %v4313
        %v4315 = vshrl.u32 %v4285, 16
        %v4317 = vor.u32 %v4315, %v4313
        %v4319 = vshll.u32 %v4286, 16
        %v4321 = vrot.slane %v4319, 1
        %v4322 = vsel %vm296, %v4317, %v4321
        %v4323 = vshrl.u32 %v4286, 16
        %v4325 = vor.u32 %v4323, %v4321
        %v4327 = vshll.u32 %v4287, 16
        %v4329 = vrot.slane %v4327, 1
        %v4330 = vsel %vm296, %v4325, %v4329
        %v4331 = vshrl.u32 %v4287, 16
        %v4333 = vor.u32 %v4331, %v4329
        %v4335 = vshll.u32 %v4288, 16
        %v4337 = vrot.slane %v4335, 1
        %v4338 = vsel %vm296, %v4333, %v4337
        %v4339 = vshrl.u32 %v4288, 16
        %v4341 = vor.u32 %v4339, %v4337
        %v4343 = vshll.u32 %v4289, 16
        %v4345 = vrot.slane %v4343, 1
        %v4346 = vsel %vm296, %v4341, %v4345
        %v4347 = vshrl.u32 %v4289, 16
        %v4349 = vor.u32 %v4347, %v4345
        %v4351 = vshll.u32 %v4290, 16
        %v4353 = vrot.slane %v4351, 1
        %v4354 = vsel %vm296, %v4349, %v4353
        %v4355 = vshrl.u32 %v4290, 16
        %v4357 = vor.u32 %v4355, %v4353
        %v4359 = vshll.u32 %v4291, 16
        %v4361 = vrot.slane %v4359, 1
        %v4362 = vsel %vm296, %v4357, %v4361
        %v4363 = vshrl.u32 %v4291, 16
        %v4365 = vor.u32 %v4363, %v4361
        %v4367 = vshll.u32 %v4292, 16
        %v4369 = vrot.slane %v4367, 1
        %v4370 = vsel %vm296, %v4365, %v4369
        %v4371 = vshrl.u32 %v4292, 16
        %v4373 = vor.u32 %v4371, %v4369
        %v4375 = vshll.u32 %v4293, 16
        %v4377 = vrot.slane %v4375, 1
        %v4378 = vsel %vm296, %v4373, %v4377
        %v4379 = vshrl.u32 %v4293, 16
        %v4381 = vor.u32 %v4379, %v4377
        %v4383 = vshll.u32 %v4294, 16
        %v4385 = vrot.slane %v4383, 1
        %v4386 = vsel %vm296, %v4381, %v4385
        %v4387 = vshrl.u32 %v4294, 16
        %v4389 = vor.u32 %v4387, %v4385
        %v4391 = vshll.u32 %v4295, 16
        %v4393 = vrot.slane %v4391, 1
        %v4394 = vsel %vm296, %v4389, %v4393
        %v4395 = vshrl.u32 %v4295, 16
        %v4397 = vor.u32 %v4395, %v4393
        %v4399 = vshll.u32 %v4296, 16
        %v4401 = vrot.slane %v4399, 1
        %v4402 = vsel %vm296, %v4397, %v4401
        %v4403 = vshrl.u32 %v4296, 16
        %v4405 = vor.u32 %v4403, %v4401
        %v4407 = vshll.u32 %v4297, 16
        %v4409 = vrot.slane %v4407, 1
        %v4410 = vsel %vm296, %v4405, %v4409
        %v4411 = vshrl.u32 %v4297, 16
        %v4413 = vor.u32 %v4411, %v4409
        %v4415 = vshll.u32 %v4298, 16
        %v4417 = vrot.slane %v4415, 1
        %v4418 = vsel %vm296, %v4413, %v4417
        %v4419 = vshrl.u32 %v4298, 16
        %v4421 = vor.u32 %v4419, %v4417
        %v4423 = vshll.u32 %v4299, 16
        %v4425 = vrot.slane %v4423, 1
        %v4426 = vsel %vm296, %v4421, %v4425
        %v4427 = vshrl.u32 %v4299, 16
        %v4429 = vor.u32 %v4427, %v4425
        %v4431 = vshll.u32 %v4300, 16
        %v4433 = vrot.slane %v4431, 1
        %v4434 = vsel %vm296, %v4429, %v4433
        %v4435 = vshrl.u32 %v4300, 16
        %v4437 = vor.u32 %v4435, %v4433
        %v4439 = vshll.u32 %v4301, 16
        %v4441 = vrot.slane %v4439, 1
        %v4442 = vsel %vm296, %v4437, %v4441
        %v4443 = vshrl.u32 %v4301, 16
        %v4445 = vor.u32 %v4443, %v4441
        %v4447 = vshll.u32 %v4302, 16
        %v4449 = vrot.slane %v4447, 1
        %v4450 = vsel %vm296, %v4445, %v4449
        %v4452 = vsel %vm445, %v4314, 0
        %v4455 = vsel %vm445, %v4322, 0
        %v4458 = vsel %vm445, %v4330, 0
        %v4461 = vsel %vm445, %v4338, 0
        %v4464 = vsel %vm445, %v4346, 0
        %v4467 = vsel %vm445, %v4354, 0
        %v4470 = vsel %vm445, %v4362, 0
        %v4473 = vsel %vm445, %v4370, 0
        %v4476 = vsel %vm445, %v4378, 0
        %v4479 = vsel %vm445, %v4386, 0
        %v4482 = vsel %vm445, %v4394, 0
        %v4485 = vsel %vm445, %v4402, 0
        %v4488 = vsel %vm445, %v4410, 0
        %v4491 = vsel %vm445, %v4418, 0
        %v4494 = vsel %vm445, %v4426, 0
        %v4497 = vsel %vm445, %v4434, 0
        %v4500 = vsel %vm445, %v4442, 0
        %v4503 = vsel %vm445, %v4450, 0
        %v4506 = vsel %vm500, %v4209, 0
        %4508 = vmatpush.bf16.msra.mxu0 0
        %4509 = vmatpush.bf16.msra.mxu0 0
        %4510 = vmatpush.bf16.msra.mxu0 0
        %4511 = vmatpush.bf16.msra.mxu0 0
        %4512 = vmatpush.bf16.msra.mxu0 0
        %4513 = vmatpush.bf16.msra.mxu0 0
        %4514 = vmatpush.bf16.msra.mxu0 0
        %4515 = vmatpush.bf16.msra.mxu0 %v4506
        %4516 = vmatmul.bf16.gmra.mxu0 %v4452
        %v4517 = vpop.f32.mrf.mxu0
        %v4518 = vadd.f32 0.0, %v4517
        %v4519 = vpop.f32.mrf.mxu0
        %v4520 = vadd.f32 0.0, %v4519
        %4521 = vmatmul.bf16.gmra.mxu0 %v4455
        %v4522 = vpop.f32.mrf.mxu0
        %v4523 = vadd.f32 0.0, %v4522
        %v4524 = vpop.f32.mrf.mxu0
        %v4525 = vadd.f32 0.0, %v4524
        %4526 = vmatmul.bf16.gmra.mxu0 %v4458
        %v4527 = vpop.f32.mrf.mxu0
        %v4528 = vadd.f32 0.0, %v4527
        %v4529 = vpop.f32.mrf.mxu0
        %v4530 = vadd.f32 0.0, %v4529
        %4531 = vmatmul.bf16.gmra.mxu0 %v4461
        %v4532 = vpop.f32.mrf.mxu0
        %v4533 = vadd.f32 0.0, %v4532
        %v4534 = vpop.f32.mrf.mxu0
        %v4535 = vadd.f32 0.0, %v4534
        %4536 = vmatmul.bf16.gmra.mxu0 %v4464
        %v4537 = vpop.f32.mrf.mxu0
        %v4538 = vadd.f32 0.0, %v4537
        %v4539 = vpop.f32.mrf.mxu0
        %v4540 = vadd.f32 0.0, %v4539
        %4541 = vmatmul.bf16.gmra.mxu0 %v4467
        %v4542 = vpop.f32.mrf.mxu0
        %v4543 = vadd.f32 0.0, %v4542
        %v4544 = vpop.f32.mrf.mxu0
        %v4545 = vadd.f32 0.0, %v4544
        %4546 = vmatmul.bf16.gmra.mxu0 %v4470
        %v4547 = vpop.f32.mrf.mxu0
        %v4548 = vadd.f32 0.0, %v4547
        %v4549 = vpop.f32.mrf.mxu0
        %v4550 = vadd.f32 0.0, %v4549
        %4551 = vmatmul.bf16.gmra.mxu0 %v4473
        %v4552 = vpop.f32.mrf.mxu0
        %v4553 = vadd.f32 0.0, %v4552
        %v4554 = vpop.f32.mrf.mxu0
        %v4555 = vadd.f32 0.0, %v4554
        %4556 = vmatmul.bf16.gmra.mxu0 %v4476
        %v4557 = vpop.f32.mrf.mxu0
        %v4558 = vadd.f32 0.0, %v4557
        %v4559 = vpop.f32.mrf.mxu0
        %v4560 = vadd.f32 0.0, %v4559
        %4561 = vmatmul.bf16.gmra.mxu0 %v4479
        %v4562 = vpop.f32.mrf.mxu0
        %v4563 = vadd.f32 0.0, %v4562
        %v4564 = vpop.f32.mrf.mxu0
        %v4565 = vadd.f32 0.0, %v4564
        %4566 = vmatmul.bf16.gmra.mxu0 %v4482
        %v4567 = vpop.f32.mrf.mxu0
        %v4568 = vadd.f32 0.0, %v4567
        %v4569 = vpop.f32.mrf.mxu0
        %v4570 = vadd.f32 0.0, %v4569
        %4571 = vmatmul.bf16.gmra.mxu0 %v4485
        %v4572 = vpop.f32.mrf.mxu0
        %v4573 = vadd.f32 0.0, %v4572
        %v4574 = vpop.f32.mrf.mxu0
        %v4575 = vadd.f32 0.0, %v4574
        %4576 = vmatmul.bf16.gmra.mxu0 %v4488
        %v4577 = vpop.f32.mrf.mxu0
        %v4578 = vadd.f32 0.0, %v4577
        %v4579 = vpop.f32.mrf.mxu0
        %v4580 = vadd.f32 0.0, %v4579
        %4581 = vmatmul.bf16.gmra.mxu0 %v4491
        %v4582 = vpop.f32.mrf.mxu0
        %v4583 = vadd.f32 0.0, %v4582
        %v4584 = vpop.f32.mrf.mxu0
        %v4585 = vadd.f32 0.0, %v4584
        %4586 = vmatmul.bf16.gmra.mxu0 %v4494
        %v4587 = vpop.f32.mrf.mxu0
        %v4588 = vadd.f32 0.0, %v4587
        %v4589 = vpop.f32.mrf.mxu0
        %v4590 = vadd.f32 0.0, %v4589
        %4591 = vmatmul.bf16.gmra.mxu0 %v4497
        %v4592 = vpop.f32.mrf.mxu0
        %v4593 = vadd.f32 0.0, %v4592
        %v4594 = vpop.f32.mrf.mxu0
        %v4595 = vadd.f32 0.0, %v4594
        %4596 = vmatmul.bf16.gmra.mxu0 %v4500
        %v4597 = vpop.f32.mrf.mxu0
        %v4598 = vadd.f32 0.0, %v4597
        %v4599 = vpop.f32.mrf.mxu0
        %v4600 = vadd.f32 0.0, %v4599
        %4601 = vmatmul.bf16.gmra.mxu0 %v4503
        %v4602 = vpop.f32.mrf.mxu0
        %v4603 = vadd.f32 0.0, %v4602
        %v4604 = vpop.f32.mrf.mxu0
        %v4605 = vadd.f32 0.0, %v4604
        %4606 = vdwg.mxu0
        %v4607 = vadd.f32 %v4135, %v4518
        %v4608 = vadd.f32 %v4136, %v4520
        %v4609 = vadd.f32 %v4137, %v4523
        %v4610 = vadd.f32 %v4138, %v4525
        %v4611 = vadd.f32 %v4139, %v4528
        %v4612 = vadd.f32 %v4140, %v4530
        %v4613 = vadd.f32 %v4141, %v4533
        %v4614 = vadd.f32 %v4142, %v4535
        %v4615 = vadd.f32 %v4143, %v4538
        %v4616 = vadd.f32 %v4144, %v4540
        %v4617 = vadd.f32 %v4145, %v4543
        %v4618 = vadd.f32 %v4146, %v4545
        %v4619 = vadd.f32 %v4147, %v4548
        %v4620 = vadd.f32 %v4148, %v4550
        %v4621 = vadd.f32 %v4149, %v4553
        %v4622 = vadd.f32 %v4150, %v4555
        %v4623 = vadd.f32 %v4151, %v4558
        %v4624 = vadd.f32 %v4152, %v4560
        %v4625 = vadd.f32 %v4153, %v4563
        %v4626 = vadd.f32 %v4154, %v4565
        %v4627 = vadd.f32 %v4155, %v4568
        %v4628 = vadd.f32 %v4156, %v4570
        %v4629 = vadd.f32 %v4157, %v4573
        %v4630 = vadd.f32 %v4158, %v4575
        %v4631 = vadd.f32 %v4159, %v4578
        %v4632 = vadd.f32 %v4160, %v4580
        %v4633 = vadd.f32 %v4161, %v4583
        %v4634 = vadd.f32 %v4162, %v4585
        %v4635 = vadd.f32 %v4163, %v4588
        %v4636 = vadd.f32 %v4164, %v4590
        %v4637 = vadd.f32 %v4165, %v4593
        %v4638 = vadd.f32 %v4166, %v4595
        %v4639 = vadd.f32 %v4167, %v4598
        %v4640 = vadd.f32 %v4168, %v4600
        %v4641 = vadd.f32 %v4169, %v4603
        %v4642 = vadd.f32 %v4170, %v4605
        %v4643 = vld [vmem:[%s155 + $0x24] sm:$0xe]
        %s4644 = scalar_lea.vmem %s1, 28
        %v4645 = vld [vmem:[%s4644] sm:$0x3]
        %v4647 = vunpack.c.l.b16 %v4643
        %v4648 = vpack.c.b16 %v4248, %v4647
        %v4649 = vrot.slane %v4648, 1
        %v4650 = vrot.slane %v4285, 1
        %v4651 = vsel %vm747, %v4649, %v4650
        %v4652 = vrot.slane %v4286, 1
        %v4653 = vsel %vm747, %v4650, %v4652
        %v4654 = vrot.slane %v4287, 1
        %v4655 = vsel %vm747, %v4652, %v4654
        %v4656 = vrot.slane %v4288, 1
        %v4657 = vsel %vm747, %v4654, %v4656
        %v4658 = vrot.slane %v4289, 1
        %v4659 = vsel %vm747, %v4656, %v4658
        %v4660 = vrot.slane %v4290, 1
        %v4661 = vsel %vm747, %v4658, %v4660
        %v4662 = vrot.slane %v4291, 1
        %v4663 = vsel %vm747, %v4660, %v4662
        %v4664 = vrot.slane %v4292, 1
        %v4665 = vsel %vm747, %v4662, %v4664
        %v4666 = vrot.slane %v4293, 1
        %v4667 = vsel %vm747, %v4664, %v4666
        %v4668 = vrot.slane %v4294, 1
        %v4669 = vsel %vm747, %v4666, %v4668
        %v4670 = vrot.slane %v4295, 1
        %v4671 = vsel %vm747, %v4668, %v4670
        %v4672 = vrot.slane %v4296, 1
        %v4673 = vsel %vm747, %v4670, %v4672
        %v4674 = vrot.slane %v4297, 1
        %v4675 = vsel %vm747, %v4672, %v4674
        %v4676 = vrot.slane %v4298, 1
        %v4677 = vsel %vm747, %v4674, %v4676
        %v4678 = vrot.slane %v4299, 1
        %v4679 = vsel %vm747, %v4676, %v4678
        %v4680 = vrot.slane %v4300, 1
        %v4681 = vsel %vm747, %v4678, %v4680
        %v4682 = vrot.slane %v4301, 1
        %v4683 = vsel %vm747, %v4680, %v4682
        %v4684 = vrot.slane %v4302, 1
        %v4685 = vsel %vm747, %v4682, %v4684
        %v4687 = vsel %vm445, %v4651, 0
        %v4690 = vsel %vm445, %v4653, 0
        %v4693 = vsel %vm445, %v4655, 0
        %v4696 = vsel %vm445, %v4657, 0
        %v4699 = vsel %vm445, %v4659, 0
        %v4702 = vsel %vm445, %v4661, 0
        %v4705 = vsel %vm445, %v4663, 0
        %v4708 = vsel %vm445, %v4665, 0
        %v4711 = vsel %vm445, %v4667, 0
        %v4714 = vsel %vm445, %v4669, 0
        %v4717 = vsel %vm445, %v4671, 0
        %v4720 = vsel %vm445, %v4673, 0
        %v4723 = vsel %vm445, %v4675, 0
        %v4726 = vsel %vm445, %v4677, 0
        %v4729 = vsel %vm445, %v4679, 0
        %v4732 = vsel %vm445, %v4681, 0
        %v4735 = vsel %vm445, %v4683, 0
        %v4738 = vsel %vm445, %v4685, 0
        %v4741 = vsel %vm500, %v4645, 0
        %4743 = vmatpush.bf16.msra.mxu0 0
        %4744 = vmatpush.bf16.msra.mxu0 0
        %4745 = vmatpush.bf16.msra.mxu0 0
        %4746 = vmatpush.bf16.msra.mxu0 0
        %4747 = vmatpush.bf16.msra.mxu0 0
        %4748 = vmatpush.bf16.msra.mxu0 0
        %4749 = vmatpush.bf16.msra.mxu0 0
        %4750 = vmatpush.bf16.msra.mxu0 %v4741
        %4751 = vmatmul.bf16.gmra.mxu0 %v4687
        %v4752 = vpop.f32.mrf.mxu0
        %v4753 = vadd.f32 0.0, %v4752
        %v4754 = vpop.f32.mrf.mxu0
        %v4755 = vadd.f32 0.0, %v4754
        %4756 = vmatmul.bf16.gmra.mxu0 %v4690
        %v4757 = vpop.f32.mrf.mxu0
        %v4758 = vadd.f32 0.0, %v4757
        %v4759 = vpop.f32.mrf.mxu0
        %v4760 = vadd.f32 0.0, %v4759
        %4761 = vmatmul.bf16.gmra.mxu0 %v4693
        %v4762 = vpop.f32.mrf.mxu0
        %v4763 = vadd.f32 0.0, %v4762
        %v4764 = vpop.f32.mrf.mxu0
        %v4765 = vadd.f32 0.0, %v4764
        %4766 = vmatmul.bf16.gmra.mxu0 %v4696
        %v4767 = vpop.f32.mrf.mxu0
        %v4768 = vadd.f32 0.0, %v4767
        %v4769 = vpop.f32.mrf.mxu0
        %v4770 = vadd.f32 0.0, %v4769
        %4771 = vmatmul.bf16.gmra.mxu0 %v4699
        %v4772 = vpop.f32.mrf.mxu0
        %v4773 = vadd.f32 0.0, %v4772
        %v4774 = vpop.f32.mrf.mxu0
        %v4775 = vadd.f32 0.0, %v4774
        %4776 = vmatmul.bf16.gmra.mxu0 %v4702
        %v4777 = vpop.f32.mrf.mxu0
        %v4778 = vadd.f32 0.0, %v4777
        %v4779 = vpop.f32.mrf.mxu0
        %v4780 = vadd.f32 0.0, %v4779
        %4781 = vmatmul.bf16.gmra.mxu0 %v4705
        %v4782 = vpop.f32.mrf.mxu0
        %v4783 = vadd.f32 0.0, %v4782
        %v4784 = vpop.f32.mrf.mxu0
        %v4785 = vadd.f32 0.0, %v4784
        %4786 = vmatmul.bf16.gmra.mxu0 %v4708
        %v4787 = vpop.f32.mrf.mxu0
        %v4788 = vadd.f32 0.0, %v4787
        %v4789 = vpop.f32.mrf.mxu0
        %v4790 = vadd.f32 0.0, %v4789
        %4791 = vmatmul.bf16.gmra.mxu0 %v4711
        %v4792 = vpop.f32.mrf.mxu0
        %v4793 = vadd.f32 0.0, %v4792
        %v4794 = vpop.f32.mrf.mxu0
        %v4795 = vadd.f32 0.0, %v4794
        %4796 = vmatmul.bf16.gmra.mxu0 %v4714
        %v4797 = vpop.f32.mrf.mxu0
        %v4798 = vadd.f32 0.0, %v4797
        %v4799 = vpop.f32.mrf.mxu0
        %v4800 = vadd.f32 0.0, %v4799
        %4801 = vmatmul.bf16.gmra.mxu0 %v4717
        %v4802 = vpop.f32.mrf.mxu0
        %v4803 = vadd.f32 0.0, %v4802
        %v4804 = vpop.f32.mrf.mxu0
        %v4805 = vadd.f32 0.0, %v4804
        %4806 = vmatmul.bf16.gmra.mxu0 %v4720
        %v4807 = vpop.f32.mrf.mxu0
        %v4808 = vadd.f32 0.0, %v4807
        %v4809 = vpop.f32.mrf.mxu0
        %v4810 = vadd.f32 0.0, %v4809
        %4811 = vmatmul.bf16.gmra.mxu0 %v4723
        %v4812 = vpop.f32.mrf.mxu0
        %v4813 = vadd.f32 0.0, %v4812
        %v4814 = vpop.f32.mrf.mxu0
        %v4815 = vadd.f32 0.0, %v4814
        %4816 = vmatmul.bf16.gmra.mxu0 %v4726
        %v4817 = vpop.f32.mrf.mxu0
        %v4818 = vadd.f32 0.0, %v4817
        %v4819 = vpop.f32.mrf.mxu0
        %v4820 = vadd.f32 0.0, %v4819
        %4821 = vmatmul.bf16.gmra.mxu0 %v4729
        %v4822 = vpop.f32.mrf.mxu0
        %v4823 = vadd.f32 0.0, %v4822
        %v4824 = vpop.f32.mrf.mxu0
        %v4825 = vadd.f32 0.0, %v4824
        %4826 = vmatmul.bf16.gmra.mxu0 %v4732
        %v4827 = vpop.f32.mrf.mxu0
        %v4828 = vadd.f32 0.0, %v4827
        %v4829 = vpop.f32.mrf.mxu0
        %v4830 = vadd.f32 0.0, %v4829
        %4831 = vmatmul.bf16.gmra.mxu0 %v4735
        %v4832 = vpop.f32.mrf.mxu0
        %v4833 = vadd.f32 0.0, %v4832
        %v4834 = vpop.f32.mrf.mxu0
        %v4835 = vadd.f32 0.0, %v4834
        %4836 = vmatmul.bf16.gmra.mxu0 %v4738
        %v4837 = vpop.f32.mrf.mxu0
        %v4838 = vadd.f32 0.0, %v4837
        %v4839 = vpop.f32.mrf.mxu0
        %v4840 = vadd.f32 0.0, %v4839
        %4841 = vdwg.mxu0
        %v4842 = vadd.f32 %v4607, %v4753
        %v4843 = vadd.f32 %v4608, %v4755
        %v4844 = vadd.f32 %v4609, %v4758
        %v4845 = vadd.f32 %v4610, %v4760
        %v4846 = vadd.f32 %v4611, %v4763
        %v4847 = vadd.f32 %v4612, %v4765
        %v4848 = vadd.f32 %v4613, %v4768
        %v4849 = vadd.f32 %v4614, %v4770
        %v4850 = vadd.f32 %v4615, %v4773
        %v4851 = vadd.f32 %v4616, %v4775
        %v4852 = vadd.f32 %v4617, %v4778
        %v4853 = vadd.f32 %v4618, %v4780
        %v4854 = vadd.f32 %v4619, %v4783
        %v4855 = vadd.f32 %v4620, %v4785
        %v4856 = vadd.f32 %v4621, %v4788
        %v4857 = vadd.f32 %v4622, %v4790
        %v4858 = vadd.f32 %v4623, %v4793
        %v4859 = vadd.f32 %v4624, %v4795
        %v4860 = vadd.f32 %v4625, %v4798
        %v4861 = vadd.f32 %v4626, %v4800
        %v4862 = vadd.f32 %v4627, %v4803
        %v4863 = vadd.f32 %v4628, %v4805
        %v4864 = vadd.f32 %v4629, %v4808
        %v4865 = vadd.f32 %v4630, %v4810
        %v4866 = vadd.f32 %v4631, %v4813
        %v4867 = vadd.f32 %v4632, %v4815
        %v4868 = vadd.f32 %v4633, %v4818
        %v4869 = vadd.f32 %v4634, %v4820
        %v4870 = vadd.f32 %v4635, %v4823
        %v4871 = vadd.f32 %v4636, %v4825
        %v4872 = vadd.f32 %v4637, %v4828
        %v4873 = vadd.f32 %v4638, %v4830
        %v4874 = vadd.f32 %v4639, %v4833
        %v4875 = vadd.f32 %v4640, %v4835
        %v4876 = vadd.f32 %v4641, %v4838
        %v4877 = vadd.f32 %v4642, %v4840
        %v4878 = vadd.f32 %v4842, 0.0
        %v4879 = vadd.f32 %v4843, 0.0
        %v4880 = vmul.f32 %v4842, %v4842
        %v4881 = vmul.f32 %v4843, %v4843
        %v4882 = vadd.f32 %v4880, 0.0
        %v4883 = vadd.f32 %v4881, 0.0
        %vm4887 = vcmask 1045504
        %v4888 = vrot.slane %v4844, 2
        %v4889 = vrot.slane %v4845, 2
        %v4890 = vsel %vm4887, %v4888, %v4889
        %v4891 = vrot.slane %v4846, 2
        %v4892 = vsel %vm4887, %v4889, %v4891
        %v4895 = vadd.f32 %v4878, %v4890
        %v4896 = vadd.f32 %v4879, %v4892
        %v4897 = vmul.f32 %v4844, %v4844
        %v4898 = vmul.f32 %v4845, %v4845
        %v4899 = vmul.f32 %v4846, %v4846
        %v4903 = vrot.slane %v4897, 2
        %v4904 = vrot.slane %v4898, 2
        %v4905 = vsel %vm4887, %v4903, %v4904
        %v4906 = vrot.slane %v4899, 2
        %v4907 = vsel %vm4887, %v4904, %v4906
        %v4910 = vadd.f32 %v4882, %v4905
        %v4911 = vadd.f32 %v4883, %v4907
        %vm4914 = vcmask 1043456
        %v4915 = vrot.slane %v4846, 4
        %v4916 = vrot.slane %v4847, 4
        %v4917 = vsel %vm4914, %v4915, %v4916
        %v4918 = vrot.slane %v4848, 4
        %v4919 = vsel %vm4914, %v4916, %v4918
        %v4922 = vadd.f32 %v4895, %v4917
        %v4923 = vadd.f32 %v4896, %v4919
        %v4924 = vmul.f32 %v4847, %v4847
        %v4925 = vmul.f32 %v4848, %v4848
        %v4928 = vrot.slane %v4899, 4
        %v4929 = vrot.slane %v4924, 4
        %v4930 = vsel %vm4914, %v4928, %v4929
        %v4931 = vrot.slane %v4925, 4
        %v4932 = vsel %vm4914, %v4929, %v4931
        %v4935 = vadd.f32 %v4910, %v4930
        %v4936 = vadd.f32 %v4911, %v4932
        %v4939 = vrot.slane %v4848, 6
        %v4940 = vrot.slane %v4849, 6
        %v4941 = vsel %vm500, %v4939, %v4940
        %v4942 = vrot.slane %v4850, 6
        %v4943 = vsel %vm500, %v4940, %v4942
        %v4946 = vadd.f32 %v4922, %v4941
        %v4947 = vadd.f32 %v4923, %v4943
        %v4948 = vmul.f32 %v4849, %v4849
        %v4949 = vmul.f32 %v4850, %v4850
        %v4952 = vrot.slane %v4925, 6
        %v4953 = vrot.slane %v4948, 6
        %v4954 = vsel %vm500, %v4952, %v4953
        %v4955 = vrot.slane %v4949, 6
        %v4956 = vsel %vm500, %v4953, %v4955
        %v4959 = vadd.f32 %v4935, %v4954
        %v4960 = vadd.f32 %v4936, %v4956
        %v4961 = vadd.f32 %v4946, %v4851
        %v4962 = vadd.f32 %v4947, %v4852
        %v4963 = vmul.f32 %v4851, %v4851
        %v4964 = vmul.f32 %v4852, %v4852
        %v4965 = vadd.f32 %v4959, %v4963
        %v4966 = vadd.f32 %v4960, %v4964
        %v4970 = vrot.slane %v4853, 2
        %v4971 = vrot.slane %v4854, 2
        %v4972 = vsel %vm4887, %v4970, %v4971
        %v4973 = vrot.slane %v4855, 2
        %v4974 = vsel %vm4887, %v4971, %v4973
        %v4977 = vadd.f32 %v4961, %v4972
        %v4978 = vadd.f32 %v4962, %v4974
        %v4979 = vmul.f32 %v4853, %v4853
        %v4980 = vmul.f32 %v4854, %v4854
        %v4981 = vmul.f32 %v4855, %v4855
        %v4985 = vrot.slane %v4979, 2
        %v4986 = vrot.slane %v4980, 2
        %v4987 = vsel %vm4887, %v4985, %v4986
        %v4988 = vrot.slane %v4981, 2
        %v4989 = vsel %vm4887, %v4986, %v4988
        %v4992 = vadd.f32 %v4965, %v4987
        %v4993 = vadd.f32 %v4966, %v4989
        %v4996 = vrot.slane %v4855, 4
        %v4997 = vrot.slane %v4856, 4
        %v4998 = vsel %vm4914, %v4996, %v4997
        %v4999 = vrot.slane %v4857, 4
        %v5000 = vsel %vm4914, %v4997, %v4999
        %v5003 = vadd.f32 %v4977, %v4998
        %v5004 = vadd.f32 %v4978, %v5000
        %v5005 = vmul.f32 %v4856, %v4856
        %v5006 = vmul.f32 %v4857, %v4857
        %v5009 = vrot.slane %v4981, 4
        %v5010 = vrot.slane %v5005, 4
        %v5011 = vsel %vm4914, %v5009, %v5010
        %v5012 = vrot.slane %v5006, 4
        %v5013 = vsel %vm4914, %v5010, %v5012
        %v5016 = vadd.f32 %v4992, %v5011
        %v5017 = vadd.f32 %v4993, %v5013
        %v5020 = vrot.slane %v4857, 6
        %v5021 = vrot.slane %v4858, 6
        %v5022 = vsel %vm500, %v5020, %v5021
        %v5023 = vrot.slane %v4859, 6
        %v5024 = vsel %vm500, %v5021, %v5023
        %v5027 = vadd.f32 %v5003, %v5022
        %v5028 = vadd.f32 %v5004, %v5024
        %v5029 = vmul.f32 %v4858, %v4858
        %v5030 = vmul.f32 %v4859, %v4859
        %v5033 = vrot.slane %v5006, 6
        %v5034 = vrot.slane %v5029, 6
        %v5035 = vsel %vm500, %v5033, %v5034
        %v5036 = vrot.slane %v5030, 6
        %v5037 = vsel %vm500, %v5034, %v5036
        %v5040 = vadd.f32 %v5016, %v5035
        %v5041 = vadd.f32 %v5017, %v5037
        %v5042 = vadd.f32 %v5027, %v4860
        %v5043 = vadd.f32 %v5028, %v4861
        %v5044 = vmul.f32 %v4860, %v4860
        %v5045 = vmul.f32 %v4861, %v4861
        %v5046 = vadd.f32 %v5040, %v5044
        %v5047 = vadd.f32 %v5041, %v5045
        %v5051 = vrot.slane %v4862, 2
        %v5052 = vrot.slane %v4863, 2
        %v5053 = vsel %vm4887, %v5051, %v5052
        %v5054 = vrot.slane %v4864, 2
        %v5055 = vsel %vm4887, %v5052, %v5054
        %v5058 = vadd.f32 %v5042, %v5053
        %v5059 = vadd.f32 %v5043, %v5055
        %v5060 = vmul.f32 %v4862, %v4862
        %v5061 = vmul.f32 %v4863, %v4863
        %v5062 = vmul.f32 %v4864, %v4864
        %v5066 = vrot.slane %v5060, 2
        %v5067 = vrot.slane %v5061, 2
        %v5068 = vsel %vm4887, %v5066, %v5067
        %v5069 = vrot.slane %v5062, 2
        %v5070 = vsel %vm4887, %v5067, %v5069
        %v5073 = vadd.f32 %v5046, %v5068
        %v5074 = vadd.f32 %v5047, %v5070
        %v5077 = vrot.slane %v4864, 4
        %v5078 = vrot.slane %v4865, 4
        %v5079 = vsel %vm4914, %v5077, %v5078
        %v5080 = vrot.slane %v4866, 4
        %v5081 = vsel %vm4914, %v5078, %v5080
        %v5084 = vadd.f32 %v5058, %v5079
        %v5085 = vadd.f32 %v5059, %v5081
        %v5086 = vmul.f32 %v4865, %v4865
        %v5087 = vmul.f32 %v4866, %v4866
        %v5090 = vrot.slane %v5062, 4
        %v5091 = vrot.slane %v5086, 4
        %v5092 = vsel %vm4914, %v5090, %v5091
        %v5093 = vrot.slane %v5087, 4
        %v5094 = vsel %vm4914, %v5091, %v5093
        %v5097 = vadd.f32 %v5073, %v5092
        %v5098 = vadd.f32 %v5074, %v5094
        %v5101 = vrot.slane %v4866, 6
        %v5102 = vrot.slane %v4867, 6
        %v5103 = vsel %vm500, %v5101, %v5102
        %v5104 = vrot.slane %v4868, 6
        %v5105 = vsel %vm500, %v5102, %v5104
        %v5108 = vadd.f32 %v5084, %v5103
        %v5109 = vadd.f32 %v5085, %v5105
        %v5110 = vmul.f32 %v4867, %v4867
        %v5111 = vmul.f32 %v4868, %v4868
        %v5114 = vrot.slane %v5087, 6
        %v5115 = vrot.slane %v5110, 6
        %v5116 = vsel %vm500, %v5114, %v5115
        %v5117 = vrot.slane %v5111, 6
        %v5118 = vsel %vm500, %v5115, %v5117
        %v5121 = vadd.f32 %v5097, %v5116
        %v5122 = vadd.f32 %v5098, %v5118
        %v5123 = vadd.f32 %v5108, %v4869
        %v5124 = vadd.f32 %v5109, %v4870
        %v5125 = vmul.f32 %v4869, %v4869
        %v5126 = vmul.f32 %v4870, %v4870
        %v5127 = vadd.f32 %v5121, %v5125
        %v5128 = vadd.f32 %v5122, %v5126
        %v5132 = vrot.slane %v4871, 2
        %v5133 = vrot.slane %v4872, 2
        %v5134 = vsel %vm4887, %v5132, %v5133
        %v5135 = vrot.slane %v4873, 2
        %v5136 = vsel %vm4887, %v5133, %v5135
        %v5139 = vadd.f32 %v5123, %v5134
        %v5140 = vadd.f32 %v5124, %v5136
        %v5141 = vmul.f32 %v4871, %v4871
        %v5142 = vmul.f32 %v4872, %v4872
        %v5143 = vmul.f32 %v4873, %v4873
        %v5147 = vrot.slane %v5141, 2
        %v5148 = vrot.slane %v5142, 2
        %v5149 = vsel %vm4887, %v5147, %v5148
        %v5150 = vrot.slane %v5143, 2
        %v5151 = vsel %vm4887, %v5148, %v5150
        %v5154 = vadd.f32 %v5127, %v5149
        %v5155 = vadd.f32 %v5128, %v5151
        %v5158 = vrot.slane %v4873, 4
        %v5159 = vrot.slane %v4874, 4
        %v5160 = vsel %vm4914, %v5158, %v5159
        %v5161 = vrot.slane %v4875, 4
        %v5162 = vsel %vm4914, %v5159, %v5161
        %v5165 = vadd.f32 %v5139, %v5160
        %v5166 = vadd.f32 %v5140, %v5162
        %v5167 = vmul.f32 %v4874, %v4874
        %v5168 = vmul.f32 %v4875, %v4875
        %v5171 = vrot.slane %v5143, 4
        %v5172 = vrot.slane %v5167, 4
        %v5173 = vsel %vm4914, %v5171, %v5172
        %v5174 = vrot.slane %v5168, 4
        %v5175 = vsel %vm4914, %v5172, %v5174
        %v5178 = vadd.f32 %v5154, %v5173
        %v5179 = vadd.f32 %v5155, %v5175
        %v5182 = vrot.slane %v4875, 6
        %v5183 = vrot.slane %v4876, 6
        %v5184 = vsel %vm500, %v5182, %v5183
        %v5185 = vrot.slane %v4877, 6
        %v5186 = vsel %vm500, %v5183, %v5185
        %v5189 = vadd.f32 %v5165, %v5184
        %v5190 = vadd.f32 %v5166, %v5186
        %v5191 = vmul.f32 %v4876, %v4876
        %v5192 = vmul.f32 %v4877, %v4877
        %v5195 = vrot.slane %v5168, 6
        %v5196 = vrot.slane %v5191, 6
        %v5197 = vsel %vm500, %v5195, %v5196
        %v5198 = vrot.slane %v5192, 6
        %v5199 = vsel %vm500, %v5196, %v5198
        %v5202 = vadd.f32 %v5178, %v5197
        %v5203 = vadd.f32 %v5179, %v5199
        %v5204 = vld [vmem:[#allocation2] sm:$0x1]
        %v5205 = vadd.f32 %v5189, %v5190
        %v5206 = vrot.slane %v5205, 4
        %v5207 = vadd.f32 %v5205, %v5206
        %v5208 = vrot.slane %v5207, 2
        %v5209 = vadd.f32 %v5207, %v5208
        %v5210 = vrot.slane %v5209, 1
        %v5211 = vadd.f32 %v5209, %v5210
        %v5212 = vadd.f32 %v5204, %v5211
        %5213 = vst [vmem:[#allocation2] sm:$0x1] %v5212
        %v5214 = vld [vmem:[#allocation4] sm:$0x1]
        %v5215 = vadd.f32 %v5202, %v5203
        %v5216 = vrot.slane %v5215, 4
        %v5217 = vadd.f32 %v5215, %v5216
        %v5218 = vrot.slane %v5217, 2
        %v5219 = vadd.f32 %v5217, %v5218
        %v5220 = vrot.slane %v5219, 1
        %v5221 = vadd.f32 %v5219, %v5220
        %v5222 = vadd.f32 %v5214, %v5221
        %5223 = vst [vmem:[#allocation4] sm:$0x1] %v5222
        // Predicated region
        $region33: #{tpu_custom_call.1} parent=27 // pred_check
          %p5224 = pneg %p77
        $region34: #{tpu_custom_call.1} parent=27 // pred_check_branch
          %5226 = sbr.rel (%p5224) target = $region36
        $region35: #{tpu_custom_call.1} parent=27 // pred_region
          %5228 = vsyncadd [#allocation3], 0
          %s5230 = sshll.u32 [#allocation2], 4
          %s5231 = int_to_ptr.vmem [resolvable:$true] %s5230
          %s5232 = sshll.u32 %s2, 4
          %s5233 = int_to_ptr.hbm [resolvable:$true] %s5232
          %5235 = dma.vmem_to_hbm [thread:$0]  %s5231, 16, %s5233, [#allocation3]
        $region36: #{tpu_custom_call.1} parent=27 // pred_fallthru
          _
        // Predicated region
        $region37: #{tpu_custom_call.1} parent=27 // pred_check
          %p5236 = pneg %p98
        $region38: #{tpu_custom_call.1} parent=27 // pred_check_branch
          %5238 = sbr.rel (%p5236) target = $region40
        $region39: #{tpu_custom_call.1} parent=27 // pred_region
          %5240 = vsyncadd [#allocation5], 0
          %s5242 = sshll.u32 [#allocation4], 4
          %s5243 = int_to_ptr.vmem [resolvable:$true] %s5242
          %s5244 = sshll.u32 %s3, 4
          %s5245 = int_to_ptr.hbm [resolvable:$true] %s5244
          %5247 = dma.vmem_to_hbm [thread:$0]  %s5243, 16, %s5245, [#allocation5]
        $region40: #{tpu_custom_call.1} parent=27 // pred_fallthru
          _
        // Predicated region
        $region41: #{tpu_custom_call.1} parent=27 // pred_check
          %p5248 = pneg %p77
        $region42: #{tpu_custom_call.1} parent=27 // pred_check_branch
          %5250 = sbr.rel (%p5248) target = $region44
        $region43: #{tpu_custom_call.1} parent=27 // pred_region
          %5252 = dma.done [#allocation3], 16
        $region44: #{tpu_custom_call.1} parent=27 // pred_fallthru
          _
        // Predicated region
        $region45: #{tpu_custom_call.1} parent=27 // pred_check
          %p5253 = pneg %p98
        $region46: #{tpu_custom_call.1} parent=27 // pred_check_branch
          %5255 = sbr.rel (%p5253) target = $region48
        $region47: #{tpu_custom_call.1} parent=27 // pred_region
          %5257 = dma.done [#allocation5], 16
        $region48: #{tpu_custom_call.1} parent=27 // pred_fallthru
          _
      $region28: #{tpu_custom_call.1} parent=5 // pred_fallthru
        _
      %p5258 = scmp.le.s32.totalorder 2, %s12
      // Predicated region
      $region49: #{tpu_custom_call.1} parent=5 // pred_check
        %p5259 = pneg %p5258
      $region50: #{tpu_custom_call.1} parent=5 // pred_check_branch
        %5261 = sbr.rel (%p5259) target = $region52
      $region51: #{tpu_custom_call.1} parent=5 // pred_region
        %s5262 = ssub.s32 %s12, 2
      $region52: #{tpu_custom_call.1} parent=5 // pred_fallthru
        _
    $region6: #{tpu_custom_call.1} parent=1 // loop_footer
      %s16 = sadd.s32 1, %s12
    $region7: #{tpu_custom_call.1} parent=1 // loop_footer_branch
      %11 = sbr.rel target = $region3
    $region8: #{tpu_custom_call.1} parent=1 // loop_exit
      _
    %5263 = vsyncpa [#allocation3], 1
    %s5264 = scalar_lea.sflag [#allocation3], 1
    %5265 = vsyncpa %s5264, 1
    %5266 = vsyncpa [#allocation5], 1

</llo_original>
